<compile_context>
chip_gen: v6e
topology: v6e:2x2x1
jax: 0.10.0
libtpu: 0.0.40
codegen_flags: <defaults>
</compile_context>

<pallas_src>
import jax
import jax.numpy as jnp
from jax.experimental import pallas as pl
from jax.experimental.pallas import tpu as pltpu


OUT_DIM = 10     # real logits width
OUT_PAD = 128    # lane-dense padded logits width


def _round_up(n, m):
    return ((n + m - 1) // m) * m


def _mlp_kernel(x_ref,
                wf_ref, bf_ref,
                w0_ref, b0_ref,
                w1_ref, b1_ref,
                w2_ref, b2_ref,
                o_ref):
    """Fused feature-extractor + CategoryClassifier MLP on one batch tile.

    x:  [TILE_B, D_in]        bf16
    wf: [D_in, 1024] bf16, bf: [1, 1024] f32   (synthetic feature extractor, ReLU)
    w0: [1024, 512]  bf16, b0: [1, 512]  f32   (Linear + ReLU)
    w1: [512, 256]   bf16, b1: [1, 256]  f32   (Linear + ReLU)
    w2: [256, 128]   bf16, b2: [1, 128]  f32   (Linear, zero-padded 10 -> 128)
    o:  [TILE_B, 128] f32
    """
    x = x_ref[...]

    # feature_extractor: Linear + ReLU  (bf16 MXU, f32 accumulate)
    h = jnp.dot(x, wf_ref[...], preferred_element_type=jnp.float32) + bf_ref[...]
    h = jnp.maximum(h, 0.0).astype(jnp.bfloat16)

    # Linear(1024,512) + ReLU
    h = jnp.dot(h, w0_ref[...], preferred_element_type=jnp.float32) + b0_ref[...]
    h = jnp.maximum(h, 0.0).astype(jnp.bfloat16)

    # Linear(512,256) + ReLU
    h = jnp.dot(h, w1_ref[...], preferred_element_type=jnp.float32) + b1_ref[...]
    h = jnp.maximum(h, 0.0).astype(jnp.bfloat16)

    # Linear(256,10) padded to 128 lanes
    o_ref[...] = (jnp.dot(h, w2_ref[...], preferred_element_type=jnp.float32)
                  + b2_ref[...]).astype(o_ref.dtype)


def upper_classifier_forward(x_nchw, params, *, tile_b=256):
    """x_nchw: [B, C, H, W] float32. Returns logits [B, 10] float32."""
    B = x_nchw.shape[0]
    x = x_nchw.reshape(B, -1).astype(jnp.bfloat16)   # flatten like torch .view(B, -1)
    d_in = x.shape[1]

    wf, bf, w0, b0, w1, b1, w2, b2 = params

    # bf16 weights (halved HBM traffic, native MXU); biases stay f32.
    wf16 = wf.astype(jnp.bfloat16)
    w016 = w0.astype(jnp.bfloat16)
    w116 = w1.astype(jnp.bfloat16)
    # Pad the final layer from N=10 to N=128 for lane-dense stores.
    w2p = jnp.zeros((w2.shape[0], OUT_PAD), jnp.bfloat16).at[:, :OUT_DIM].set(
        w2.astype(jnp.bfloat16))
    b2p = jnp.zeros((1, OUT_PAD), jnp.float32).at[:, :OUT_DIM].set(b2)

    # Batch tile: MXU-friendly 256 for real batches, minimal 8-aligned tile for
    # tiny demo batches.  Pad B up to a multiple of the tile.
    tile_b = min(tile_b, max(8, _round_up(B, 8)))
    b_pad = _round_up(B, tile_b)
    if b_pad != B:
        x = jnp.pad(x, ((0, b_pad - B), (0, 0)))

    weights = (wf16, bf, w016, b0, w116, b1, w2p, b2p)

    # x is tiled over the batch grid; weights/biases use constant index_maps so
    # their blocks (== full arrays) stay VMEM-resident across grid steps.
    in_specs = [pl.BlockSpec((tile_b, d_in), lambda i: (i, 0))] + [
        pl.BlockSpec(w.shape, lambda i, _nd=w.ndim: (0,) * _nd) for w in weights
    ]
    out_spec = pl.BlockSpec((tile_b, OUT_PAD), lambda i: (i, 0))

    flops = 2 * b_pad * (d_in * 1024 + 1024 * 512 + 512 * 256 + 256 * OUT_PAD)
    bytes_accessed = (x.size * 2
                      + sum(int(w.size) * w.dtype.itemsize for w in weights)
                      + b_pad * OUT_PAD * 4)

    out = pl.pallas_call(
        _mlp_kernel,
        out_shape=jax.ShapeDtypeStruct((b_pad, OUT_PAD), jnp.float32),
        grid=(b_pad // tile_b,),
        in_specs=in_specs,
        out_specs=out_spec,
        compiler_params=pltpu.CompilerParams(
            dimension_semantics=("parallel",),   # shard batch over v7x cores
            vmem_limit_bytes=64 << 20),
        cost_estimate=pl.CostEstimate(
            flops=flops, transcendentals=0, bytes_accessed=bytes_accessed),
    )(x, *weights)

    return out[:B, :OUT_DIM]


def init_params(key, d_in):
    """Deterministic PyTorch-style init: U(-1/sqrt(fan_in), 1/sqrt(fan_in))."""
    dims = [(d_in, 1024), (1024, 512), (512, 256), (256, OUT_DIM)]
    params = []
    for i, (fan_in, fan_out) in enumerate(dims):
        kw, kb = jax.random.split(jax.random.fold_in(key, i))
        bound = 1.0 / jnp.sqrt(jnp.float32(fan_in))
        w = jax.random.uniform(kw, (fan_in, fan_out), jnp.float32, -bound, bound)
        b = jax.random.uniform(kb, (1, fan_out), jnp.float32, -bound, bound)
        params += [w, b]
    return tuple(params)


def reference_forward(x_nchw, params):
    """Plain-JAX reference mirroring the kernel's bf16/f32 mixed precision."""
    x = x_nchw.reshape(x_nchw.shape[0], -1).astype(jnp.bfloat16)
    wf, bf, w0, b0, w1, b1, w2, b2 = params

    def lin(h, w, b):
        return jnp.dot(h, w.astype(jnp.bfloat16),
                       preferred_element_type=jnp.float32) + b

    h = jnp.maximum(lin(x, wf, bf), 0.0).astype(jnp.bfloat16)
    h = jnp.maximum(lin(h, w0, b0), 0.0).astype(jnp.bfloat16)
    h = jnp.maximum(lin(h, w1, b1), 0.0).astype(jnp.bfloat16)
    return lin(h, w2, b2)


if __name__ == "__main__":
    key = jax.random.PRNGKey(0)
    kx, kp = jax.random.split(key)

    # Small NCHW input: batch=2, channels=4, spatial=16x16 -> D_in = 1024,
    # matching CategoryClassifier's expected 1024-dim feature input.
    B, C, H, W = 2, 4, 16, 16
    x = jax.random.normal(kx, (B, C, H, W), jnp.float32)

    params = init_params(kp, C * H * W)

    out = upper_classifier_forward(x, params)
    out = jax.block_until_ready(out)

    ref = reference_forward(x, params)
    assert out.shape == (B, OUT_DIM), out.shape
    assert jnp.allclose(out, ref, atol=2e-2, rtol=2e-2), "mismatch vs reference"

    print("KERNEL_OK")
</pallas_src>

<mosaic_0001>
module attributes {stable_mosaic.version = 11 : i64} {
  func.func @_mlp_kernel(%arg0: i32, %arg1: memref<8x1024xbf16, #tpu.memory_space<vmem>>, %arg2: memref<1024x1024xbf16, #tpu.memory_space<vmem>>, %arg3: memref<1x1024xf32, #tpu.memory_space<vmem>>, %arg4: memref<1024x512xbf16, #tpu.memory_space<vmem>>, %arg5: memref<1x512xf32, #tpu.memory_space<vmem>>, %arg6: memref<512x256xbf16, #tpu.memory_space<vmem>>, %arg7: memref<1x256xf32, #tpu.memory_space<vmem>>, %arg8: memref<256x128xbf16, #tpu.memory_space<vmem>>, %arg9: memref<1x128xf32, #tpu.memory_space<vmem>>, %arg10: memref<8x128xf32, #tpu.memory_space<vmem>>) attributes {dimension_semantics = [#tpu.dimension_semantics<parallel>], iteration_bounds = array<i64: 1>, scalar_prefetch = 0 : i64, scratch_operands = 0 : i64, tpu.core_type = #tpu.core_type<tc>, window_params = [{transform_indices = @transform_0, window_bounds = array<i64: 8, 1024>}, {pipeline_mode = #tpu.pipeline_mode<synchronous>, transform_indices = @transform_1, window_bounds = array<i64: 1024, 1024>}, {pipeline_mode = #tpu.pipeline_mode<synchronous>, transform_indices = @transform_2, window_bounds = array<i64: 1, 1024>}, {pipeline_mode = #tpu.pipeline_mode<synchronous>, transform_indices = @transform_3, window_bounds = array<i64: 1024, 512>}, {pipeline_mode = #tpu.pipeline_mode<synchronous>, transform_indices = @transform_4, window_bounds = array<i64: 1, 512>}, {pipeline_mode = #tpu.pipeline_mode<synchronous>, transform_indices = @transform_5, window_bounds = array<i64: 512, 256>}, {pipeline_mode = #tpu.pipeline_mode<synchronous>, transform_indices = @transform_6, window_bounds = array<i64: 1, 256>}, {pipeline_mode = #tpu.pipeline_mode<synchronous>, transform_indices = @transform_7, window_bounds = array<i64: 256, 128>}, {pipeline_mode = #tpu.pipeline_mode<synchronous>, transform_indices = @transform_8, window_bounds = array<i64: 1, 128>}, {transform_indices = @transform_9, window_bounds = array<i64: 8, 128>}]} {
    %c0 = arith.constant 0 : index
    %c0_0 = arith.constant 0 : index
    %0 = vector.load %arg1[%c0, %c0_0] : memref<8x1024xbf16, #tpu.memory_space<vmem>>, vector<8x1024xbf16>
    %c0_1 = arith.constant 0 : index
    %c0_2 = arith.constant 0 : index
    %1 = vector.load %arg2[%c0_1, %c0_2] : memref<1024x1024xbf16, #tpu.memory_space<vmem>>, vector<1024x1024xbf16>
    %cst = arith.constant dense<0.000000e+00> : vector<8x1024xf32>
    %2 = tpu.matmul %0, %1, %cst {dimension_numbers = #tpu.dot_dimension_numbers<[1], [0], [0], [1], [0, 0, 1, 1], [], []>} : vector<8x1024xbf16>, vector<1024x1024xbf16>, vector<8x1024xf32> -> vector<8x1024xf32>
    %c0_3 = arith.constant 0 : index
    %c0_4 = arith.constant 0 : index
    %3 = vector.load %arg3[%c0_3, %c0_4] : memref<1x1024xf32, #tpu.memory_space<vmem>>, vector<1x1024xf32>
    %4 = vector.broadcast %3 : vector<1x1024xf32> to vector<8x1024xf32>
    %5 = arith.addf %2, %4 : vector<8x1024xf32>
    %cst_5 = arith.constant 0.000000e+00 : f32
    %6 = vector.broadcast %cst_5 : f32 to vector<8x1024xf32>
    %7 = arith.maximumf %5, %6 : vector<8x1024xf32>
    %8 = arith.truncf %7 : vector<8x1024xf32> to vector<8x1024xbf16>
    %c0_6 = arith.constant 0 : index
    %c0_7 = arith.constant 0 : index
    %9 = vector.load %arg4[%c0_6, %c0_7] : memref<1024x512xbf16, #tpu.memory_space<vmem>>, vector<1024x512xbf16>
    %cst_8 = arith.constant dense<0.000000e+00> : vector<8x512xf32>
    %10 = tpu.matmul %8, %9, %cst_8 {dimension_numbers = #tpu.dot_dimension_numbers<[1], [0], [0], [1], [0, 0, 1, 1], [], []>} : vector<8x1024xbf16>, vector<1024x512xbf16>, vector<8x512xf32> -> vector<8x512xf32>
    %c0_9 = arith.constant 0 : index
    %c0_10 = arith.constant 0 : index
    %11 = vector.load %arg5[%c0_9, %c0_10] : memref<1x512xf32, #tpu.memory_space<vmem>>, vector<1x512xf32>
    %12 = vector.broadcast %11 : vector<1x512xf32> to vector<8x512xf32>
    %13 = arith.addf %10, %12 : vector<8x512xf32>
    %cst_11 = arith.constant 0.000000e+00 : f32
    %14 = vector.broadcast %cst_11 : f32 to vector<8x512xf32>
    %15 = arith.maximumf %13, %14 : vector<8x512xf32>
    %16 = arith.truncf %15 : vector<8x512xf32> to vector<8x512xbf16>
    %c0_12 = arith.constant 0 : index
    %c0_13 = arith.constant 0 : index
    %17 = vector.load %arg6[%c0_12, %c0_13] : memref<512x256xbf16, #tpu.memory_space<vmem>>, vector<512x256xbf16>
    %cst_14 = arith.constant dense<0.000000e+00> : vector<8x256xf32>
    %18 = tpu.matmul %16, %17, %cst_14 {dimension_numbers = #tpu.dot_dimension_numbers<[1], [0], [0], [1], [0, 0, 1, 1], [], []>} : vector<8x512xbf16>, vector<512x256xbf16>, vector<8x256xf32> -> vector<8x256xf32>
    %c0_15 = arith.constant 0 : index
    %c0_16 = arith.constant 0 : index
    %19 = vector.load %arg7[%c0_15, %c0_16] : memref<1x256xf32, #tpu.memory_space<vmem>>, vector<1x256xf32>
    %20 = vector.broadcast %19 : vector<1x256xf32> to vector<8x256xf32>
    %21 = arith.addf %18, %20 : vector<8x256xf32>
    %cst_17 = arith.constant 0.000000e+00 : f32
    %22 = vector.broadcast %cst_17 : f32 to vector<8x256xf32>
    %23 = arith.maximumf %21, %22 : vector<8x256xf32>
    %24 = arith.truncf %23 : vector<8x256xf32> to vector<8x256xbf16>
    %c0_18 = arith.constant 0 : index
    %c0_19 = arith.constant 0 : index
    %25 = vector.load %arg8[%c0_18, %c0_19] : memref<256x128xbf16, #tpu.memory_space<vmem>>, vector<256x128xbf16>
    %cst_20 = arith.constant dense<0.000000e+00> : vector<8x128xf32>
    %26 = tpu.matmul %24, %25, %cst_20 {dimension_numbers = #tpu.dot_dimension_numbers<[1], [0], [0], [1], [0, 0, 1, 1], [], []>} : vector<8x256xbf16>, vector<256x128xbf16>, vector<8x128xf32> -> vector<8x128xf32>
    %c0_21 = arith.constant 0 : index
    %c0_22 = arith.constant 0 : index
    %27 = vector.load %arg9[%c0_21, %c0_22] : memref<1x128xf32, #tpu.memory_space<vmem>>, vector<1x128xf32>
    %28 = vector.broadcast %27 : vector<1x128xf32> to vector<8x128xf32>
    %29 = arith.addf %26, %28 : vector<8x128xf32>
    %c0_23 = arith.constant 0 : index
    %c0_24 = arith.constant 0 : index
    %30 = vector.load %arg10[%c0_23, %c0_24] : memref<8x128xf32, #tpu.memory_space<vmem>>, vector<8x128xf32>
    tpu.vector_store %arg10[%c0_23, %c0_24], %29 {strides = array<i32>} : memref<8x128xf32, #tpu.memory_space<vmem>>, vector<8x128xf32>,
    return
  }
  func.func @transform_0(%arg0: i32) -> (i32, i32) {
    %c0_i32 = arith.constant 0 : i32
    %c0_i32_0 = arith.constant 0 : i32
    return %arg0, %c0_i32 : i32, i32
  }
  func.func @transform_1(%arg0: i32) -> (i32, i32) {
    %c0_i32 = arith.constant 0 : i32
    %c0_i32_0 = arith.constant 0 : i32
    %c0_i32_1 = arith.constant 0 : i32
    return %c0_i32, %c0_i32_0 : i32, i32
  }
  func.func @transform_2(%arg0: i32) -> (i32, i32) {
    %c0_i32 = arith.constant 0 : i32
    %c0_i32_0 = arith.constant 0 : i32
    %c0_i32_1 = arith.constant 0 : i32
    return %c0_i32, %c0_i32_0 : i32, i32
  }
  func.func @transform_3(%arg0: i32) -> (i32, i32) {
    %c0_i32 = arith.constant 0 : i32
    %c0_i32_0 = arith.constant 0 : i32
    %c0_i32_1 = arith.constant 0 : i32
    return %c0_i32, %c0_i32_0 : i32, i32
  }
  func.func @transform_4(%arg0: i32) -> (i32, i32) {
    %c0_i32 = arith.constant 0 : i32
    %c0_i32_0 = arith.constant 0 : i32
    %c0_i32_1 = arith.constant 0 : i32
    return %c0_i32, %c0_i32_0 : i32, i32
  }
  func.func @transform_5(%arg0: i32) -> (i32, i32) {
    %c0_i32 = arith.constant 0 : i32
    %c0_i32_0 = arith.constant 0 : i32
    %c0_i32_1 = arith.constant 0 : i32
    return %c0_i32, %c0_i32_0 : i32, i32
  }
  func.func @transform_6(%arg0: i32) -> (i32, i32) {
    %c0_i32 = arith.constant 0 : i32
    %c0_i32_0 = arith.constant 0 : i32
    %c0_i32_1 = arith.constant 0 : i32
    return %c0_i32, %c0_i32_0 : i32, i32
  }
  func.func @transform_7(%arg0: i32) -> (i32, i32) {
    %c0_i32 = arith.constant 0 : i32
    %c0_i32_0 = arith.constant 0 : i32
    %c0_i32_1 = arith.constant 0 : i32
    return %c0_i32, %c0_i32_0 : i32, i32
  }
  func.func @transform_8(%arg0: i32) -> (i32, i32) {
    %c0_i32 = arith.constant 0 : i32
    %c0_i32_0 = arith.constant 0 : i32
    %c0_i32_1 = arith.constant 0 : i32
    return %c0_i32, %c0_i32_0 : i32, i32
  }
  func.func @transform_9(%arg0: i32) -> (i32, i32) {
    %c0_i32 = arith.constant 0 : i32
    %c0_i32_0 = arith.constant 0 : i32
    return %arg0, %c0_i32 : i32, i32
  }
}

</mosaic_0001>

<llo_original>
// kernel: tpu_custom_call.1
$region0: #{tpu_custom_call.1}
  #allocation0 [shape = 'u32[]', space=smem, size = 0x4, offset = 0x4, fixed_abs, tag = 'smem constant byte address 0x4 - core index']
  #allocation1 [shape = 'u32[144,128]{1,0:T(1,128)}', space=vmem, size = 0x12000, scoped, tag = 'internal scratch']
  %s0 = inlined_call_operand.hbm [shape: bf16[8,1024], index: 0, kind: input, shape index: {}]
  %s1 = inlined_call_operand.hbm [shape: bf16[1024,1024], index: 1, kind: input, shape index: {}]
  %s2 = inlined_call_operand.hbm [shape: f32[1,1024], index: 2, kind: input, shape index: {}]
  %s3 = inlined_call_operand.hbm [shape: bf16[1024,512], index: 3, kind: input, shape index: {}]
  %s4 = inlined_call_operand.hbm [shape: f32[1,512], index: 4, kind: input, shape index: {}]
  %s5 = inlined_call_operand.hbm [shape: bf16[512,256], index: 5, kind: input, shape index: {}]
  %s6 = inlined_call_operand.hbm [shape: f32[1,256], index: 6, kind: input, shape index: {}]
  %s7 = inlined_call_operand.hbm [shape: bf16[256,128], index: 7, kind: input, shape index: {}]
  %s8 = inlined_call_operand.hbm [shape: f32[1,128], index: 8, kind: input, shape index: {}]
  %s9 = inlined_call_operand.hbm [shape: f32[8,128], index: 9, kind: output, shape index: {}]
  %s10 = sld [smem:[#allocation0]]
  $region82: #{tpu_custom_call.1} parent=0
    _
  %s12 = ssub.s32 1, %s10
  %s13 = scalar_select 0, %s12, %s10
  $region1: #{tpu_custom_call.1} parent=0
    #allocation2 [shape = 'u8[16384]{0}', space=vmem, size = 0x4000, scoped, tag = 'input window, operand 0, single buffered']
    #allocation3 [shape = 's32[1]{0}', space=sflag, size = 0x4, scoped, tag = 'scoped memory for tpu_custom_call.1']
    #allocation4 [shape = 's32[1]{0}', space=sflag, size = 0x4, scoped, tag = 'scoped memory for tpu_custom_call.1']
    #allocation5 [shape = 'u8[2097152]{0}', space=vmem, size = 0x200000, scoped, tag = 'input window, operand 1, single buffered']
    #allocation6 [shape = 's32[1]{0}', space=sflag, size = 0x4, scoped, tag = 'scoped memory for tpu_custom_call.1']
    #allocation7 [shape = 'u8[4096]{0}', space=vmem, size = 0x1000, scoped, tag = 'input window, operand 2, single buffered']
    #allocation8 [shape = 'u8[1048576]{0}', space=vmem, size = 0x100000, scoped, tag = 'input window, operand 3, single buffered']
    #allocation9 [shape = 's32[1]{0}', space=sflag, size = 0x4, scoped, tag = 'scoped memory for tpu_custom_call.1']
    #allocation10 [shape = 'u8[2048]{0}', space=vmem, size = 0x800, scoped, tag = 'input window, operand 4, single buffered']
    #allocation11 [shape = 'u8[262144]{0}', space=vmem, size = 0x40000, scoped, tag = 'input window, operand 5, single buffered']
    #allocation12 [shape = 's32[1]{0}', space=sflag, size = 0x4, scoped, tag = 'scoped memory for tpu_custom_call.1']
    #allocation13 [shape = 'u8[1024]{0}', space=vmem, size = 0x400, scoped, tag = 'input window, operand 6, single buffered']
    #allocation14 [shape = 'u8[65536]{0}', space=vmem, size = 0x10000, scoped, tag = 'input window, operand 7, single buffered']
    #allocation15 [shape = 's32[1]{0}', space=sflag, size = 0x4, scoped, tag = 'scoped memory for tpu_custom_call.1']
    #allocation16 [shape = 'u8[512]{0}', space=vmem, size = 0x400, scoped, tag = 'input window, operand 8, single buffered']
    #allocation17 [shape = 'u8[4096]{0}', space=vmem, size = 0x1000, scoped, tag = 'output window, operand 0, single buffered']
    %14 = vsyncpa [#allocation3], 0
    %15 = vsyncpa [#allocation6], 0
    %16 = vsyncpa [#allocation9], 0
    %17 = vsyncpa [#allocation12], 0
    %18 = vsyncpa [#allocation15], 0
    %19 = vsyncpa [#allocation4], 0
    // Predicated region
    $region2: #{tpu_custom_call.1} parent=1 // pred_check
      _
    $region3: #{tpu_custom_call.1} parent=1 // pred_check_branch
      %21 = sbr.rel (0) target = $region5
    $region4: #{tpu_custom_call.1} parent=1 // pred_region
      %s23 = ssub.s32 512, 512
      %24 = vsyncadd [#allocation3], %s23
      %s26 = sshll.u32 [#allocation2], 4
      %s27 = int_to_ptr.vmem [resolvable:$true] %s26
      %29 = dma.hbm_to_vmem [thread:$0]  %s0, 512, %s27, [#allocation3]
    $region5: #{tpu_custom_call.1} parent=1 // pred_fallthru
      _
    // Predicated region
    $region6: #{tpu_custom_call.1} parent=1 // pred_check
      _
    $region7: #{tpu_custom_call.1} parent=1 // pred_check_branch
      %31 = sbr.rel (0) target = $region9
    $region8: #{tpu_custom_call.1} parent=1 // pred_region
      %s33 = ssub.s32 65536, 65536
      %34 = vsyncadd [#allocation6], %s33
      %s35 = sshll.u32 [#allocation5], 4
      %s36 = int_to_ptr.vmem [resolvable:$true] %s35
      %41 = dma.hbm_to_vmem [thread:$0]  %s1, 65536, %s36, [#allocation6], 512, 512, 32
    $region9: #{tpu_custom_call.1} parent=1 // pred_fallthru
      _
    // Predicated region
    $region10: #{tpu_custom_call.1} parent=1 // pred_check
      _
    $region11: #{tpu_custom_call.1} parent=1 // pred_check_branch
      %43 = sbr.rel (0) target = $region13
    $region12: #{tpu_custom_call.1} parent=1 // pred_region
      %s45 = ssub.s32 128, 128
      %46 = vsyncadd [#allocation6], %s45
      %s48 = sshll.u32 [#allocation7], 4
      %s49 = int_to_ptr.vmem [resolvable:$true] %s48
      %51 = dma.hbm_to_vmem [thread:$0]  %s2, 128, %s49, [#allocation6]
    $region13: #{tpu_custom_call.1} parent=1 // pred_fallthru
      _
    // Predicated region
    $region14: #{tpu_custom_call.1} parent=1 // pred_check
      _
    $region15: #{tpu_custom_call.1} parent=1 // pred_check_branch
      %53 = sbr.rel (0) target = $region17
    $region16: #{tpu_custom_call.1} parent=1 // pred_region
      %s55 = ssub.s32 32768, 32768
      %56 = vsyncadd [#allocation9], %s55
      %s57 = sshll.u32 [#allocation8], 4
      %s58 = int_to_ptr.vmem [resolvable:$true] %s57
      %63 = dma.hbm_to_vmem [thread:$0]  %s3, 32768, %s58, [#allocation9], 256, 256, 16
    $region17: #{tpu_custom_call.1} parent=1 // pred_fallthru
      _
    // Predicated region
    $region18: #{tpu_custom_call.1} parent=1 // pred_check
      _
    $region19: #{tpu_custom_call.1} parent=1 // pred_check_branch
      %65 = sbr.rel (0) target = $region21
    $region20: #{tpu_custom_call.1} parent=1 // pred_region
      %s67 = ssub.s32 64, 64
      %68 = vsyncadd [#allocation9], %s67
      %s70 = sshll.u32 [#allocation10], 4
      %s71 = int_to_ptr.vmem [resolvable:$true] %s70
      %73 = dma.hbm_to_vmem [thread:$0]  %s4, 64, %s71, [#allocation9]
    $region21: #{tpu_custom_call.1} parent=1 // pred_fallthru
      _
    // Predicated region
    $region22: #{tpu_custom_call.1} parent=1 // pred_check
      _
    $region23: #{tpu_custom_call.1} parent=1 // pred_check_branch
      %75 = sbr.rel (0) target = $region25
    $region24: #{tpu_custom_call.1} parent=1 // pred_region
      %s77 = ssub.s32 8192, 8192
      %78 = vsyncadd [#allocation12], %s77
      %s79 = sshll.u32 [#allocation11], 4
      %s80 = int_to_ptr.vmem [resolvable:$true] %s79
      %85 = dma.hbm_to_vmem [thread:$0]  %s5, 8192, %s80, [#allocation12], 128, 128, 8
    $region25: #{tpu_custom_call.1} parent=1 // pred_fallthru
      _
    // Predicated region
    $region26: #{tpu_custom_call.1} parent=1 // pred_check
      _
    $region27: #{tpu_custom_call.1} parent=1 // pred_check_branch
      %87 = sbr.rel (0) target = $region29
    $region28: #{tpu_custom_call.1} parent=1 // pred_region
      %s89 = ssub.s32 32, 32
      %90 = vsyncadd [#allocation12], %s89
      %s92 = sshll.u32 [#allocation13], 4
      %s93 = int_to_ptr.vmem [resolvable:$true] %s92
      %95 = dma.hbm_to_vmem [thread:$0]  %s6, 32, %s93, [#allocation12]
    $region29: #{tpu_custom_call.1} parent=1 // pred_fallthru
      _
    // Predicated region
    $region30: #{tpu_custom_call.1} parent=1 // pred_check
      _
    $region31: #{tpu_custom_call.1} parent=1 // pred_check_branch
      %97 = sbr.rel (0) target = $region33
    $region32: #{tpu_custom_call.1} parent=1 // pred_region
      %s99 = ssub.s32 2048, 2048
      %100 = vsyncadd [#allocation15], %s99
      %s101 = sshll.u32 [#allocation14], 4
      %s102 = int_to_ptr.vmem [resolvable:$true] %s101
      %107 = dma.hbm_to_vmem [thread:$0]  %s7, 2048, %s102, [#allocation15], 64, 64, 4
    $region33: #{tpu_custom_call.1} parent=1 // pred_fallthru
      _
    // Predicated region
    $region34: #{tpu_custom_call.1} parent=1 // pred_check
      _
    $region35: #{tpu_custom_call.1} parent=1 // pred_check_branch
      %109 = sbr.rel (0) target = $region37
    $region36: #{tpu_custom_call.1} parent=1 // pred_region
      %s111 = ssub.s32 16, 16
      %112 = vsyncadd [#allocation15], %s111
      %s114 = sshll.u32 [#allocation16], 4
      %s115 = int_to_ptr.vmem [resolvable:$true] %s114
      %117 = dma.hbm_to_vmem [thread:$0]  %s8, 16, %s115, [#allocation15]
    $region37: #{tpu_custom_call.1} parent=1 // pred_fallthru
      _
    // Predicated region
    $region38: #{tpu_custom_call.1} parent=1 // pred_check
      _
    $region39: #{tpu_custom_call.1} parent=1 // pred_check_branch
      %119 = sbr.rel (0) target = $region41
    $region40: #{tpu_custom_call.1} parent=1 // pred_region
      %120 = dma.done [#allocation3], 512
    $region41: #{tpu_custom_call.1} parent=1 // pred_fallthru
      _
    // Predicated region
    $region42: #{tpu_custom_call.1} parent=1 // pred_check
      _
    $region43: #{tpu_custom_call.1} parent=1 // pred_check_branch
      %122 = sbr.rel (0) target = $region45
    $region44: #{tpu_custom_call.1} parent=1 // pred_region
      %123 = dma.done [#allocation6], 65536
    $region45: #{tpu_custom_call.1} parent=1 // pred_fallthru
      _
    // Predicated region
    $region46: #{tpu_custom_call.1} parent=1 // pred_check
      _
    $region47: #{tpu_custom_call.1} parent=1 // pred_check_branch
      %125 = sbr.rel (0) target = $region49
    $region48: #{tpu_custom_call.1} parent=1 // pred_region
      %126 = dma.done [#allocation6], 128
    $region49: #{tpu_custom_call.1} parent=1 // pred_fallthru
      _
    // Predicated region
    $region50: #{tpu_custom_call.1} parent=1 // pred_check
      _
    $region51: #{tpu_custom_call.1} parent=1 // pred_check_branch
      %128 = sbr.rel (0) target = $region53
    $region52: #{tpu_custom_call.1} parent=1 // pred_region
      %129 = dma.done [#allocation9], 32768
    $region53: #{tpu_custom_call.1} parent=1 // pred_fallthru
      _
    // Predicated region
    $region54: #{tpu_custom_call.1} parent=1 // pred_check
      _
    $region55: #{tpu_custom_call.1} parent=1 // pred_check_branch
      %131 = sbr.rel (0) target = $region57
    $region56: #{tpu_custom_call.1} parent=1 // pred_region
      %132 = dma.done [#allocation9], 64
    $region57: #{tpu_custom_call.1} parent=1 // pred_fallthru
      _
    // Predicated region
    $region58: #{tpu_custom_call.1} parent=1 // pred_check
      _
    $region59: #{tpu_custom_call.1} parent=1 // pred_check_branch
      %134 = sbr.rel (0) target = $region61
    $region60: #{tpu_custom_call.1} parent=1 // pred_region
      %135 = dma.done [#allocation12], 8192
    $region61: #{tpu_custom_call.1} parent=1 // pred_fallthru
      _
    // Predicated region
    $region62: #{tpu_custom_call.1} parent=1 // pred_check
      _
    $region63: #{tpu_custom_call.1} parent=1 // pred_check_branch
      %137 = sbr.rel (0) target = $region65
    $region64: #{tpu_custom_call.1} parent=1 // pred_region
      %138 = dma.done [#allocation12], 32
    $region65: #{tpu_custom_call.1} parent=1 // pred_fallthru
      _
    // Predicated region
    $region66: #{tpu_custom_call.1} parent=1 // pred_check
      _
    $region67: #{tpu_custom_call.1} parent=1 // pred_check_branch
      %140 = sbr.rel (0) target = $region69
    $region68: #{tpu_custom_call.1} parent=1 // pred_region
      %141 = dma.done [#allocation15], 2048
    $region69: #{tpu_custom_call.1} parent=1 // pred_fallthru
      _
    // Predicated region
    $region70: #{tpu_custom_call.1} parent=1 // pred_check
      _
    $region71: #{tpu_custom_call.1} parent=1 // pred_check_branch
      %143 = sbr.rel (0) target = $region73
    $region72: #{tpu_custom_call.1} parent=1 // pred_region
      %144 = dma.done [#allocation15], 16
    $region73: #{tpu_custom_call.1} parent=1 // pred_fallthru
      _
    %v146 = vld [vmem:[#allocation2] sm:$0xff]
    %v147 = vld [vmem:[#allocation2 + $0x8] sm:$0xff]
    %v148 = vld [vmem:[#allocation2 + $0x10] sm:$0xff]
    %v149 = vld [vmem:[#allocation2 + $0x18] sm:$0xff]
    %v150 = vld [vmem:[#allocation5] sm:$0xff]
    %v151 = vld [vmem:[#allocation5 + $0x8] sm:$0xff]
    %v152 = vld [vmem:[#allocation5 + $0x10] sm:$0xff]
    %v153 = vld [vmem:[#allocation5 + $0x18] sm:$0xff]
    %v154 = vld [vmem:[#allocation5 + $0x20] sm:$0xff]
    %v155 = vld [vmem:[#allocation5 + $0x28] sm:$0xff]
    %v156 = vld [vmem:[#allocation5 + $0x30] sm:$0xff]
    %v157 = vld [vmem:[#allocation5 + $0x38] sm:$0xff]
    %v158 = vld [vmem:[#allocation5 + $0x40] sm:$0xff]
    %v159 = vld [vmem:[#allocation5 + $0x48] sm:$0xff]
    %v160 = vld [vmem:[#allocation5 + $0x50] sm:$0xff]
    %v161 = vld [vmem:[#allocation5 + $0x58] sm:$0xff]
    %v162 = vld [vmem:[#allocation5 + $0x60] sm:$0xff]
    %v163 = vld [vmem:[#allocation5 + $0x68] sm:$0xff]
    %v164 = vld [vmem:[#allocation5 + $0x70] sm:$0xff]
    %v165 = vld [vmem:[#allocation5 + $0x78] sm:$0xff]
    %v166 = vld [vmem:[#allocation5 + $0x80] sm:$0xff]
    %v167 = vld [vmem:[#allocation5 + $0x88] sm:$0xff]
    %v168 = vld [vmem:[#allocation5 + $0x90] sm:$0xff]
    %v169 = vld [vmem:[#allocation5 + $0x98] sm:$0xff]
    %v170 = vld [vmem:[#allocation5 + $0xa0] sm:$0xff]
    %v171 = vld [vmem:[#allocation5 + $0xa8] sm:$0xff]
    %v172 = vld [vmem:[#allocation5 + $0xb0] sm:$0xff]
    %v173 = vld [vmem:[#allocation5 + $0xb8] sm:$0xff]
    %v174 = vld [vmem:[#allocation5 + $0xc0] sm:$0xff]
    %v175 = vld [vmem:[#allocation5 + $0xc8] sm:$0xff]
    %v176 = vld [vmem:[#allocation5 + $0xd0] sm:$0xff]
    %v177 = vld [vmem:[#allocation5 + $0xd8] sm:$0xff]
    %v178 = vld [vmem:[#allocation5 + $0xe0] sm:$0xff]
    %v179 = vld [vmem:[#allocation5 + $0xe8] sm:$0xff]
    %v180 = vld [vmem:[#allocation5 + $0xf0] sm:$0xff]
    %v181 = vld [vmem:[#allocation5 + $0xf8] sm:$0xff]
    %v182 = vld [vmem:[#allocation5 + $0x100] sm:$0xff]
    %v183 = vld [vmem:[#allocation5 + $0x108] sm:$0xff]
    %v184 = vld [vmem:[#allocation5 + $0x110] sm:$0xff]
    %v185 = vld [vmem:[#allocation5 + $0x118] sm:$0xff]
    %v186 = vld [vmem:[#allocation5 + $0x120] sm:$0xff]
    %v187 = vld [vmem:[#allocation5 + $0x128] sm:$0xff]
    %v188 = vld [vmem:[#allocation5 + $0x130] sm:$0xff]
    %v189 = vld [vmem:[#allocation5 + $0x138] sm:$0xff]
    %v190 = vld [vmem:[#allocation5 + $0x140] sm:$0xff]
    %v191 = vld [vmem:[#allocation5 + $0x148] sm:$0xff]
    %v192 = vld [vmem:[#allocation5 + $0x150] sm:$0xff]
    %v193 = vld [vmem:[#allocation5 + $0x158] sm:$0xff]
    %v194 = vld [vmem:[#allocation5 + $0x160] sm:$0xff]
    %v195 = vld [vmem:[#allocation5 + $0x168] sm:$0xff]
    %v196 = vld [vmem:[#allocation5 + $0x170] sm:$0xff]
    %v197 = vld [vmem:[#allocation5 + $0x178] sm:$0xff]
    %v198 = vld [vmem:[#allocation5 + $0x180] sm:$0xff]
    %v199 = vld [vmem:[#allocation5 + $0x188] sm:$0xff]
    %v200 = vld [vmem:[#allocation5 + $0x190] sm:$0xff]
    %v201 = vld [vmem:[#allocation5 + $0x198] sm:$0xff]
    %v202 = vld [vmem:[#allocation5 + $0x1a0] sm:$0xff]
    %v203 = vld [vmem:[#allocation5 + $0x1a8] sm:$0xff]
    %v204 = vld [vmem:[#allocation5 + $0x1b0] sm:$0xff]
    %v205 = vld [vmem:[#allocation5 + $0x1b8] sm:$0xff]
    %v206 = vld [vmem:[#allocation5 + $0x1c0] sm:$0xff]
    %v207 = vld [vmem:[#allocation5 + $0x1c8] sm:$0xff]
    %v208 = vld [vmem:[#allocation5 + $0x1d0] sm:$0xff]
    %v209 = vld [vmem:[#allocation5 + $0x1d8] sm:$0xff]
    %v210 = vld [vmem:[#allocation5 + $0x1e0] sm:$0xff]
    %v211 = vld [vmem:[#allocation5 + $0x1e8] sm:$0xff]
    %v212 = vld [vmem:[#allocation5 + $0x1f0] sm:$0xff]
    %v213 = vld [vmem:[#allocation5 + $0x1f8] sm:$0xff]
    %v214 = vld [vmem:[#allocation5 + $0x200] sm:$0xff]
    %v215 = vld [vmem:[#allocation5 + $0x208] sm:$0xff]
    %v216 = vld [vmem:[#allocation5 + $0x210] sm:$0xff]
    %v217 = vld [vmem:[#allocation5 + $0x218] sm:$0xff]
    %v218 = vld [vmem:[#allocation5 + $0x220] sm:$0xff]
    %v219 = vld [vmem:[#allocation5 + $0x228] sm:$0xff]
    %v220 = vld [vmem:[#allocation5 + $0x230] sm:$0xff]
    %v221 = vld [vmem:[#allocation5 + $0x238] sm:$0xff]
    %v222 = vld [vmem:[#allocation5 + $0x240] sm:$0xff]
    %v223 = vld [vmem:[#allocation5 + $0x248] sm:$0xff]
    %v224 = vld [vmem:[#allocation5 + $0x250] sm:$0xff]
    %v225 = vld [vmem:[#allocation5 + $0x258] sm:$0xff]
    %v226 = vld [vmem:[#allocation5 + $0x260] sm:$0xff]
    %v227 = vld [vmem:[#allocation5 + $0x268] sm:$0xff]
    %v228 = vld [vmem:[#allocation5 + $0x270] sm:$0xff]
    %v229 = vld [vmem:[#allocation5 + $0x278] sm:$0xff]
    %v230 = vld [vmem:[#allocation5 + $0x280] sm:$0xff]
    %v231 = vld [vmem:[#allocation5 + $0x288] sm:$0xff]
    %v232 = vld [vmem:[#allocation5 + $0x290] sm:$0xff]
    %v233 = vld [vmem:[#allocation5 + $0x298] sm:$0xff]
    %v234 = vld [vmem:[#allocation5 + $0x2a0] sm:$0xff]
    %v235 = vld [vmem:[#allocation5 + $0x2a8] sm:$0xff]
    %v236 = vld [vmem:[#allocation5 + $0x2b0] sm:$0xff]
    %v237 = vld [vmem:[#allocation5 + $0x2b8] sm:$0xff]
    %v238 = vld [vmem:[#allocation5 + $0x2c0] sm:$0xff]
    %v239 = vld [vmem:[#allocation5 + $0x2c8] sm:$0xff]
    %v240 = vld [vmem:[#allocation5 + $0x2d0] sm:$0xff]
    %v241 = vld [vmem:[#allocation5 + $0x2d8] sm:$0xff]
    %v242 = vld [vmem:[#allocation5 + $0x2e0] sm:$0xff]
    %v243 = vld [vmem:[#allocation5 + $0x2e8] sm:$0xff]
    %v244 = vld [vmem:[#allocation5 + $0x2f0] sm:$0xff]
    %v245 = vld [vmem:[#allocation5 + $0x2f8] sm:$0xff]
    %v246 = vld [vmem:[#allocation5 + $0x300] sm:$0xff]
    %v247 = vld [vmem:[#allocation5 + $0x308] sm:$0xff]
    %v248 = vld [vmem:[#allocation5 + $0x310] sm:$0xff]
    %v249 = vld [vmem:[#allocation5 + $0x318] sm:$0xff]
    %v250 = vld [vmem:[#allocation5 + $0x320] sm:$0xff]
    %v251 = vld [vmem:[#allocation5 + $0x328] sm:$0xff]
    %v252 = vld [vmem:[#allocation5 + $0x330] sm:$0xff]
    %v253 = vld [vmem:[#allocation5 + $0x338] sm:$0xff]
    %v254 = vld [vmem:[#allocation5 + $0x340] sm:$0xff]
    %v255 = vld [vmem:[#allocation5 + $0x348] sm:$0xff]
    %v256 = vld [vmem:[#allocation5 + $0x350] sm:$0xff]
    %v257 = vld [vmem:[#allocation5 + $0x358] sm:$0xff]
    %v258 = vld [vmem:[#allocation5 + $0x360] sm:$0xff]
    %v259 = vld [vmem:[#allocation5 + $0x368] sm:$0xff]
    %v260 = vld [vmem:[#allocation5 + $0x370] sm:$0xff]
    %v261 = vld [vmem:[#allocation5 + $0x378] sm:$0xff]
    %v262 = vld [vmem:[#allocation5 + $0x380] sm:$0xff]
    %v263 = vld [vmem:[#allocation5 + $0x388] sm:$0xff]
    %v264 = vld [vmem:[#allocation5 + $0x390] sm:$0xff]
    %v265 = vld [vmem:[#allocation5 + $0x398] sm:$0xff]
    %v266 = vld [vmem:[#allocation5 + $0x3a0] sm:$0xff]
    %v267 = vld [vmem:[#allocation5 + $0x3a8] sm:$0xff]
    %v268 = vld [vmem:[#allocation5 + $0x3b0] sm:$0xff]
    %v269 = vld [vmem:[#allocation5 + $0x3b8] sm:$0xff]
    %v270 = vld [vmem:[#allocation5 + $0x3c0] sm:$0xff]
    %v271 = vld [vmem:[#allocation5 + $0x3c8] sm:$0xff]
    %v272 = vld [vmem:[#allocation5 + $0x3d0] sm:$0xff]
    %v273 = vld [vmem:[#allocation5 + $0x3d8] sm:$0xff]
    %v274 = vld [vmem:[#allocation5 + $0x3e0] sm:$0xff]
    %v275 = vld [vmem:[#allocation5 + $0x3e8] sm:$0xff]
    %v276 = vld [vmem:[#allocation5 + $0x3f0] sm:$0xff]
    %v277 = vld [vmem:[#allocation5 + $0x3f8] sm:$0xff]
    %v278 = vld [vmem:[#allocation5 + $0x400] sm:$0xff]
    %v279 = vld [vmem:[#allocation5 + $0x408] sm:$0xff]
    %v280 = vld [vmem:[#allocation5 + $0x410] sm:$0xff]
    %v281 = vld [vmem:[#allocation5 + $0x418] sm:$0xff]
    %v282 = vld [vmem:[#allocation5 + $0x420] sm:$0xff]
    %v283 = vld [vmem:[#allocation5 + $0x428] sm:$0xff]
    %v284 = vld [vmem:[#allocation5 + $0x430] sm:$0xff]
    %v285 = vld [vmem:[#allocation5 + $0x438] sm:$0xff]
    %v286 = vld [vmem:[#allocation5 + $0x440] sm:$0xff]
    %v287 = vld [vmem:[#allocation5 + $0x448] sm:$0xff]
    %v288 = vld [vmem:[#allocation5 + $0x450] sm:$0xff]
    %v289 = vld [vmem:[#allocation5 + $0x458] sm:$0xff]
    %v290 = vld [vmem:[#allocation5 + $0x460] sm:$0xff]
    %v291 = vld [vmem:[#allocation5 + $0x468] sm:$0xff]
    %v292 = vld [vmem:[#allocation5 + $0x470] sm:$0xff]
    %v293 = vld [vmem:[#allocation5 + $0x478] sm:$0xff]
    %v294 = vld [vmem:[#allocation5 + $0x480] sm:$0xff]
    %v295 = vld [vmem:[#allocation5 + $0x488] sm:$0xff]
    %v296 = vld [vmem:[#allocation5 + $0x490] sm:$0xff]
    %v297 = vld [vmem:[#allocation5 + $0x498] sm:$0xff]
    %v298 = vld [vmem:[#allocation5 + $0x4a0] sm:$0xff]
    %v299 = vld [vmem:[#allocation5 + $0x4a8] sm:$0xff]
    %v300 = vld [vmem:[#allocation5 + $0x4b0] sm:$0xff]
    %v301 = vld [vmem:[#allocation5 + $0x4b8] sm:$0xff]
    %v302 = vld [vmem:[#allocation5 + $0x4c0] sm:$0xff]
    %v303 = vld [vmem:[#allocation5 + $0x4c8] sm:$0xff]
    %v304 = vld [vmem:[#allocation5 + $0x4d0] sm:$0xff]
    %v305 = vld [vmem:[#allocation5 + $0x4d8] sm:$0xff]
    %v306 = vld [vmem:[#allocation5 + $0x4e0] sm:$0xff]
    %v307 = vld [vmem:[#allocation5 + $0x4e8] sm:$0xff]
    %v308 = vld [vmem:[#allocation5 + $0x4f0] sm:$0xff]
    %v309 = vld [vmem:[#allocation5 + $0x4f8] sm:$0xff]
    %v310 = vld [vmem:[#allocation5 + $0x500] sm:$0xff]
    %v311 = vld [vmem:[#allocation5 + $0x508] sm:$0xff]
    %v312 = vld [vmem:[#allocation5 + $0x510] sm:$0xff]
    %v313 = vld [vmem:[#allocation5 + $0x518] sm:$0xff]
    %v314 = vld [vmem:[#allocation5 + $0x520] sm:$0xff]
    %v315 = vld [vmem:[#allocation5 + $0x528] sm:$0xff]
    %v316 = vld [vmem:[#allocation5 + $0x530] sm:$0xff]
    %v317 = vld [vmem:[#allocation5 + $0x538] sm:$0xff]
    %v318 = vld [vmem:[#allocation5 + $0x540] sm:$0xff]
    %v319 = vld [vmem:[#allocation5 + $0x548] sm:$0xff]
    %v320 = vld [vmem:[#allocation5 + $0x550] sm:$0xff]
    %v321 = vld [vmem:[#allocation5 + $0x558] sm:$0xff]
    %v322 = vld [vmem:[#allocation5 + $0x560] sm:$0xff]
    %v323 = vld [vmem:[#allocation5 + $0x568] sm:$0xff]
    %v324 = vld [vmem:[#allocation5 + $0x570] sm:$0xff]
    %v325 = vld [vmem:[#allocation5 + $0x578] sm:$0xff]
    %v326 = vld [vmem:[#allocation5 + $0x580] sm:$0xff]
    %v327 = vld [vmem:[#allocation5 + $0x588] sm:$0xff]
    %v328 = vld [vmem:[#allocation5 + $0x590] sm:$0xff]
    %v329 = vld [vmem:[#allocation5 + $0x598] sm:$0xff]
    %v330 = vld [vmem:[#allocation5 + $0x5a0] sm:$0xff]
    %v331 = vld [vmem:[#allocation5 + $0x5a8] sm:$0xff]
    %v332 = vld [vmem:[#allocation5 + $0x5b0] sm:$0xff]
    %v333 = vld [vmem:[#allocation5 + $0x5b8] sm:$0xff]
    %v334 = vld [vmem:[#allocation5 + $0x5c0] sm:$0xff]
    %v335 = vld [vmem:[#allocation5 + $0x5c8] sm:$0xff]
    %v336 = vld [vmem:[#allocation5 + $0x5d0] sm:$0xff]
    %v337 = vld [vmem:[#allocation5 + $0x5d8] sm:$0xff]
    %v338 = vld [vmem:[#allocation5 + $0x5e0] sm:$0xff]
    %v339 = vld [vmem:[#allocation5 + $0x5e8] sm:$0xff]
    %v340 = vld [vmem:[#allocation5 + $0x5f0] sm:$0xff]
    %v341 = vld [vmem:[#allocation5 + $0x5f8] sm:$0xff]
    %v342 = vld [vmem:[#allocation5 + $0x600] sm:$0xff]
    %v343 = vld [vmem:[#allocation5 + $0x608] sm:$0xff]
    %v344 = vld [vmem:[#allocation5 + $0x610] sm:$0xff]
    %v345 = vld [vmem:[#allocation5 + $0x618] sm:$0xff]
    %v346 = vld [vmem:[#allocation5 + $0x620] sm:$0xff]
    %v347 = vld [vmem:[#allocation5 + $0x628] sm:$0xff]
    %v348 = vld [vmem:[#allocation5 + $0x630] sm:$0xff]
    %v349 = vld [vmem:[#allocation5 + $0x638] sm:$0xff]
    %v350 = vld [vmem:[#allocation5 + $0x640] sm:$0xff]
    %v351 = vld [vmem:[#allocation5 + $0x648] sm:$0xff]
    %v352 = vld [vmem:[#allocation5 + $0x650] sm:$0xff]
    %v353 = vld [vmem:[#allocation5 + $0x658] sm:$0xff]
    %v354 = vld [vmem:[#allocation5 + $0x660] sm:$0xff]
    %v355 = vld [vmem:[#allocation5 + $0x668] sm:$0xff]
    %v356 = vld [vmem:[#allocation5 + $0x670] sm:$0xff]
    %v357 = vld [vmem:[#allocation5 + $0x678] sm:$0xff]
    %v358 = vld [vmem:[#allocation5 + $0x680] sm:$0xff]
    %v359 = vld [vmem:[#allocation5 + $0x688] sm:$0xff]
    %v360 = vld [vmem:[#allocation5 + $0x690] sm:$0xff]
    %v361 = vld [vmem:[#allocation5 + $0x698] sm:$0xff]
    %v362 = vld [vmem:[#allocation5 + $0x6a0] sm:$0xff]
    %v363 = vld [vmem:[#allocation5 + $0x6a8] sm:$0xff]
    %v364 = vld [vmem:[#allocation5 + $0x6b0] sm:$0xff]
    %v365 = vld [vmem:[#allocation5 + $0x6b8] sm:$0xff]
    %v366 = vld [vmem:[#allocation5 + $0x6c0] sm:$0xff]
    %v367 = vld [vmem:[#allocation5 + $0x6c8] sm:$0xff]
    %v368 = vld [vmem:[#allocation5 + $0x6d0] sm:$0xff]
    %v369 = vld [vmem:[#allocation5 + $0x6d8] sm:$0xff]
    %v370 = vld [vmem:[#allocation5 + $0x6e0] sm:$0xff]
    %v371 = vld [vmem:[#allocation5 + $0x6e8] sm:$0xff]
    %v372 = vld [vmem:[#allocation5 + $0x6f0] sm:$0xff]
    %v373 = vld [vmem:[#allocation5 + $0x6f8] sm:$0xff]
    %v374 = vld [vmem:[#allocation5 + $0x700] sm:$0xff]
    %v375 = vld [vmem:[#allocation5 + $0x708] sm:$0xff]
    %v376 = vld [vmem:[#allocation5 + $0x710] sm:$0xff]
    %v377 = vld [vmem:[#allocation5 + $0x718] sm:$0xff]
    %v378 = vld [vmem:[#allocation5 + $0x720] sm:$0xff]
    %v379 = vld [vmem:[#allocation5 + $0x728] sm:$0xff]
    %v380 = vld [vmem:[#allocation5 + $0x730] sm:$0xff]
    %v381 = vld [vmem:[#allocation5 + $0x738] sm:$0xff]
    %v382 = vld [vmem:[#allocation5 + $0x740] sm:$0xff]
    %v383 = vld [vmem:[#allocation5 + $0x748] sm:$0xff]
    %v384 = vld [vmem:[#allocation5 + $0x750] sm:$0xff]
    %v385 = vld [vmem:[#allocation5 + $0x758] sm:$0xff]
    %v386 = vld [vmem:[#allocation5 + $0x760] sm:$0xff]
    %v387 = vld [vmem:[#allocation5 + $0x768] sm:$0xff]
    %v388 = vld [vmem:[#allocation5 + $0x770] sm:$0xff]
    %v389 = vld [vmem:[#allocation5 + $0x778] sm:$0xff]
    %v390 = vld [vmem:[#allocation5 + $0x780] sm:$0xff]
    %v391 = vld [vmem:[#allocation5 + $0x788] sm:$0xff]
    %v392 = vld [vmem:[#allocation5 + $0x790] sm:$0xff]
    %v393 = vld [vmem:[#allocation5 + $0x798] sm:$0xff]
    %v394 = vld [vmem:[#allocation5 + $0x7a0] sm:$0xff]
    %v395 = vld [vmem:[#allocation5 + $0x7a8] sm:$0xff]
    %v396 = vld [vmem:[#allocation5 + $0x7b0] sm:$0xff]
    %v397 = vld [vmem:[#allocation5 + $0x7b8] sm:$0xff]
    %v398 = vld [vmem:[#allocation5 + $0x7c0] sm:$0xff]
    %v399 = vld [vmem:[#allocation5 + $0x7c8] sm:$0xff]
    %v400 = vld [vmem:[#allocation5 + $0x7d0] sm:$0xff]
    %v401 = vld [vmem:[#allocation5 + $0x7d8] sm:$0xff]
    %v402 = vld [vmem:[#allocation5 + $0x7e0] sm:$0xff]
    %v403 = vld [vmem:[#allocation5 + $0x7e8] sm:$0xff]
    %v404 = vld [vmem:[#allocation5 + $0x7f0] sm:$0xff]
    %v405 = vld [vmem:[#allocation5 + $0x7f8] sm:$0xff]
    %v406 = vld [vmem:[#allocation5 + $0x800] sm:$0xff]
    %v407 = vld [vmem:[#allocation5 + $0x808] sm:$0xff]
    %v408 = vld [vmem:[#allocation5 + $0x810] sm:$0xff]
    %v409 = vld [vmem:[#allocation5 + $0x818] sm:$0xff]
    %v410 = vld [vmem:[#allocation5 + $0x820] sm:$0xff]
    %v411 = vld [vmem:[#allocation5 + $0x828] sm:$0xff]
    %v412 = vld [vmem:[#allocation5 + $0x830] sm:$0xff]
    %v413 = vld [vmem:[#allocation5 + $0x838] sm:$0xff]
    %v414 = vld [vmem:[#allocation5 + $0x840] sm:$0xff]
    %v415 = vld [vmem:[#allocation5 + $0x848] sm:$0xff]
    %v416 = vld [vmem:[#allocation5 + $0x850] sm:$0xff]
    %v417 = vld [vmem:[#allocation5 + $0x858] sm:$0xff]
    %v418 = vld [vmem:[#allocation5 + $0x860] sm:$0xff]
    %v419 = vld [vmem:[#allocation5 + $0x868] sm:$0xff]
    %v420 = vld [vmem:[#allocation5 + $0x870] sm:$0xff]
    %v421 = vld [vmem:[#allocation5 + $0x878] sm:$0xff]
    %v422 = vld [vmem:[#allocation5 + $0x880] sm:$0xff]
    %v423 = vld [vmem:[#allocation5 + $0x888] sm:$0xff]
    %v424 = vld [vmem:[#allocation5 + $0x890] sm:$0xff]
    %v425 = vld [vmem:[#allocation5 + $0x898] sm:$0xff]
    %v426 = vld [vmem:[#allocation5 + $0x8a0] sm:$0xff]
    %v427 = vld [vmem:[#allocation5 + $0x8a8] sm:$0xff]
    %v428 = vld [vmem:[#allocation5 + $0x8b0] sm:$0xff]
    %v429 = vld [vmem:[#allocation5 + $0x8b8] sm:$0xff]
    %v430 = vld [vmem:[#allocation5 + $0x8c0] sm:$0xff]
    %v431 = vld [vmem:[#allocation5 + $0x8c8] sm:$0xff]
    %v432 = vld [vmem:[#allocation5 + $0x8d0] sm:$0xff]
    %v433 = vld [vmem:[#allocation5 + $0x8d8] sm:$0xff]
    %v434 = vld [vmem:[#allocation5 + $0x8e0] sm:$0xff]
    %v435 = vld [vmem:[#allocation5 + $0x8e8] sm:$0xff]
    %v436 = vld [vmem:[#allocation5 + $0x8f0] sm:$0xff]
    %v437 = vld [vmem:[#allocation5 + $0x8f8] sm:$0xff]
    %v438 = vld [vmem:[#allocation5 + $0x900] sm:$0xff]
    %v439 = vld [vmem:[#allocation5 + $0x908] sm:$0xff]
    %v440 = vld [vmem:[#allocation5 + $0x910] sm:$0xff]
    %v441 = vld [vmem:[#allocation5 + $0x918] sm:$0xff]
    %v442 = vld [vmem:[#allocation5 + $0x920] sm:$0xff]
    %v443 = vld [vmem:[#allocation5 + $0x928] sm:$0xff]
    %v444 = vld [vmem:[#allocation5 + $0x930] sm:$0xff]
    %v445 = vld [vmem:[#allocation5 + $0x938] sm:$0xff]
    %v446 = vld [vmem:[#allocation5 + $0x940] sm:$0xff]
    %v447 = vld [vmem:[#allocation5 + $0x948] sm:$0xff]
    %v448 = vld [vmem:[#allocation5 + $0x950] sm:$0xff]
    %v449 = vld [vmem:[#allocation5 + $0x958] sm:$0xff]
    %v450 = vld [vmem:[#allocation5 + $0x960] sm:$0xff]
    %v451 = vld [vmem:[#allocation5 + $0x968] sm:$0xff]
    %v452 = vld [vmem:[#allocation5 + $0x970] sm:$0xff]
    %v453 = vld [vmem:[#allocation5 + $0x978] sm:$0xff]
    %v454 = vld [vmem:[#allocation5 + $0x980] sm:$0xff]
    %v455 = vld [vmem:[#allocation5 + $0x988] sm:$0xff]
    %v456 = vld [vmem:[#allocation5 + $0x990] sm:$0xff]
    %v457 = vld [vmem:[#allocation5 + $0x998] sm:$0xff]
    %v458 = vld [vmem:[#allocation5 + $0x9a0] sm:$0xff]
    %v459 = vld [vmem:[#allocation5 + $0x9a8] sm:$0xff]
    %v460 = vld [vmem:[#allocation5 + $0x9b0] sm:$0xff]
    %v461 = vld [vmem:[#allocation5 + $0x9b8] sm:$0xff]
    %v462 = vld [vmem:[#allocation5 + $0x9c0] sm:$0xff]
    %v463 = vld [vmem:[#allocation5 + $0x9c8] sm:$0xff]
    %v464 = vld [vmem:[#allocation5 + $0x9d0] sm:$0xff]
    %v465 = vld [vmem:[#allocation5 + $0x9d8] sm:$0xff]
    %v466 = vld [vmem:[#allocation5 + $0x9e0] sm:$0xff]
    %v467 = vld [vmem:[#allocation5 + $0x9e8] sm:$0xff]
    %v468 = vld [vmem:[#allocation5 + $0x9f0] sm:$0xff]
    %v469 = vld [vmem:[#allocation5 + $0x9f8] sm:$0xff]
    %v470 = vld [vmem:[#allocation5 + $0xa00] sm:$0xff]
    %v471 = vld [vmem:[#allocation5 + $0xa08] sm:$0xff]
    %v472 = vld [vmem:[#allocation5 + $0xa10] sm:$0xff]
    %v473 = vld [vmem:[#allocation5 + $0xa18] sm:$0xff]
    %v474 = vld [vmem:[#allocation5 + $0xa20] sm:$0xff]
    %v475 = vld [vmem:[#allocation5 + $0xa28] sm:$0xff]
    %v476 = vld [vmem:[#allocation5 + $0xa30] sm:$0xff]
    %v477 = vld [vmem:[#allocation5 + $0xa38] sm:$0xff]
    %v478 = vld [vmem:[#allocation5 + $0xa40] sm:$0xff]
    %v479 = vld [vmem:[#allocation5 + $0xa48] sm:$0xff]
    %v480 = vld [vmem:[#allocation5 + $0xa50] sm:$0xff]
    %v481 = vld [vmem:[#allocation5 + $0xa58] sm:$0xff]
    %v482 = vld [vmem:[#allocation5 + $0xa60] sm:$0xff]
    %v483 = vld [vmem:[#allocation5 + $0xa68] sm:$0xff]
    %v484 = vld [vmem:[#allocation5 + $0xa70] sm:$0xff]
    %v485 = vld [vmem:[#allocation5 + $0xa78] sm:$0xff]
    %v486 = vld [vmem:[#allocation5 + $0xa80] sm:$0xff]
    %v487 = vld [vmem:[#allocation5 + $0xa88] sm:$0xff]
    %v488 = vld [vmem:[#allocation5 + $0xa90] sm:$0xff]
    %v489 = vld [vmem:[#allocation5 + $0xa98] sm:$0xff]
    %v490 = vld [vmem:[#allocation5 + $0xaa0] sm:$0xff]
    %v491 = vld [vmem:[#allocation5 + $0xaa8] sm:$0xff]
    %v492 = vld [vmem:[#allocation5 + $0xab0] sm:$0xff]
    %v493 = vld [vmem:[#allocation5 + $0xab8] sm:$0xff]
    %v494 = vld [vmem:[#allocation5 + $0xac0] sm:$0xff]
    %v495 = vld [vmem:[#allocation5 + $0xac8] sm:$0xff]
    %v496 = vld [vmem:[#allocation5 + $0xad0] sm:$0xff]
    %v497 = vld [vmem:[#allocation5 + $0xad8] sm:$0xff]
    %v498 = vld [vmem:[#allocation5 + $0xae0] sm:$0xff]
    %v499 = vld [vmem:[#allocation5 + $0xae8] sm:$0xff]
    %v500 = vld [vmem:[#allocation5 + $0xaf0] sm:$0xff]
    %v501 = vld [vmem:[#allocation5 + $0xaf8] sm:$0xff]
    %v502 = vld [vmem:[#allocation5 + $0xb00] sm:$0xff]
    %v503 = vld [vmem:[#allocation5 + $0xb08] sm:$0xff]
    %v504 = vld [vmem:[#allocation5 + $0xb10] sm:$0xff]
    %v505 = vld [vmem:[#allocation5 + $0xb18] sm:$0xff]
    %v506 = vld [vmem:[#allocation5 + $0xb20] sm:$0xff]
    %v507 = vld [vmem:[#allocation5 + $0xb28] sm:$0xff]
    %v508 = vld [vmem:[#allocation5 + $0xb30] sm:$0xff]
    %v509 = vld [vmem:[#allocation5 + $0xb38] sm:$0xff]
    %v510 = vld [vmem:[#allocation5 + $0xb40] sm:$0xff]
    %v511 = vld [vmem:[#allocation5 + $0xb48] sm:$0xff]
    %v512 = vld [vmem:[#allocation5 + $0xb50] sm:$0xff]
    %v513 = vld [vmem:[#allocation5 + $0xb58] sm:$0xff]
    %v514 = vld [vmem:[#allocation5 + $0xb60] sm:$0xff]
    %v515 = vld [vmem:[#allocation5 + $0xb68] sm:$0xff]
    %v516 = vld [vmem:[#allocation5 + $0xb70] sm:$0xff]
    %v517 = vld [vmem:[#allocation5 + $0xb78] sm:$0xff]
    %v518 = vld [vmem:[#allocation5 + $0xb80] sm:$0xff]
    %v519 = vld [vmem:[#allocation5 + $0xb88] sm:$0xff]
    %v520 = vld [vmem:[#allocation5 + $0xb90] sm:$0xff]
    %v521 = vld [vmem:[#allocation5 + $0xb98] sm:$0xff]
    %v522 = vld [vmem:[#allocation5 + $0xba0] sm:$0xff]
    %v523 = vld [vmem:[#allocation5 + $0xba8] sm:$0xff]
    %v524 = vld [vmem:[#allocation5 + $0xbb0] sm:$0xff]
    %v525 = vld [vmem:[#allocation5 + $0xbb8] sm:$0xff]
    %v526 = vld [vmem:[#allocation5 + $0xbc0] sm:$0xff]
    %v527 = vld [vmem:[#allocation5 + $0xbc8] sm:$0xff]
    %v528 = vld [vmem:[#allocation5 + $0xbd0] sm:$0xff]
    %v529 = vld [vmem:[#allocation5 + $0xbd8] sm:$0xff]
    %v530 = vld [vmem:[#allocation5 + $0xbe0] sm:$0xff]
    %v531 = vld [vmem:[#allocation5 + $0xbe8] sm:$0xff]
    %v532 = vld [vmem:[#allocation5 + $0xbf0] sm:$0xff]
    %v533 = vld [vmem:[#allocation5 + $0xbf8] sm:$0xff]
    %v534 = vld [vmem:[#allocation5 + $0xc00] sm:$0xff]
    %v535 = vld [vmem:[#allocation5 + $0xc08] sm:$0xff]
    %v536 = vld [vmem:[#allocation5 + $0xc10] sm:$0xff]
    %v537 = vld [vmem:[#allocation5 + $0xc18] sm:$0xff]
    %v538 = vld [vmem:[#allocation5 + $0xc20] sm:$0xff]
    %v539 = vld [vmem:[#allocation5 + $0xc28] sm:$0xff]
    %v540 = vld [vmem:[#allocation5 + $0xc30] sm:$0xff]
    %v541 = vld [vmem:[#allocation5 + $0xc38] sm:$0xff]
    %v542 = vld [vmem:[#allocation5 + $0xc40] sm:$0xff]
    %v543 = vld [vmem:[#allocation5 + $0xc48] sm:$0xff]
    %v544 = vld [vmem:[#allocation5 + $0xc50] sm:$0xff]
    %v545 = vld [vmem:[#allocation5 + $0xc58] sm:$0xff]
    %v546 = vld [vmem:[#allocation5 + $0xc60] sm:$0xff]
    %v547 = vld [vmem:[#allocation5 + $0xc68] sm:$0xff]
    %v548 = vld [vmem:[#allocation5 + $0xc70] sm:$0xff]
    %v549 = vld [vmem:[#allocation5 + $0xc78] sm:$0xff]
    %v550 = vld [vmem:[#allocation5 + $0xc80] sm:$0xff]
    %v551 = vld [vmem:[#allocation5 + $0xc88] sm:$0xff]
    %v552 = vld [vmem:[#allocation5 + $0xc90] sm:$0xff]
    %v553 = vld [vmem:[#allocation5 + $0xc98] sm:$0xff]
    %v554 = vld [vmem:[#allocation5 + $0xca0] sm:$0xff]
    %v555 = vld [vmem:[#allocation5 + $0xca8] sm:$0xff]
    %v556 = vld [vmem:[#allocation5 + $0xcb0] sm:$0xff]
    %v557 = vld [vmem:[#allocation5 + $0xcb8] sm:$0xff]
    %v558 = vld [vmem:[#allocation5 + $0xcc0] sm:$0xff]
    %v559 = vld [vmem:[#allocation5 + $0xcc8] sm:$0xff]
    %v560 = vld [vmem:[#allocation5 + $0xcd0] sm:$0xff]
    %v561 = vld [vmem:[#allocation5 + $0xcd8] sm:$0xff]
    %v562 = vld [vmem:[#allocation5 + $0xce0] sm:$0xff]
    %v563 = vld [vmem:[#allocation5 + $0xce8] sm:$0xff]
    %v564 = vld [vmem:[#allocation5 + $0xcf0] sm:$0xff]
    %v565 = vld [vmem:[#allocation5 + $0xcf8] sm:$0xff]
    %v566 = vld [vmem:[#allocation5 + $0xd00] sm:$0xff]
    %v567 = vld [vmem:[#allocation5 + $0xd08] sm:$0xff]
    %v568 = vld [vmem:[#allocation5 + $0xd10] sm:$0xff]
    %v569 = vld [vmem:[#allocation5 + $0xd18] sm:$0xff]
    %v570 = vld [vmem:[#allocation5 + $0xd20] sm:$0xff]
    %v571 = vld [vmem:[#allocation5 + $0xd28] sm:$0xff]
    %v572 = vld [vmem:[#allocation5 + $0xd30] sm:$0xff]
    %v573 = vld [vmem:[#allocation5 + $0xd38] sm:$0xff]
    %v574 = vld [vmem:[#allocation5 + $0xd40] sm:$0xff]
    %v575 = vld [vmem:[#allocation5 + $0xd48] sm:$0xff]
    %v576 = vld [vmem:[#allocation5 + $0xd50] sm:$0xff]
    %v577 = vld [vmem:[#allocation5 + $0xd58] sm:$0xff]
    %v578 = vld [vmem:[#allocation5 + $0xd60] sm:$0xff]
    %v579 = vld [vmem:[#allocation5 + $0xd68] sm:$0xff]
    %v580 = vld [vmem:[#allocation5 + $0xd70] sm:$0xff]
    %v581 = vld [vmem:[#allocation5 + $0xd78] sm:$0xff]
    %v582 = vld [vmem:[#allocation5 + $0xd80] sm:$0xff]
    %v583 = vld [vmem:[#allocation5 + $0xd88] sm:$0xff]
    %v584 = vld [vmem:[#allocation5 + $0xd90] sm:$0xff]
    %v585 = vld [vmem:[#allocation5 + $0xd98] sm:$0xff]
    %v586 = vld [vmem:[#allocation5 + $0xda0] sm:$0xff]
    %v587 = vld [vmem:[#allocation5 + $0xda8] sm:$0xff]
    %v588 = vld [vmem:[#allocation5 + $0xdb0] sm:$0xff]
    %v589 = vld [vmem:[#allocation5 + $0xdb8] sm:$0xff]
    %v590 = vld [vmem:[#allocation5 + $0xdc0] sm:$0xff]
    %v591 = vld [vmem:[#allocation5 + $0xdc8] sm:$0xff]
    %v592 = vld [vmem:[#allocation5 + $0xdd0] sm:$0xff]
    %v593 = vld [vmem:[#allocation5 + $0xdd8] sm:$0xff]
    %v594 = vld [vmem:[#allocation5 + $0xde0] sm:$0xff]
    %v595 = vld [vmem:[#allocation5 + $0xde8] sm:$0xff]
    %v596 = vld [vmem:[#allocation5 + $0xdf0] sm:$0xff]
    %v597 = vld [vmem:[#allocation5 + $0xdf8] sm:$0xff]
    %v598 = vld [vmem:[#allocation5 + $0xe00] sm:$0xff]
    %v599 = vld [vmem:[#allocation5 + $0xe08] sm:$0xff]
    %v600 = vld [vmem:[#allocation5 + $0xe10] sm:$0xff]
    %v601 = vld [vmem:[#allocation5 + $0xe18] sm:$0xff]
    %v602 = vld [vmem:[#allocation5 + $0xe20] sm:$0xff]
    %v603 = vld [vmem:[#allocation5 + $0xe28] sm:$0xff]
    %v604 = vld [vmem:[#allocation5 + $0xe30] sm:$0xff]
    %v605 = vld [vmem:[#allocation5 + $0xe38] sm:$0xff]
    %v606 = vld [vmem:[#allocation5 + $0xe40] sm:$0xff]
    %v607 = vld [vmem:[#allocation5 + $0xe48] sm:$0xff]
    %v608 = vld [vmem:[#allocation5 + $0xe50] sm:$0xff]
    %v609 = vld [vmem:[#allocation5 + $0xe58] sm:$0xff]
    %v610 = vld [vmem:[#allocation5 + $0xe60] sm:$0xff]
    %v611 = vld [vmem:[#allocation5 + $0xe68] sm:$0xff]
    %v612 = vld [vmem:[#allocation5 + $0xe70] sm:$0xff]
    %v613 = vld [vmem:[#allocation5 + $0xe78] sm:$0xff]
    %v614 = vld [vmem:[#allocation5 + $0xe80] sm:$0xff]
    %v615 = vld [vmem:[#allocation5 + $0xe88] sm:$0xff]
    %v616 = vld [vmem:[#allocation5 + $0xe90] sm:$0xff]
    %v617 = vld [vmem:[#allocation5 + $0xe98] sm:$0xff]
    %v618 = vld [vmem:[#allocation5 + $0xea0] sm:$0xff]
    %v619 = vld [vmem:[#allocation5 + $0xea8] sm:$0xff]
    %v620 = vld [vmem:[#allocation5 + $0xeb0] sm:$0xff]
    %v621 = vld [vmem:[#allocation5 + $0xeb8] sm:$0xff]
    %v622 = vld [vmem:[#allocation5 + $0xec0] sm:$0xff]
    %v623 = vld [vmem:[#allocation5 + $0xec8] sm:$0xff]
    %v624 = vld [vmem:[#allocation5 + $0xed0] sm:$0xff]
    %v625 = vld [vmem:[#allocation5 + $0xed8] sm:$0xff]
    %v626 = vld [vmem:[#allocation5 + $0xee0] sm:$0xff]
    %v627 = vld [vmem:[#allocation5 + $0xee8] sm:$0xff]
    %v628 = vld [vmem:[#allocation5 + $0xef0] sm:$0xff]
    %v629 = vld [vmem:[#allocation5 + $0xef8] sm:$0xff]
    %v630 = vld [vmem:[#allocation5 + $0xf00] sm:$0xff]
    %v631 = vld [vmem:[#allocation5 + $0xf08] sm:$0xff]
    %v632 = vld [vmem:[#allocation5 + $0xf10] sm:$0xff]
    %v633 = vld [vmem:[#allocation5 + $0xf18] sm:$0xff]
    %v634 = vld [vmem:[#allocation5 + $0xf20] sm:$0xff]
    %v635 = vld [vmem:[#allocation5 + $0xf28] sm:$0xff]
    %v636 = vld [vmem:[#allocation5 + $0xf30] sm:$0xff]
    %v637 = vld [vmem:[#allocation5 + $0xf38] sm:$0xff]
    %v638 = vld [vmem:[#allocation5 + $0xf40] sm:$0xff]
    %v639 = vld [vmem:[#allocation5 + $0xf48] sm:$0xff]
    %v640 = vld [vmem:[#allocation5 + $0xf50] sm:$0xff]
    %v641 = vld [vmem:[#allocation5 + $0xf58] sm:$0xff]
    %v642 = vld [vmem:[#allocation5 + $0xf60] sm:$0xff]
    %v643 = vld [vmem:[#allocation5 + $0xf68] sm:$0xff]
    %v644 = vld [vmem:[#allocation5 + $0xf70] sm:$0xff]
    %v645 = vld [vmem:[#allocation5 + $0xf78] sm:$0xff]
    %v646 = vld [vmem:[#allocation5 + $0xf80] sm:$0xff]
    %v647 = vld [vmem:[#allocation5 + $0xf88] sm:$0xff]
    %v648 = vld [vmem:[#allocation5 + $0xf90] sm:$0xff]
    %v649 = vld [vmem:[#allocation5 + $0xf98] sm:$0xff]
    %v650 = vld [vmem:[#allocation5 + $0xfa0] sm:$0xff]
    %v651 = vld [vmem:[#allocation5 + $0xfa8] sm:$0xff]
    %v652 = vld [vmem:[#allocation5 + $0xfb0] sm:$0xff]
    %v653 = vld [vmem:[#allocation5 + $0xfb8] sm:$0xff]
    %v654 = vld [vmem:[#allocation5 + $0xfc0] sm:$0xff]
    %v655 = vld [vmem:[#allocation5 + $0xfc8] sm:$0xff]
    %v656 = vld [vmem:[#allocation5 + $0xfd0] sm:$0xff]
    %v657 = vld [vmem:[#allocation5 + $0xfd8] sm:$0xff]
    %v658 = vld [vmem:[#allocation5 + $0xfe0] sm:$0xff]
    %v659 = vld [vmem:[#allocation5 + $0xfe8] sm:$0xff]
    %v660 = vld [vmem:[#allocation5 + $0xff0] sm:$0xff]
    %v661 = vld [vmem:[#allocation5 + $0xff8] sm:$0xff]
    %v662 = vld [vmem:[#allocation7] sm:$0xff]
    %v664 = vlaneseq
    %v665 = vshrl.u32 %v664, 7
    %v666 = vsub.s32 0, %v665
    %v667 = vrot.slane %v662, %v666
    %v668 = vlaneseq
    %v669 = vshrl.u32 %v668, 7
    %v670 = vsub.s32 1, %v669
    %v671 = vrot.slane %v662, %v670
    %v672 = vlaneseq
    %v673 = vshrl.u32 %v672, 7
    %v674 = vsub.s32 2, %v673
    %v675 = vrot.slane %v662, %v674
    %v676 = vlaneseq
    %v677 = vshrl.u32 %v676, 7
    %v678 = vsub.s32 3, %v677
    %v679 = vrot.slane %v662, %v678
    %v680 = vlaneseq
    %v681 = vshrl.u32 %v680, 7
    %v682 = vsub.s32 4, %v681
    %v683 = vrot.slane %v662, %v682
    %v684 = vlaneseq
    %v685 = vshrl.u32 %v684, 7
    %v686 = vsub.s32 5, %v685
    %v687 = vrot.slane %v662, %v686
    %v688 = vlaneseq
    %v689 = vshrl.u32 %v688, 7
    %v690 = vsub.s32 6, %v689
    %v691 = vrot.slane %v662, %v690
    %v692 = vlaneseq
    %v693 = vshrl.u32 %v692, 7
    %v694 = vsub.s32 7, %v693
    %v695 = vrot.slane %v662, %v694
    %v708 = vunpack.c.l.b16 %v146
    %v709 = vunpack.c.h.b16 %v146
    %v710 = vunpack.c.l.b16 %v147
    %v711 = vunpack.c.h.b16 %v147
    %v712 = vunpack.c.l.b16 %v148
    %v713 = vunpack.c.h.b16 %v148
    %v714 = vunpack.c.l.b16 %v149
    %v715 = vunpack.c.h.b16 %v149
    %v716 = vpack.c.b16 %v708, %v708
    %v717 = vpack.c.b16 %v709, %v709
    %v718 = vpack.c.b16 %v710, %v710
    %v719 = vpack.c.b16 %v711, %v711
    %v720 = vpack.c.b16 %v712, %v712
    %v721 = vpack.c.b16 %v713, %v713
    %v722 = vpack.c.b16 %v714, %v714
    %v723 = vpack.c.b16 %v715, %v715
    %v1244 = vunpack.c.l.b16 %v150
    %v1245 = vunpack.c.h.b16 %v150
    %v1246 = vunpack.c.l.b16 %v151
    %v1247 = vunpack.c.h.b16 %v151
    %v1248 = vunpack.c.l.b16 %v152
    %v1249 = vunpack.c.h.b16 %v152
    %v1250 = vunpack.c.l.b16 %v153
    %v1251 = vunpack.c.h.b16 %v153
    %v1252 = vunpack.c.l.b16 %v154
    %v1253 = vunpack.c.h.b16 %v154
    %v1254 = vunpack.c.l.b16 %v155
    %v1255 = vunpack.c.h.b16 %v155
    %v1256 = vunpack.c.l.b16 %v156
    %v1257 = vunpack.c.h.b16 %v156
    %v1258 = vunpack.c.l.b16 %v157
    %v1259 = vunpack.c.h.b16 %v157
    %v1260 = vunpack.c.l.b16 %v158
    %v1261 = vunpack.c.h.b16 %v158
    %v1262 = vunpack.c.l.b16 %v159
    %v1263 = vunpack.c.h.b16 %v159
    %v1264 = vunpack.c.l.b16 %v160
    %v1265 = vunpack.c.h.b16 %v160
    %v1266 = vunpack.c.l.b16 %v161
    %v1267 = vunpack.c.h.b16 %v161
    %v1268 = vunpack.c.l.b16 %v162
    %v1269 = vunpack.c.h.b16 %v162
    %v1270 = vunpack.c.l.b16 %v163
    %v1271 = vunpack.c.h.b16 %v163
    %v1272 = vunpack.c.l.b16 %v164
    %v1273 = vunpack.c.h.b16 %v164
    %v1274 = vunpack.c.l.b16 %v165
    %v1275 = vunpack.c.h.b16 %v165
    %v1276 = vunpack.c.l.b16 %v166
    %v1277 = vunpack.c.h.b16 %v166
    %v1278 = vunpack.c.l.b16 %v167
    %v1279 = vunpack.c.h.b16 %v167
    %v1280 = vunpack.c.l.b16 %v168
    %v1281 = vunpack.c.h.b16 %v168
    %v1282 = vunpack.c.l.b16 %v169
    %v1283 = vunpack.c.h.b16 %v169
    %v1284 = vunpack.c.l.b16 %v170
    %v1285 = vunpack.c.h.b16 %v170
    %v1286 = vunpack.c.l.b16 %v171
    %v1287 = vunpack.c.h.b16 %v171
    %v1288 = vunpack.c.l.b16 %v172
    %v1289 = vunpack.c.h.b16 %v172
    %v1290 = vunpack.c.l.b16 %v173
    %v1291 = vunpack.c.h.b16 %v173
    %v1292 = vunpack.c.l.b16 %v174
    %v1293 = vunpack.c.h.b16 %v174
    %v1294 = vunpack.c.l.b16 %v175
    %v1295 = vunpack.c.h.b16 %v175
    %v1296 = vunpack.c.l.b16 %v176
    %v1297 = vunpack.c.h.b16 %v176
    %v1298 = vunpack.c.l.b16 %v177
    %v1299 = vunpack.c.h.b16 %v177
    %v1300 = vunpack.c.l.b16 %v178
    %v1301 = vunpack.c.h.b16 %v178
    %v1302 = vunpack.c.l.b16 %v179
    %v1303 = vunpack.c.h.b16 %v179
    %v1304 = vunpack.c.l.b16 %v180
    %v1305 = vunpack.c.h.b16 %v180
    %v1306 = vunpack.c.l.b16 %v181
    %v1307 = vunpack.c.h.b16 %v181
    %v1308 = vunpack.c.l.b16 %v182
    %v1309 = vunpack.c.h.b16 %v182
    %v1310 = vunpack.c.l.b16 %v183
    %v1311 = vunpack.c.h.b16 %v183
    %v1312 = vunpack.c.l.b16 %v184
    %v1313 = vunpack.c.h.b16 %v184
    %v1314 = vunpack.c.l.b16 %v185
    %v1315 = vunpack.c.h.b16 %v185
    %v1316 = vunpack.c.l.b16 %v186
    %v1317 = vunpack.c.h.b16 %v186
    %v1318 = vunpack.c.l.b16 %v187
    %v1319 = vunpack.c.h.b16 %v187
    %v1320 = vunpack.c.l.b16 %v188
    %v1321 = vunpack.c.h.b16 %v188
    %v1322 = vunpack.c.l.b16 %v189
    %v1323 = vunpack.c.h.b16 %v189
    %v1324 = vunpack.c.l.b16 %v190
    %v1325 = vunpack.c.h.b16 %v190
    %v1326 = vunpack.c.l.b16 %v191
    %v1327 = vunpack.c.h.b16 %v191
    %v1328 = vunpack.c.l.b16 %v192
    %v1329 = vunpack.c.h.b16 %v192
    %v1330 = vunpack.c.l.b16 %v193
    %v1331 = vunpack.c.h.b16 %v193
    %v1332 = vunpack.c.l.b16 %v194
    %v1333 = vunpack.c.h.b16 %v194
    %v1334 = vunpack.c.l.b16 %v195
    %v1335 = vunpack.c.h.b16 %v195
    %v1336 = vunpack.c.l.b16 %v196
    %v1337 = vunpack.c.h.b16 %v196
    %v1338 = vunpack.c.l.b16 %v197
    %v1339 = vunpack.c.h.b16 %v197
    %v1340 = vunpack.c.l.b16 %v198
    %v1341 = vunpack.c.h.b16 %v198
    %v1342 = vunpack.c.l.b16 %v199
    %v1343 = vunpack.c.h.b16 %v199
    %v1344 = vunpack.c.l.b16 %v200
    %v1345 = vunpack.c.h.b16 %v200
    %v1346 = vunpack.c.l.b16 %v201
    %v1347 = vunpack.c.h.b16 %v201
    %v1348 = vunpack.c.l.b16 %v202
    %v1349 = vunpack.c.h.b16 %v202
    %v1350 = vunpack.c.l.b16 %v203
    %v1351 = vunpack.c.h.b16 %v203
    %v1352 = vunpack.c.l.b16 %v204
    %v1353 = vunpack.c.h.b16 %v204
    %v1354 = vunpack.c.l.b16 %v205
    %v1355 = vunpack.c.h.b16 %v205
    %v1356 = vunpack.c.l.b16 %v206
    %v1357 = vunpack.c.h.b16 %v206
    %v1358 = vunpack.c.l.b16 %v207
    %v1359 = vunpack.c.h.b16 %v207
    %v1360 = vunpack.c.l.b16 %v208
    %v1361 = vunpack.c.h.b16 %v208
    %v1362 = vunpack.c.l.b16 %v209
    %v1363 = vunpack.c.h.b16 %v209
    %v1364 = vunpack.c.l.b16 %v210
    %v1365 = vunpack.c.h.b16 %v210
    %v1366 = vunpack.c.l.b16 %v211
    %v1367 = vunpack.c.h.b16 %v211
    %v1368 = vunpack.c.l.b16 %v212
    %v1369 = vunpack.c.h.b16 %v212
    %v1370 = vunpack.c.l.b16 %v213
    %v1371 = vunpack.c.h.b16 %v213
    %v1372 = vunpack.c.l.b16 %v214
    %v1373 = vunpack.c.h.b16 %v214
    %v1374 = vunpack.c.l.b16 %v215
    %v1375 = vunpack.c.h.b16 %v215
    %v1376 = vunpack.c.l.b16 %v216
    %v1377 = vunpack.c.h.b16 %v216
    %v1378 = vunpack.c.l.b16 %v217
    %v1379 = vunpack.c.h.b16 %v217
    %v1380 = vunpack.c.l.b16 %v218
    %v1381 = vunpack.c.h.b16 %v218
    %v1382 = vunpack.c.l.b16 %v219
    %v1383 = vunpack.c.h.b16 %v219
    %v1384 = vunpack.c.l.b16 %v220
    %v1385 = vunpack.c.h.b16 %v220
    %v1386 = vunpack.c.l.b16 %v221
    %v1387 = vunpack.c.h.b16 %v221
    %v1388 = vunpack.c.l.b16 %v222
    %v1389 = vunpack.c.h.b16 %v222
    %v1390 = vunpack.c.l.b16 %v223
    %v1391 = vunpack.c.h.b16 %v223
    %v1392 = vunpack.c.l.b16 %v224
    %v1393 = vunpack.c.h.b16 %v224
    %v1394 = vunpack.c.l.b16 %v225
    %v1395 = vunpack.c.h.b16 %v225
    %v1396 = vunpack.c.l.b16 %v226
    %v1397 = vunpack.c.h.b16 %v226
    %v1398 = vunpack.c.l.b16 %v227
    %v1399 = vunpack.c.h.b16 %v227
    %v1400 = vunpack.c.l.b16 %v228
    %v1401 = vunpack.c.h.b16 %v228
    %v1402 = vunpack.c.l.b16 %v229
    %v1403 = vunpack.c.h.b16 %v229
    %v1404 = vunpack.c.l.b16 %v230
    %v1405 = vunpack.c.h.b16 %v230
    %v1406 = vunpack.c.l.b16 %v231
    %v1407 = vunpack.c.h.b16 %v231
    %v1408 = vunpack.c.l.b16 %v232
    %v1409 = vunpack.c.h.b16 %v232
    %v1410 = vunpack.c.l.b16 %v233
    %v1411 = vunpack.c.h.b16 %v233
    %v1412 = vunpack.c.l.b16 %v234
    %v1413 = vunpack.c.h.b16 %v234
    %v1414 = vunpack.c.l.b16 %v235
    %v1415 = vunpack.c.h.b16 %v235
    %v1416 = vunpack.c.l.b16 %v236
    %v1417 = vunpack.c.h.b16 %v236
    %v1418 = vunpack.c.l.b16 %v237
    %v1419 = vunpack.c.h.b16 %v237
    %v1420 = vunpack.c.l.b16 %v238
    %v1421 = vunpack.c.h.b16 %v238
    %v1422 = vunpack.c.l.b16 %v239
    %v1423 = vunpack.c.h.b16 %v239
    %v1424 = vunpack.c.l.b16 %v240
    %v1425 = vunpack.c.h.b16 %v240
    %v1426 = vunpack.c.l.b16 %v241
    %v1427 = vunpack.c.h.b16 %v241
    %v1428 = vunpack.c.l.b16 %v242
    %v1429 = vunpack.c.h.b16 %v242
    %v1430 = vunpack.c.l.b16 %v243
    %v1431 = vunpack.c.h.b16 %v243
    %v1432 = vunpack.c.l.b16 %v244
    %v1433 = vunpack.c.h.b16 %v244
    %v1434 = vunpack.c.l.b16 %v245
    %v1435 = vunpack.c.h.b16 %v245
    %v1436 = vunpack.c.l.b16 %v246
    %v1437 = vunpack.c.h.b16 %v246
    %v1438 = vunpack.c.l.b16 %v247
    %v1439 = vunpack.c.h.b16 %v247
    %v1440 = vunpack.c.l.b16 %v248
    %v1441 = vunpack.c.h.b16 %v248
    %v1442 = vunpack.c.l.b16 %v249
    %v1443 = vunpack.c.h.b16 %v249
    %v1444 = vunpack.c.l.b16 %v250
    %v1445 = vunpack.c.h.b16 %v250
    %v1446 = vunpack.c.l.b16 %v251
    %v1447 = vunpack.c.h.b16 %v251
    %v1448 = vunpack.c.l.b16 %v252
    %v1449 = vunpack.c.h.b16 %v252
    %v1450 = vunpack.c.l.b16 %v253
    %v1451 = vunpack.c.h.b16 %v253
    %v1452 = vunpack.c.l.b16 %v254
    %v1453 = vunpack.c.h.b16 %v254
    %v1454 = vunpack.c.l.b16 %v255
    %v1455 = vunpack.c.h.b16 %v255
    %v1456 = vunpack.c.l.b16 %v256
    %v1457 = vunpack.c.h.b16 %v256
    %v1458 = vunpack.c.l.b16 %v257
    %v1459 = vunpack.c.h.b16 %v257
    %v1460 = vunpack.c.l.b16 %v258
    %v1461 = vunpack.c.h.b16 %v258
    %v1462 = vunpack.c.l.b16 %v259
    %v1463 = vunpack.c.h.b16 %v259
    %v1464 = vunpack.c.l.b16 %v260
    %v1465 = vunpack.c.h.b16 %v260
    %v1466 = vunpack.c.l.b16 %v261
    %v1467 = vunpack.c.h.b16 %v261
    %v1468 = vunpack.c.l.b16 %v262
    %v1469 = vunpack.c.h.b16 %v262
    %v1470 = vunpack.c.l.b16 %v263
    %v1471 = vunpack.c.h.b16 %v263
    %v1472 = vunpack.c.l.b16 %v264
    %v1473 = vunpack.c.h.b16 %v264
    %v1474 = vunpack.c.l.b16 %v265
    %v1475 = vunpack.c.h.b16 %v265
    %v1476 = vunpack.c.l.b16 %v266
    %v1477 = vunpack.c.h.b16 %v266
    %v1478 = vunpack.c.l.b16 %v267
    %v1479 = vunpack.c.h.b16 %v267
    %v1480 = vunpack.c.l.b16 %v268
    %v1481 = vunpack.c.h.b16 %v268
    %v1482 = vunpack.c.l.b16 %v269
    %v1483 = vunpack.c.h.b16 %v269
    %v1484 = vunpack.c.l.b16 %v270
    %v1485 = vunpack.c.h.b16 %v270
    %v1486 = vunpack.c.l.b16 %v271
    %v1487 = vunpack.c.h.b16 %v271
    %v1488 = vunpack.c.l.b16 %v272
    %v1489 = vunpack.c.h.b16 %v272
    %v1490 = vunpack.c.l.b16 %v273
    %v1491 = vunpack.c.h.b16 %v273
    %v1492 = vunpack.c.l.b16 %v274
    %v1493 = vunpack.c.h.b16 %v274
    %v1494 = vunpack.c.l.b16 %v275
    %v1495 = vunpack.c.h.b16 %v275
    %v1496 = vunpack.c.l.b16 %v276
    %v1497 = vunpack.c.h.b16 %v276
    %v1498 = vunpack.c.l.b16 %v277
    %v1499 = vunpack.c.h.b16 %v277
    %v1500 = vunpack.c.l.b16 %v278
    %v1501 = vunpack.c.h.b16 %v278
    %v1502 = vunpack.c.l.b16 %v279
    %v1503 = vunpack.c.h.b16 %v279
    %v1504 = vunpack.c.l.b16 %v280
    %v1505 = vunpack.c.h.b16 %v280
    %v1506 = vunpack.c.l.b16 %v281
    %v1507 = vunpack.c.h.b16 %v281
    %v1508 = vunpack.c.l.b16 %v282
    %v1509 = vunpack.c.h.b16 %v282
    %v1510 = vunpack.c.l.b16 %v283
    %v1511 = vunpack.c.h.b16 %v283
    %v1512 = vunpack.c.l.b16 %v284
    %v1513 = vunpack.c.h.b16 %v284
    %v1514 = vunpack.c.l.b16 %v285
    %v1515 = vunpack.c.h.b16 %v285
    %v1516 = vunpack.c.l.b16 %v286
    %v1517 = vunpack.c.h.b16 %v286
    %v1518 = vunpack.c.l.b16 %v287
    %v1519 = vunpack.c.h.b16 %v287
    %v1520 = vunpack.c.l.b16 %v288
    %v1521 = vunpack.c.h.b16 %v288
    %v1522 = vunpack.c.l.b16 %v289
    %v1523 = vunpack.c.h.b16 %v289
    %v1524 = vunpack.c.l.b16 %v290
    %v1525 = vunpack.c.h.b16 %v290
    %v1526 = vunpack.c.l.b16 %v291
    %v1527 = vunpack.c.h.b16 %v291
    %v1528 = vunpack.c.l.b16 %v292
    %v1529 = vunpack.c.h.b16 %v292
    %v1530 = vunpack.c.l.b16 %v293
    %v1531 = vunpack.c.h.b16 %v293
    %v1532 = vunpack.c.l.b16 %v294
    %v1533 = vunpack.c.h.b16 %v294
    %v1534 = vunpack.c.l.b16 %v295
    %v1535 = vunpack.c.h.b16 %v295
    %v1536 = vunpack.c.l.b16 %v296
    %v1537 = vunpack.c.h.b16 %v296
    %v1538 = vunpack.c.l.b16 %v297
    %v1539 = vunpack.c.h.b16 %v297
    %v1540 = vunpack.c.l.b16 %v298
    %v1541 = vunpack.c.h.b16 %v298
    %v1542 = vunpack.c.l.b16 %v299
    %v1543 = vunpack.c.h.b16 %v299
    %v1544 = vunpack.c.l.b16 %v300
    %v1545 = vunpack.c.h.b16 %v300
    %v1546 = vunpack.c.l.b16 %v301
    %v1547 = vunpack.c.h.b16 %v301
    %v1548 = vunpack.c.l.b16 %v302
    %v1549 = vunpack.c.h.b16 %v302
    %v1550 = vunpack.c.l.b16 %v303
    %v1551 = vunpack.c.h.b16 %v303
    %v1552 = vunpack.c.l.b16 %v304
    %v1553 = vunpack.c.h.b16 %v304
    %v1554 = vunpack.c.l.b16 %v305
    %v1555 = vunpack.c.h.b16 %v305
    %v1556 = vunpack.c.l.b16 %v306
    %v1557 = vunpack.c.h.b16 %v306
    %v1558 = vunpack.c.l.b16 %v307
    %v1559 = vunpack.c.h.b16 %v307
    %v1560 = vunpack.c.l.b16 %v308
    %v1561 = vunpack.c.h.b16 %v308
    %v1562 = vunpack.c.l.b16 %v309
    %v1563 = vunpack.c.h.b16 %v309
    %v1564 = vunpack.c.l.b16 %v310
    %v1565 = vunpack.c.h.b16 %v310
    %v1566 = vunpack.c.l.b16 %v311
    %v1567 = vunpack.c.h.b16 %v311
    %v1568 = vunpack.c.l.b16 %v312
    %v1569 = vunpack.c.h.b16 %v312
    %v1570 = vunpack.c.l.b16 %v313
    %v1571 = vunpack.c.h.b16 %v313
    %v1572 = vunpack.c.l.b16 %v314
    %v1573 = vunpack.c.h.b16 %v314
    %v1574 = vunpack.c.l.b16 %v315
    %v1575 = vunpack.c.h.b16 %v315
    %v1576 = vunpack.c.l.b16 %v316
    %v1577 = vunpack.c.h.b16 %v316
    %v1578 = vunpack.c.l.b16 %v317
    %v1579 = vunpack.c.h.b16 %v317
    %v1580 = vunpack.c.l.b16 %v318
    %v1581 = vunpack.c.h.b16 %v318
    %v1582 = vunpack.c.l.b16 %v319
    %v1583 = vunpack.c.h.b16 %v319
    %v1584 = vunpack.c.l.b16 %v320
    %v1585 = vunpack.c.h.b16 %v320
    %v1586 = vunpack.c.l.b16 %v321
    %v1587 = vunpack.c.h.b16 %v321
    %v1588 = vunpack.c.l.b16 %v322
    %v1589 = vunpack.c.h.b16 %v322
    %v1590 = vunpack.c.l.b16 %v323
    %v1591 = vunpack.c.h.b16 %v323
    %v1592 = vunpack.c.l.b16 %v324
    %v1593 = vunpack.c.h.b16 %v324
    %v1594 = vunpack.c.l.b16 %v325
    %v1595 = vunpack.c.h.b16 %v325
    %v1596 = vunpack.c.l.b16 %v326
    %v1597 = vunpack.c.h.b16 %v326
    %v1598 = vunpack.c.l.b16 %v327
    %v1599 = vunpack.c.h.b16 %v327
    %v1600 = vunpack.c.l.b16 %v328
    %v1601 = vunpack.c.h.b16 %v328
    %v1602 = vunpack.c.l.b16 %v329
    %v1603 = vunpack.c.h.b16 %v329
    %v1604 = vunpack.c.l.b16 %v330
    %v1605 = vunpack.c.h.b16 %v330
    %v1606 = vunpack.c.l.b16 %v331
    %v1607 = vunpack.c.h.b16 %v331
    %v1608 = vunpack.c.l.b16 %v332
    %v1609 = vunpack.c.h.b16 %v332
    %v1610 = vunpack.c.l.b16 %v333
    %v1611 = vunpack.c.h.b16 %v333
    %v1612 = vunpack.c.l.b16 %v334
    %v1613 = vunpack.c.h.b16 %v334
    %v1614 = vunpack.c.l.b16 %v335
    %v1615 = vunpack.c.h.b16 %v335
    %v1616 = vunpack.c.l.b16 %v336
    %v1617 = vunpack.c.h.b16 %v336
    %v1618 = vunpack.c.l.b16 %v337
    %v1619 = vunpack.c.h.b16 %v337
    %v1620 = vunpack.c.l.b16 %v338
    %v1621 = vunpack.c.h.b16 %v338
    %v1622 = vunpack.c.l.b16 %v339
    %v1623 = vunpack.c.h.b16 %v339
    %v1624 = vunpack.c.l.b16 %v340
    %v1625 = vunpack.c.h.b16 %v340
    %v1626 = vunpack.c.l.b16 %v341
    %v1627 = vunpack.c.h.b16 %v341
    %v1628 = vunpack.c.l.b16 %v342
    %v1629 = vunpack.c.h.b16 %v342
    %v1630 = vunpack.c.l.b16 %v343
    %v1631 = vunpack.c.h.b16 %v343
    %v1632 = vunpack.c.l.b16 %v344
    %v1633 = vunpack.c.h.b16 %v344
    %v1634 = vunpack.c.l.b16 %v345
    %v1635 = vunpack.c.h.b16 %v345
    %v1636 = vunpack.c.l.b16 %v346
    %v1637 = vunpack.c.h.b16 %v346
    %v1638 = vunpack.c.l.b16 %v347
    %v1639 = vunpack.c.h.b16 %v347
    %v1640 = vunpack.c.l.b16 %v348
    %v1641 = vunpack.c.h.b16 %v348
    %v1642 = vunpack.c.l.b16 %v349
    %v1643 = vunpack.c.h.b16 %v349
    %v1644 = vunpack.c.l.b16 %v350
    %v1645 = vunpack.c.h.b16 %v350
    %v1646 = vunpack.c.l.b16 %v351
    %v1647 = vunpack.c.h.b16 %v351
    %v1648 = vunpack.c.l.b16 %v352
    %v1649 = vunpack.c.h.b16 %v352
    %v1650 = vunpack.c.l.b16 %v353
    %v1651 = vunpack.c.h.b16 %v353
    %v1652 = vunpack.c.l.b16 %v354
    %v1653 = vunpack.c.h.b16 %v354
    %v1654 = vunpack.c.l.b16 %v355
    %v1655 = vunpack.c.h.b16 %v355
    %v1656 = vunpack.c.l.b16 %v356
    %v1657 = vunpack.c.h.b16 %v356
    %v1658 = vunpack.c.l.b16 %v357
    %v1659 = vunpack.c.h.b16 %v357
    %v1660 = vunpack.c.l.b16 %v358
    %v1661 = vunpack.c.h.b16 %v358
    %v1662 = vunpack.c.l.b16 %v359
    %v1663 = vunpack.c.h.b16 %v359
    %v1664 = vunpack.c.l.b16 %v360
    %v1665 = vunpack.c.h.b16 %v360
    %v1666 = vunpack.c.l.b16 %v361
    %v1667 = vunpack.c.h.b16 %v361
    %v1668 = vunpack.c.l.b16 %v362
    %v1669 = vunpack.c.h.b16 %v362
    %v1670 = vunpack.c.l.b16 %v363
    %v1671 = vunpack.c.h.b16 %v363
    %v1672 = vunpack.c.l.b16 %v364
    %v1673 = vunpack.c.h.b16 %v364
    %v1674 = vunpack.c.l.b16 %v365
    %v1675 = vunpack.c.h.b16 %v365
    %v1676 = vunpack.c.l.b16 %v366
    %v1677 = vunpack.c.h.b16 %v366
    %v1678 = vunpack.c.l.b16 %v367
    %v1679 = vunpack.c.h.b16 %v367
    %v1680 = vunpack.c.l.b16 %v368
    %v1681 = vunpack.c.h.b16 %v368
    %v1682 = vunpack.c.l.b16 %v369
    %v1683 = vunpack.c.h.b16 %v369
    %v1684 = vunpack.c.l.b16 %v370
    %v1685 = vunpack.c.h.b16 %v370
    %v1686 = vunpack.c.l.b16 %v371
    %v1687 = vunpack.c.h.b16 %v371
    %v1688 = vunpack.c.l.b16 %v372
    %v1689 = vunpack.c.h.b16 %v372
    %v1690 = vunpack.c.l.b16 %v373
    %v1691 = vunpack.c.h.b16 %v373
    %v1692 = vunpack.c.l.b16 %v374
    %v1693 = vunpack.c.h.b16 %v374
    %v1694 = vunpack.c.l.b16 %v375
    %v1695 = vunpack.c.h.b16 %v375
    %v1696 = vunpack.c.l.b16 %v376
    %v1697 = vunpack.c.h.b16 %v376
    %v1698 = vunpack.c.l.b16 %v377
    %v1699 = vunpack.c.h.b16 %v377
    %v1700 = vunpack.c.l.b16 %v378
    %v1701 = vunpack.c.h.b16 %v378
    %v1702 = vunpack.c.l.b16 %v379
    %v1703 = vunpack.c.h.b16 %v379
    %v1704 = vunpack.c.l.b16 %v380
    %v1705 = vunpack.c.h.b16 %v380
    %v1706 = vunpack.c.l.b16 %v381
    %v1707 = vunpack.c.h.b16 %v381
    %v1708 = vunpack.c.l.b16 %v382
    %v1709 = vunpack.c.h.b16 %v382
    %v1710 = vunpack.c.l.b16 %v383
    %v1711 = vunpack.c.h.b16 %v383
    %v1712 = vunpack.c.l.b16 %v384
    %v1713 = vunpack.c.h.b16 %v384
    %v1714 = vunpack.c.l.b16 %v385
    %v1715 = vunpack.c.h.b16 %v385
    %v1716 = vunpack.c.l.b16 %v386
    %v1717 = vunpack.c.h.b16 %v386
    %v1718 = vunpack.c.l.b16 %v387
    %v1719 = vunpack.c.h.b16 %v387
    %v1720 = vunpack.c.l.b16 %v388
    %v1721 = vunpack.c.h.b16 %v388
    %v1722 = vunpack.c.l.b16 %v389
    %v1723 = vunpack.c.h.b16 %v389
    %v1724 = vunpack.c.l.b16 %v390
    %v1725 = vunpack.c.h.b16 %v390
    %v1726 = vunpack.c.l.b16 %v391
    %v1727 = vunpack.c.h.b16 %v391
    %v1728 = vunpack.c.l.b16 %v392
    %v1729 = vunpack.c.h.b16 %v392
    %v1730 = vunpack.c.l.b16 %v393
    %v1731 = vunpack.c.h.b16 %v393
    %v1732 = vunpack.c.l.b16 %v394
    %v1733 = vunpack.c.h.b16 %v394
    %v1734 = vunpack.c.l.b16 %v395
    %v1735 = vunpack.c.h.b16 %v395
    %v1736 = vunpack.c.l.b16 %v396
    %v1737 = vunpack.c.h.b16 %v396
    %v1738 = vunpack.c.l.b16 %v397
    %v1739 = vunpack.c.h.b16 %v397
    %v1740 = vunpack.c.l.b16 %v398
    %v1741 = vunpack.c.h.b16 %v398
    %v1742 = vunpack.c.l.b16 %v399
    %v1743 = vunpack.c.h.b16 %v399
    %v1744 = vunpack.c.l.b16 %v400
    %v1745 = vunpack.c.h.b16 %v400
    %v1746 = vunpack.c.l.b16 %v401
    %v1747 = vunpack.c.h.b16 %v401
    %v1748 = vunpack.c.l.b16 %v402
    %v1749 = vunpack.c.h.b16 %v402
    %v1750 = vunpack.c.l.b16 %v403
    %v1751 = vunpack.c.h.b16 %v403
    %v1752 = vunpack.c.l.b16 %v404
    %v1753 = vunpack.c.h.b16 %v404
    %v1754 = vunpack.c.l.b16 %v405
    %v1755 = vunpack.c.h.b16 %v405
    %v1756 = vunpack.c.l.b16 %v406
    %v1757 = vunpack.c.h.b16 %v406
    %v1758 = vunpack.c.l.b16 %v407
    %v1759 = vunpack.c.h.b16 %v407
    %v1760 = vunpack.c.l.b16 %v408
    %v1761 = vunpack.c.h.b16 %v408
    %v1762 = vunpack.c.l.b16 %v409
    %v1763 = vunpack.c.h.b16 %v409
    %v1764 = vunpack.c.l.b16 %v410
    %v1765 = vunpack.c.h.b16 %v410
    %v1766 = vunpack.c.l.b16 %v411
    %v1767 = vunpack.c.h.b16 %v411
    %v1768 = vunpack.c.l.b16 %v412
    %v1769 = vunpack.c.h.b16 %v412
    %v1770 = vunpack.c.l.b16 %v413
    %v1771 = vunpack.c.h.b16 %v413
    %v1772 = vunpack.c.l.b16 %v414
    %v1773 = vunpack.c.h.b16 %v414
    %v1774 = vunpack.c.l.b16 %v415
    %v1775 = vunpack.c.h.b16 %v415
    %v1776 = vunpack.c.l.b16 %v416
    %v1777 = vunpack.c.h.b16 %v416
    %v1778 = vunpack.c.l.b16 %v417
    %v1779 = vunpack.c.h.b16 %v417
    %v1780 = vunpack.c.l.b16 %v418
    %v1781 = vunpack.c.h.b16 %v418
    %v1782 = vunpack.c.l.b16 %v419
    %v1783 = vunpack.c.h.b16 %v419
    %v1784 = vunpack.c.l.b16 %v420
    %v1785 = vunpack.c.h.b16 %v420
    %v1786 = vunpack.c.l.b16 %v421
    %v1787 = vunpack.c.h.b16 %v421
    %v1788 = vunpack.c.l.b16 %v422
    %v1789 = vunpack.c.h.b16 %v422
    %v1790 = vunpack.c.l.b16 %v423
    %v1791 = vunpack.c.h.b16 %v423
    %v1792 = vunpack.c.l.b16 %v424
    %v1793 = vunpack.c.h.b16 %v424
    %v1794 = vunpack.c.l.b16 %v425
    %v1795 = vunpack.c.h.b16 %v425
    %v1796 = vunpack.c.l.b16 %v426
    %v1797 = vunpack.c.h.b16 %v426
    %v1798 = vunpack.c.l.b16 %v427
    %v1799 = vunpack.c.h.b16 %v427
    %v1800 = vunpack.c.l.b16 %v428
    %v1801 = vunpack.c.h.b16 %v428
    %v1802 = vunpack.c.l.b16 %v429
    %v1803 = vunpack.c.h.b16 %v429
    %v1804 = vunpack.c.l.b16 %v430
    %v1805 = vunpack.c.h.b16 %v430
    %v1806 = vunpack.c.l.b16 %v431
    %v1807 = vunpack.c.h.b16 %v431
    %v1808 = vunpack.c.l.b16 %v432
    %v1809 = vunpack.c.h.b16 %v432
    %v1810 = vunpack.c.l.b16 %v433
    %v1811 = vunpack.c.h.b16 %v433
    %v1812 = vunpack.c.l.b16 %v434
    %v1813 = vunpack.c.h.b16 %v434
    %v1814 = vunpack.c.l.b16 %v435
    %v1815 = vunpack.c.h.b16 %v435
    %v1816 = vunpack.c.l.b16 %v436
    %v1817 = vunpack.c.h.b16 %v436
    %v1818 = vunpack.c.l.b16 %v437
    %v1819 = vunpack.c.h.b16 %v437
    %v1820 = vunpack.c.l.b16 %v438
    %v1821 = vunpack.c.h.b16 %v438
    %v1822 = vunpack.c.l.b16 %v439
    %v1823 = vunpack.c.h.b16 %v439
    %v1824 = vunpack.c.l.b16 %v440
    %v1825 = vunpack.c.h.b16 %v440
    %v1826 = vunpack.c.l.b16 %v441
    %v1827 = vunpack.c.h.b16 %v441
    %v1828 = vunpack.c.l.b16 %v442
    %v1829 = vunpack.c.h.b16 %v442
    %v1830 = vunpack.c.l.b16 %v443
    %v1831 = vunpack.c.h.b16 %v443
    %v1832 = vunpack.c.l.b16 %v444
    %v1833 = vunpack.c.h.b16 %v444
    %v1834 = vunpack.c.l.b16 %v445
    %v1835 = vunpack.c.h.b16 %v445
    %v1836 = vunpack.c.l.b16 %v446
    %v1837 = vunpack.c.h.b16 %v446
    %v1838 = vunpack.c.l.b16 %v447
    %v1839 = vunpack.c.h.b16 %v447
    %v1840 = vunpack.c.l.b16 %v448
    %v1841 = vunpack.c.h.b16 %v448
    %v1842 = vunpack.c.l.b16 %v449
    %v1843 = vunpack.c.h.b16 %v449
    %v1844 = vunpack.c.l.b16 %v450
    %v1845 = vunpack.c.h.b16 %v450
    %v1846 = vunpack.c.l.b16 %v451
    %v1847 = vunpack.c.h.b16 %v451
    %v1848 = vunpack.c.l.b16 %v452
    %v1849 = vunpack.c.h.b16 %v452
    %v1850 = vunpack.c.l.b16 %v453
    %v1851 = vunpack.c.h.b16 %v453
    %v1852 = vunpack.c.l.b16 %v454
    %v1853 = vunpack.c.h.b16 %v454
    %v1854 = vunpack.c.l.b16 %v455
    %v1855 = vunpack.c.h.b16 %v455
    %v1856 = vunpack.c.l.b16 %v456
    %v1857 = vunpack.c.h.b16 %v456
    %v1858 = vunpack.c.l.b16 %v457
    %v1859 = vunpack.c.h.b16 %v457
    %v1860 = vunpack.c.l.b16 %v458
    %v1861 = vunpack.c.h.b16 %v458
    %v1862 = vunpack.c.l.b16 %v459
    %v1863 = vunpack.c.h.b16 %v459
    %v1864 = vunpack.c.l.b16 %v460
    %v1865 = vunpack.c.h.b16 %v460
    %v1866 = vunpack.c.l.b16 %v461
    %v1867 = vunpack.c.h.b16 %v461
    %v1868 = vunpack.c.l.b16 %v462
    %v1869 = vunpack.c.h.b16 %v462
    %v1870 = vunpack.c.l.b16 %v463
    %v1871 = vunpack.c.h.b16 %v463
    %v1872 = vunpack.c.l.b16 %v464
    %v1873 = vunpack.c.h.b16 %v464
    %v1874 = vunpack.c.l.b16 %v465
    %v1875 = vunpack.c.h.b16 %v465
    %v1876 = vunpack.c.l.b16 %v466
    %v1877 = vunpack.c.h.b16 %v466
    %v1878 = vunpack.c.l.b16 %v467
    %v1879 = vunpack.c.h.b16 %v467
    %v1880 = vunpack.c.l.b16 %v468
    %v1881 = vunpack.c.h.b16 %v468
    %v1882 = vunpack.c.l.b16 %v469
    %v1883 = vunpack.c.h.b16 %v469
    %v1884 = vunpack.c.l.b16 %v470
    %v1885 = vunpack.c.h.b16 %v470
    %v1886 = vunpack.c.l.b16 %v471
    %v1887 = vunpack.c.h.b16 %v471
    %v1888 = vunpack.c.l.b16 %v472
    %v1889 = vunpack.c.h.b16 %v472
    %v1890 = vunpack.c.l.b16 %v473
    %v1891 = vunpack.c.h.b16 %v473
    %v1892 = vunpack.c.l.b16 %v474
    %v1893 = vunpack.c.h.b16 %v474
    %v1894 = vunpack.c.l.b16 %v475
    %v1895 = vunpack.c.h.b16 %v475
    %v1896 = vunpack.c.l.b16 %v476
    %v1897 = vunpack.c.h.b16 %v476
    %v1898 = vunpack.c.l.b16 %v477
    %v1899 = vunpack.c.h.b16 %v477
    %v1900 = vunpack.c.l.b16 %v478
    %v1901 = vunpack.c.h.b16 %v478
    %v1902 = vunpack.c.l.b16 %v479
    %v1903 = vunpack.c.h.b16 %v479
    %v1904 = vunpack.c.l.b16 %v480
    %v1905 = vunpack.c.h.b16 %v480
    %v1906 = vunpack.c.l.b16 %v481
    %v1907 = vunpack.c.h.b16 %v481
    %v1908 = vunpack.c.l.b16 %v482
    %v1909 = vunpack.c.h.b16 %v482
    %v1910 = vunpack.c.l.b16 %v483
    %v1911 = vunpack.c.h.b16 %v483
    %v1912 = vunpack.c.l.b16 %v484
    %v1913 = vunpack.c.h.b16 %v484
    %v1914 = vunpack.c.l.b16 %v485
    %v1915 = vunpack.c.h.b16 %v485
    %v1916 = vunpack.c.l.b16 %v486
    %v1917 = vunpack.c.h.b16 %v486
    %v1918 = vunpack.c.l.b16 %v487
    %v1919 = vunpack.c.h.b16 %v487
    %v1920 = vunpack.c.l.b16 %v488
    %v1921 = vunpack.c.h.b16 %v488
    %v1922 = vunpack.c.l.b16 %v489
    %v1923 = vunpack.c.h.b16 %v489
    %v1924 = vunpack.c.l.b16 %v490
    %v1925 = vunpack.c.h.b16 %v490
    %v1926 = vunpack.c.l.b16 %v491
    %v1927 = vunpack.c.h.b16 %v491
    %v1928 = vunpack.c.l.b16 %v492
    %v1929 = vunpack.c.h.b16 %v492
    %v1930 = vunpack.c.l.b16 %v493
    %v1931 = vunpack.c.h.b16 %v493
    %v1932 = vunpack.c.l.b16 %v494
    %v1933 = vunpack.c.h.b16 %v494
    %v1934 = vunpack.c.l.b16 %v495
    %v1935 = vunpack.c.h.b16 %v495
    %v1936 = vunpack.c.l.b16 %v496
    %v1937 = vunpack.c.h.b16 %v496
    %v1938 = vunpack.c.l.b16 %v497
    %v1939 = vunpack.c.h.b16 %v497
    %v1940 = vunpack.c.l.b16 %v498
    %v1941 = vunpack.c.h.b16 %v498
    %v1942 = vunpack.c.l.b16 %v499
    %v1943 = vunpack.c.h.b16 %v499
    %v1944 = vunpack.c.l.b16 %v500
    %v1945 = vunpack.c.h.b16 %v500
    %v1946 = vunpack.c.l.b16 %v501
    %v1947 = vunpack.c.h.b16 %v501
    %v1948 = vunpack.c.l.b16 %v502
    %v1949 = vunpack.c.h.b16 %v502
    %v1950 = vunpack.c.l.b16 %v503
    %v1951 = vunpack.c.h.b16 %v503
    %v1952 = vunpack.c.l.b16 %v504
    %v1953 = vunpack.c.h.b16 %v504
    %v1954 = vunpack.c.l.b16 %v505
    %v1955 = vunpack.c.h.b16 %v505
    %v1956 = vunpack.c.l.b16 %v506
    %v1957 = vunpack.c.h.b16 %v506
    %v1958 = vunpack.c.l.b16 %v507
    %v1959 = vunpack.c.h.b16 %v507
    %v1960 = vunpack.c.l.b16 %v508
    %v1961 = vunpack.c.h.b16 %v508
    %v1962 = vunpack.c.l.b16 %v509
    %v1963 = vunpack.c.h.b16 %v509
    %v1964 = vunpack.c.l.b16 %v510
    %v1965 = vunpack.c.h.b16 %v510
    %v1966 = vunpack.c.l.b16 %v511
    %v1967 = vunpack.c.h.b16 %v511
    %v1968 = vunpack.c.l.b16 %v512
    %v1969 = vunpack.c.h.b16 %v512
    %v1970 = vunpack.c.l.b16 %v513
    %v1971 = vunpack.c.h.b16 %v513
    %v1972 = vunpack.c.l.b16 %v514
    %v1973 = vunpack.c.h.b16 %v514
    %v1974 = vunpack.c.l.b16 %v515
    %v1975 = vunpack.c.h.b16 %v515
    %v1976 = vunpack.c.l.b16 %v516
    %v1977 = vunpack.c.h.b16 %v516
    %v1978 = vunpack.c.l.b16 %v517
    %v1979 = vunpack.c.h.b16 %v517
    %v1980 = vunpack.c.l.b16 %v518
    %v1981 = vunpack.c.h.b16 %v518
    %v1982 = vunpack.c.l.b16 %v519
    %v1983 = vunpack.c.h.b16 %v519
    %v1984 = vunpack.c.l.b16 %v520
    %v1985 = vunpack.c.h.b16 %v520
    %v1986 = vunpack.c.l.b16 %v521
    %v1987 = vunpack.c.h.b16 %v521
    %v1988 = vunpack.c.l.b16 %v522
    %v1989 = vunpack.c.h.b16 %v522
    %v1990 = vunpack.c.l.b16 %v523
    %v1991 = vunpack.c.h.b16 %v523
    %v1992 = vunpack.c.l.b16 %v524
    %v1993 = vunpack.c.h.b16 %v524
    %v1994 = vunpack.c.l.b16 %v525
    %v1995 = vunpack.c.h.b16 %v525
    %v1996 = vunpack.c.l.b16 %v526
    %v1997 = vunpack.c.h.b16 %v526
    %v1998 = vunpack.c.l.b16 %v527
    %v1999 = vunpack.c.h.b16 %v527
    %v2000 = vunpack.c.l.b16 %v528
    %v2001 = vunpack.c.h.b16 %v528
    %v2002 = vunpack.c.l.b16 %v529
    %v2003 = vunpack.c.h.b16 %v529
    %v2004 = vunpack.c.l.b16 %v530
    %v2005 = vunpack.c.h.b16 %v530
    %v2006 = vunpack.c.l.b16 %v531
    %v2007 = vunpack.c.h.b16 %v531
    %v2008 = vunpack.c.l.b16 %v532
    %v2009 = vunpack.c.h.b16 %v532
    %v2010 = vunpack.c.l.b16 %v533
    %v2011 = vunpack.c.h.b16 %v533
    %v2012 = vunpack.c.l.b16 %v534
    %v2013 = vunpack.c.h.b16 %v534
    %v2014 = vunpack.c.l.b16 %v535
    %v2015 = vunpack.c.h.b16 %v535
    %v2016 = vunpack.c.l.b16 %v536
    %v2017 = vunpack.c.h.b16 %v536
    %v2018 = vunpack.c.l.b16 %v537
    %v2019 = vunpack.c.h.b16 %v537
    %v2020 = vunpack.c.l.b16 %v538
    %v2021 = vunpack.c.h.b16 %v538
    %v2022 = vunpack.c.l.b16 %v539
    %v2023 = vunpack.c.h.b16 %v539
    %v2024 = vunpack.c.l.b16 %v540
    %v2025 = vunpack.c.h.b16 %v540
    %v2026 = vunpack.c.l.b16 %v541
    %v2027 = vunpack.c.h.b16 %v541
    %v2028 = vunpack.c.l.b16 %v542
    %v2029 = vunpack.c.h.b16 %v542
    %v2030 = vunpack.c.l.b16 %v543
    %v2031 = vunpack.c.h.b16 %v543
    %v2032 = vunpack.c.l.b16 %v544
    %v2033 = vunpack.c.h.b16 %v544
    %v2034 = vunpack.c.l.b16 %v545
    %v2035 = vunpack.c.h.b16 %v545
    %v2036 = vunpack.c.l.b16 %v546
    %v2037 = vunpack.c.h.b16 %v546
    %v2038 = vunpack.c.l.b16 %v547
    %v2039 = vunpack.c.h.b16 %v547
    %v2040 = vunpack.c.l.b16 %v548
    %v2041 = vunpack.c.h.b16 %v548
    %v2042 = vunpack.c.l.b16 %v549
    %v2043 = vunpack.c.h.b16 %v549
    %v2044 = vunpack.c.l.b16 %v550
    %v2045 = vunpack.c.h.b16 %v550
    %v2046 = vunpack.c.l.b16 %v551
    %v2047 = vunpack.c.h.b16 %v551
    %v2048 = vunpack.c.l.b16 %v552
    %v2049 = vunpack.c.h.b16 %v552
    %v2050 = vunpack.c.l.b16 %v553
    %v2051 = vunpack.c.h.b16 %v553
    %v2052 = vunpack.c.l.b16 %v554
    %v2053 = vunpack.c.h.b16 %v554
    %v2054 = vunpack.c.l.b16 %v555
    %v2055 = vunpack.c.h.b16 %v555
    %v2056 = vunpack.c.l.b16 %v556
    %v2057 = vunpack.c.h.b16 %v556
    %v2058 = vunpack.c.l.b16 %v557
    %v2059 = vunpack.c.h.b16 %v557
    %v2060 = vunpack.c.l.b16 %v558
    %v2061 = vunpack.c.h.b16 %v558
    %v2062 = vunpack.c.l.b16 %v559
    %v2063 = vunpack.c.h.b16 %v559
    %v2064 = vunpack.c.l.b16 %v560
    %v2065 = vunpack.c.h.b16 %v560
    %v2066 = vunpack.c.l.b16 %v561
    %v2067 = vunpack.c.h.b16 %v561
    %v2068 = vunpack.c.l.b16 %v562
    %v2069 = vunpack.c.h.b16 %v562
    %v2070 = vunpack.c.l.b16 %v563
    %v2071 = vunpack.c.h.b16 %v563
    %v2072 = vunpack.c.l.b16 %v564
    %v2073 = vunpack.c.h.b16 %v564
    %v2074 = vunpack.c.l.b16 %v565
    %v2075 = vunpack.c.h.b16 %v565
    %v2076 = vunpack.c.l.b16 %v566
    %v2077 = vunpack.c.h.b16 %v566
    %v2078 = vunpack.c.l.b16 %v567
    %v2079 = vunpack.c.h.b16 %v567
    %v2080 = vunpack.c.l.b16 %v568
    %v2081 = vunpack.c.h.b16 %v568
    %v2082 = vunpack.c.l.b16 %v569
    %v2083 = vunpack.c.h.b16 %v569
    %v2084 = vunpack.c.l.b16 %v570
    %v2085 = vunpack.c.h.b16 %v570
    %v2086 = vunpack.c.l.b16 %v571
    %v2087 = vunpack.c.h.b16 %v571
    %v2088 = vunpack.c.l.b16 %v572
    %v2089 = vunpack.c.h.b16 %v572
    %v2090 = vunpack.c.l.b16 %v573
    %v2091 = vunpack.c.h.b16 %v573
    %v2092 = vunpack.c.l.b16 %v574
    %v2093 = vunpack.c.h.b16 %v574
    %v2094 = vunpack.c.l.b16 %v575
    %v2095 = vunpack.c.h.b16 %v575
    %v2096 = vunpack.c.l.b16 %v576
    %v2097 = vunpack.c.h.b16 %v576
    %v2098 = vunpack.c.l.b16 %v577
    %v2099 = vunpack.c.h.b16 %v577
    %v2100 = vunpack.c.l.b16 %v578
    %v2101 = vunpack.c.h.b16 %v578
    %v2102 = vunpack.c.l.b16 %v579
    %v2103 = vunpack.c.h.b16 %v579
    %v2104 = vunpack.c.l.b16 %v580
    %v2105 = vunpack.c.h.b16 %v580
    %v2106 = vunpack.c.l.b16 %v581
    %v2107 = vunpack.c.h.b16 %v581
    %v2108 = vunpack.c.l.b16 %v582
    %v2109 = vunpack.c.h.b16 %v582
    %v2110 = vunpack.c.l.b16 %v583
    %v2111 = vunpack.c.h.b16 %v583
    %v2112 = vunpack.c.l.b16 %v584
    %v2113 = vunpack.c.h.b16 %v584
    %v2114 = vunpack.c.l.b16 %v585
    %v2115 = vunpack.c.h.b16 %v585
    %v2116 = vunpack.c.l.b16 %v586
    %v2117 = vunpack.c.h.b16 %v586
    %v2118 = vunpack.c.l.b16 %v587
    %v2119 = vunpack.c.h.b16 %v587
    %v2120 = vunpack.c.l.b16 %v588
    %v2121 = vunpack.c.h.b16 %v588
    %v2122 = vunpack.c.l.b16 %v589
    %v2123 = vunpack.c.h.b16 %v589
    %v2124 = vunpack.c.l.b16 %v590
    %v2125 = vunpack.c.h.b16 %v590
    %v2126 = vunpack.c.l.b16 %v591
    %v2127 = vunpack.c.h.b16 %v591
    %v2128 = vunpack.c.l.b16 %v592
    %v2129 = vunpack.c.h.b16 %v592
    %v2130 = vunpack.c.l.b16 %v593
    %v2131 = vunpack.c.h.b16 %v593
    %v2132 = vunpack.c.l.b16 %v594
    %v2133 = vunpack.c.h.b16 %v594
    %v2134 = vunpack.c.l.b16 %v595
    %v2135 = vunpack.c.h.b16 %v595
    %v2136 = vunpack.c.l.b16 %v596
    %v2137 = vunpack.c.h.b16 %v596
    %v2138 = vunpack.c.l.b16 %v597
    %v2139 = vunpack.c.h.b16 %v597
    %v2140 = vunpack.c.l.b16 %v598
    %v2141 = vunpack.c.h.b16 %v598
    %v2142 = vunpack.c.l.b16 %v599
    %v2143 = vunpack.c.h.b16 %v599
    %v2144 = vunpack.c.l.b16 %v600
    %v2145 = vunpack.c.h.b16 %v600
    %v2146 = vunpack.c.l.b16 %v601
    %v2147 = vunpack.c.h.b16 %v601
    %v2148 = vunpack.c.l.b16 %v602
    %v2149 = vunpack.c.h.b16 %v602
    %v2150 = vunpack.c.l.b16 %v603
    %v2151 = vunpack.c.h.b16 %v603
    %v2152 = vunpack.c.l.b16 %v604
    %v2153 = vunpack.c.h.b16 %v604
    %v2154 = vunpack.c.l.b16 %v605
    %v2155 = vunpack.c.h.b16 %v605
    %v2156 = vunpack.c.l.b16 %v606
    %v2157 = vunpack.c.h.b16 %v606
    %v2158 = vunpack.c.l.b16 %v607
    %v2159 = vunpack.c.h.b16 %v607
    %v2160 = vunpack.c.l.b16 %v608
    %v2161 = vunpack.c.h.b16 %v608
    %v2162 = vunpack.c.l.b16 %v609
    %v2163 = vunpack.c.h.b16 %v609
    %v2164 = vunpack.c.l.b16 %v610
    %v2165 = vunpack.c.h.b16 %v610
    %v2166 = vunpack.c.l.b16 %v611
    %v2167 = vunpack.c.h.b16 %v611
    %v2168 = vunpack.c.l.b16 %v612
    %v2169 = vunpack.c.h.b16 %v612
    %v2170 = vunpack.c.l.b16 %v613
    %v2171 = vunpack.c.h.b16 %v613
    %v2172 = vunpack.c.l.b16 %v614
    %v2173 = vunpack.c.h.b16 %v614
    %v2174 = vunpack.c.l.b16 %v615
    %v2175 = vunpack.c.h.b16 %v615
    %v2176 = vunpack.c.l.b16 %v616
    %v2177 = vunpack.c.h.b16 %v616
    %v2178 = vunpack.c.l.b16 %v617
    %v2179 = vunpack.c.h.b16 %v617
    %v2180 = vunpack.c.l.b16 %v618
    %v2181 = vunpack.c.h.b16 %v618
    %v2182 = vunpack.c.l.b16 %v619
    %v2183 = vunpack.c.h.b16 %v619
    %v2184 = vunpack.c.l.b16 %v620
    %v2185 = vunpack.c.h.b16 %v620
    %v2186 = vunpack.c.l.b16 %v621
    %v2187 = vunpack.c.h.b16 %v621
    %v2188 = vunpack.c.l.b16 %v622
    %v2189 = vunpack.c.h.b16 %v622
    %v2190 = vunpack.c.l.b16 %v623
    %v2191 = vunpack.c.h.b16 %v623
    %v2192 = vunpack.c.l.b16 %v624
    %v2193 = vunpack.c.h.b16 %v624
    %v2194 = vunpack.c.l.b16 %v625
    %v2195 = vunpack.c.h.b16 %v625
    %v2196 = vunpack.c.l.b16 %v626
    %v2197 = vunpack.c.h.b16 %v626
    %v2198 = vunpack.c.l.b16 %v627
    %v2199 = vunpack.c.h.b16 %v627
    %v2200 = vunpack.c.l.b16 %v628
    %v2201 = vunpack.c.h.b16 %v628
    %v2202 = vunpack.c.l.b16 %v629
    %v2203 = vunpack.c.h.b16 %v629
    %v2204 = vunpack.c.l.b16 %v630
    %v2205 = vunpack.c.h.b16 %v630
    %v2206 = vunpack.c.l.b16 %v631
    %v2207 = vunpack.c.h.b16 %v631
    %v2208 = vunpack.c.l.b16 %v632
    %v2209 = vunpack.c.h.b16 %v632
    %v2210 = vunpack.c.l.b16 %v633
    %v2211 = vunpack.c.h.b16 %v633
    %v2212 = vunpack.c.l.b16 %v634
    %v2213 = vunpack.c.h.b16 %v634
    %v2214 = vunpack.c.l.b16 %v635
    %v2215 = vunpack.c.h.b16 %v635
    %v2216 = vunpack.c.l.b16 %v636
    %v2217 = vunpack.c.h.b16 %v636
    %v2218 = vunpack.c.l.b16 %v637
    %v2219 = vunpack.c.h.b16 %v637
    %v2220 = vunpack.c.l.b16 %v638
    %v2221 = vunpack.c.h.b16 %v638
    %v2222 = vunpack.c.l.b16 %v639
    %v2223 = vunpack.c.h.b16 %v639
    %v2224 = vunpack.c.l.b16 %v640
    %v2225 = vunpack.c.h.b16 %v640
    %v2226 = vunpack.c.l.b16 %v641
    %v2227 = vunpack.c.h.b16 %v641
    %v2228 = vunpack.c.l.b16 %v642
    %v2229 = vunpack.c.h.b16 %v642
    %v2230 = vunpack.c.l.b16 %v643
    %v2231 = vunpack.c.h.b16 %v643
    %v2232 = vunpack.c.l.b16 %v644
    %v2233 = vunpack.c.h.b16 %v644
    %v2234 = vunpack.c.l.b16 %v645
    %v2235 = vunpack.c.h.b16 %v645
    %v2236 = vunpack.c.l.b16 %v646
    %v2237 = vunpack.c.h.b16 %v646
    %v2238 = vunpack.c.l.b16 %v647
    %v2239 = vunpack.c.h.b16 %v647
    %v2240 = vunpack.c.l.b16 %v648
    %v2241 = vunpack.c.h.b16 %v648
    %v2242 = vunpack.c.l.b16 %v649
    %v2243 = vunpack.c.h.b16 %v649
    %v2244 = vunpack.c.l.b16 %v650
    %v2245 = vunpack.c.h.b16 %v650
    %v2246 = vunpack.c.l.b16 %v651
    %v2247 = vunpack.c.h.b16 %v651
    %v2248 = vunpack.c.l.b16 %v652
    %v2249 = vunpack.c.h.b16 %v652
    %v2250 = vunpack.c.l.b16 %v653
    %v2251 = vunpack.c.h.b16 %v653
    %v2252 = vunpack.c.l.b16 %v654
    %v2253 = vunpack.c.h.b16 %v654
    %v2254 = vunpack.c.l.b16 %v655
    %v2255 = vunpack.c.h.b16 %v655
    %v2256 = vunpack.c.l.b16 %v656
    %v2257 = vunpack.c.h.b16 %v656
    %v2258 = vunpack.c.l.b16 %v657
    %v2259 = vunpack.c.h.b16 %v657
    %v2260 = vunpack.c.l.b16 %v658
    %v2261 = vunpack.c.h.b16 %v658
    %v2262 = vunpack.c.l.b16 %v659
    %v2263 = vunpack.c.h.b16 %v659
    %v2264 = vunpack.c.l.b16 %v660
    %v2265 = vunpack.c.h.b16 %v660
    %v2266 = vunpack.c.l.b16 %v661
    %v2267 = vunpack.c.h.b16 %v661
    %v2268 = vpack.c.b16 %v1252, %v1244
    %v2269 = vpack.c.b16 %v1253, %v1245
    %v2270 = vpack.c.b16 %v1254, %v1246
    %v2271 = vpack.c.b16 %v1255, %v1247
    %v2272 = vpack.c.b16 %v1256, %v1248
    %v2273 = vpack.c.b16 %v1257, %v1249
    %v2274 = vpack.c.b16 %v1258, %v1250
    %v2275 = vpack.c.b16 %v1259, %v1251
    %v2276 = vpack.c.b16 %v1268, %v1260
    %v2277 = vpack.c.b16 %v1269, %v1261
    %v2278 = vpack.c.b16 %v1270, %v1262
    %v2279 = vpack.c.b16 %v1271, %v1263
    %v2280 = vpack.c.b16 %v1272, %v1264
    %v2281 = vpack.c.b16 %v1273, %v1265
    %v2282 = vpack.c.b16 %v1274, %v1266
    %v2283 = vpack.c.b16 %v1275, %v1267
    %v2284 = vpack.c.b16 %v1284, %v1276
    %v2285 = vpack.c.b16 %v1285, %v1277
    %v2286 = vpack.c.b16 %v1286, %v1278
    %v2287 = vpack.c.b16 %v1287, %v1279
    %v2288 = vpack.c.b16 %v1288, %v1280
    %v2289 = vpack.c.b16 %v1289, %v1281
    %v2290 = vpack.c.b16 %v1290, %v1282
    %v2291 = vpack.c.b16 %v1291, %v1283
    %v2292 = vpack.c.b16 %v1300, %v1292
    %v2293 = vpack.c.b16 %v1301, %v1293
    %v2294 = vpack.c.b16 %v1302, %v1294
    %v2295 = vpack.c.b16 %v1303, %v1295
    %v2296 = vpack.c.b16 %v1304, %v1296
    %v2297 = vpack.c.b16 %v1305, %v1297
    %v2298 = vpack.c.b16 %v1306, %v1298
    %v2299 = vpack.c.b16 %v1307, %v1299
    %v2300 = vpack.c.b16 %v1316, %v1308
    %v2301 = vpack.c.b16 %v1317, %v1309
    %v2302 = vpack.c.b16 %v1318, %v1310
    %v2303 = vpack.c.b16 %v1319, %v1311
    %v2304 = vpack.c.b16 %v1320, %v1312
    %v2305 = vpack.c.b16 %v1321, %v1313
    %v2306 = vpack.c.b16 %v1322, %v1314
    %v2307 = vpack.c.b16 %v1323, %v1315
    %v2308 = vpack.c.b16 %v1332, %v1324
    %v2309 = vpack.c.b16 %v1333, %v1325
    %v2310 = vpack.c.b16 %v1334, %v1326
    %v2311 = vpack.c.b16 %v1335, %v1327
    %v2312 = vpack.c.b16 %v1336, %v1328
    %v2313 = vpack.c.b16 %v1337, %v1329
    %v2314 = vpack.c.b16 %v1338, %v1330
    %v2315 = vpack.c.b16 %v1339, %v1331
    %v2316 = vpack.c.b16 %v1348, %v1340
    %v2317 = vpack.c.b16 %v1349, %v1341
    %v2318 = vpack.c.b16 %v1350, %v1342
    %v2319 = vpack.c.b16 %v1351, %v1343
    %v2320 = vpack.c.b16 %v1352, %v1344
    %v2321 = vpack.c.b16 %v1353, %v1345
    %v2322 = vpack.c.b16 %v1354, %v1346
    %v2323 = vpack.c.b16 %v1355, %v1347
    %v2324 = vpack.c.b16 %v1364, %v1356
    %v2325 = vpack.c.b16 %v1365, %v1357
    %v2326 = vpack.c.b16 %v1366, %v1358
    %v2327 = vpack.c.b16 %v1367, %v1359
    %v2328 = vpack.c.b16 %v1368, %v1360
    %v2329 = vpack.c.b16 %v1369, %v1361
    %v2330 = vpack.c.b16 %v1370, %v1362
    %v2331 = vpack.c.b16 %v1371, %v1363
    %v2332 = vpack.c.b16 %v1380, %v1372
    %v2333 = vpack.c.b16 %v1381, %v1373
    %v2334 = vpack.c.b16 %v1382, %v1374
    %v2335 = vpack.c.b16 %v1383, %v1375
    %v2336 = vpack.c.b16 %v1384, %v1376
    %v2337 = vpack.c.b16 %v1385, %v1377
    %v2338 = vpack.c.b16 %v1386, %v1378
    %v2339 = vpack.c.b16 %v1387, %v1379
    %v2340 = vpack.c.b16 %v1396, %v1388
    %v2341 = vpack.c.b16 %v1397, %v1389
    %v2342 = vpack.c.b16 %v1398, %v1390
    %v2343 = vpack.c.b16 %v1399, %v1391
    %v2344 = vpack.c.b16 %v1400, %v1392
    %v2345 = vpack.c.b16 %v1401, %v1393
    %v2346 = vpack.c.b16 %v1402, %v1394
    %v2347 = vpack.c.b16 %v1403, %v1395
    %v2348 = vpack.c.b16 %v1412, %v1404
    %v2349 = vpack.c.b16 %v1413, %v1405
    %v2350 = vpack.c.b16 %v1414, %v1406
    %v2351 = vpack.c.b16 %v1415, %v1407
    %v2352 = vpack.c.b16 %v1416, %v1408
    %v2353 = vpack.c.b16 %v1417, %v1409
    %v2354 = vpack.c.b16 %v1418, %v1410
    %v2355 = vpack.c.b16 %v1419, %v1411
    %v2356 = vpack.c.b16 %v1428, %v1420
    %v2357 = vpack.c.b16 %v1429, %v1421
    %v2358 = vpack.c.b16 %v1430, %v1422
    %v2359 = vpack.c.b16 %v1431, %v1423
    %v2360 = vpack.c.b16 %v1432, %v1424
    %v2361 = vpack.c.b16 %v1433, %v1425
    %v2362 = vpack.c.b16 %v1434, %v1426
    %v2363 = vpack.c.b16 %v1435, %v1427
    %v2364 = vpack.c.b16 %v1444, %v1436
    %v2365 = vpack.c.b16 %v1445, %v1437
    %v2366 = vpack.c.b16 %v1446, %v1438
    %v2367 = vpack.c.b16 %v1447, %v1439
    %v2368 = vpack.c.b16 %v1448, %v1440
    %v2369 = vpack.c.b16 %v1449, %v1441
    %v2370 = vpack.c.b16 %v1450, %v1442
    %v2371 = vpack.c.b16 %v1451, %v1443
    %v2372 = vpack.c.b16 %v1460, %v1452
    %v2373 = vpack.c.b16 %v1461, %v1453
    %v2374 = vpack.c.b16 %v1462, %v1454
    %v2375 = vpack.c.b16 %v1463, %v1455
    %v2376 = vpack.c.b16 %v1464, %v1456
    %v2377 = vpack.c.b16 %v1465, %v1457
    %v2378 = vpack.c.b16 %v1466, %v1458
    %v2379 = vpack.c.b16 %v1467, %v1459
    %v2380 = vpack.c.b16 %v1476, %v1468
    %v2381 = vpack.c.b16 %v1477, %v1469
    %v2382 = vpack.c.b16 %v1478, %v1470
    %v2383 = vpack.c.b16 %v1479, %v1471
    %v2384 = vpack.c.b16 %v1480, %v1472
    %v2385 = vpack.c.b16 %v1481, %v1473
    %v2386 = vpack.c.b16 %v1482, %v1474
    %v2387 = vpack.c.b16 %v1483, %v1475
    %v2388 = vpack.c.b16 %v1492, %v1484
    %v2389 = vpack.c.b16 %v1493, %v1485
    %v2390 = vpack.c.b16 %v1494, %v1486
    %v2391 = vpack.c.b16 %v1495, %v1487
    %v2392 = vpack.c.b16 %v1496, %v1488
    %v2393 = vpack.c.b16 %v1497, %v1489
    %v2394 = vpack.c.b16 %v1498, %v1490
    %v2395 = vpack.c.b16 %v1499, %v1491
    %v2396 = vpack.c.b16 %v1508, %v1500
    %v2397 = vpack.c.b16 %v1509, %v1501
    %v2398 = vpack.c.b16 %v1510, %v1502
    %v2399 = vpack.c.b16 %v1511, %v1503
    %v2400 = vpack.c.b16 %v1512, %v1504
    %v2401 = vpack.c.b16 %v1513, %v1505
    %v2402 = vpack.c.b16 %v1514, %v1506
    %v2403 = vpack.c.b16 %v1515, %v1507
    %v2404 = vpack.c.b16 %v1524, %v1516
    %v2405 = vpack.c.b16 %v1525, %v1517
    %v2406 = vpack.c.b16 %v1526, %v1518
    %v2407 = vpack.c.b16 %v1527, %v1519
    %v2408 = vpack.c.b16 %v1528, %v1520
    %v2409 = vpack.c.b16 %v1529, %v1521
    %v2410 = vpack.c.b16 %v1530, %v1522
    %v2411 = vpack.c.b16 %v1531, %v1523
    %v2412 = vpack.c.b16 %v1540, %v1532
    %v2413 = vpack.c.b16 %v1541, %v1533
    %v2414 = vpack.c.b16 %v1542, %v1534
    %v2415 = vpack.c.b16 %v1543, %v1535
    %v2416 = vpack.c.b16 %v1544, %v1536
    %v2417 = vpack.c.b16 %v1545, %v1537
    %v2418 = vpack.c.b16 %v1546, %v1538
    %v2419 = vpack.c.b16 %v1547, %v1539
    %v2420 = vpack.c.b16 %v1556, %v1548
    %v2421 = vpack.c.b16 %v1557, %v1549
    %v2422 = vpack.c.b16 %v1558, %v1550
    %v2423 = vpack.c.b16 %v1559, %v1551
    %v2424 = vpack.c.b16 %v1560, %v1552
    %v2425 = vpack.c.b16 %v1561, %v1553
    %v2426 = vpack.c.b16 %v1562, %v1554
    %v2427 = vpack.c.b16 %v1563, %v1555
    %v2428 = vpack.c.b16 %v1572, %v1564
    %v2429 = vpack.c.b16 %v1573, %v1565
    %v2430 = vpack.c.b16 %v1574, %v1566
    %v2431 = vpack.c.b16 %v1575, %v1567
    %v2432 = vpack.c.b16 %v1576, %v1568
    %v2433 = vpack.c.b16 %v1577, %v1569
    %v2434 = vpack.c.b16 %v1578, %v1570
    %v2435 = vpack.c.b16 %v1579, %v1571
    %v2436 = vpack.c.b16 %v1588, %v1580
    %v2437 = vpack.c.b16 %v1589, %v1581
    %v2438 = vpack.c.b16 %v1590, %v1582
    %v2439 = vpack.c.b16 %v1591, %v1583
    %v2440 = vpack.c.b16 %v1592, %v1584
    %v2441 = vpack.c.b16 %v1593, %v1585
    %v2442 = vpack.c.b16 %v1594, %v1586
    %v2443 = vpack.c.b16 %v1595, %v1587
    %v2444 = vpack.c.b16 %v1604, %v1596
    %v2445 = vpack.c.b16 %v1605, %v1597
    %v2446 = vpack.c.b16 %v1606, %v1598
    %v2447 = vpack.c.b16 %v1607, %v1599
    %v2448 = vpack.c.b16 %v1608, %v1600
    %v2449 = vpack.c.b16 %v1609, %v1601
    %v2450 = vpack.c.b16 %v1610, %v1602
    %v2451 = vpack.c.b16 %v1611, %v1603
    %v2452 = vpack.c.b16 %v1620, %v1612
    %v2453 = vpack.c.b16 %v1621, %v1613
    %v2454 = vpack.c.b16 %v1622, %v1614
    %v2455 = vpack.c.b16 %v1623, %v1615
    %v2456 = vpack.c.b16 %v1624, %v1616
    %v2457 = vpack.c.b16 %v1625, %v1617
    %v2458 = vpack.c.b16 %v1626, %v1618
    %v2459 = vpack.c.b16 %v1627, %v1619
    %v2460 = vpack.c.b16 %v1636, %v1628
    %v2461 = vpack.c.b16 %v1637, %v1629
    %v2462 = vpack.c.b16 %v1638, %v1630
    %v2463 = vpack.c.b16 %v1639, %v1631
    %v2464 = vpack.c.b16 %v1640, %v1632
    %v2465 = vpack.c.b16 %v1641, %v1633
    %v2466 = vpack.c.b16 %v1642, %v1634
    %v2467 = vpack.c.b16 %v1643, %v1635
    %v2468 = vpack.c.b16 %v1652, %v1644
    %v2469 = vpack.c.b16 %v1653, %v1645
    %v2470 = vpack.c.b16 %v1654, %v1646
    %v2471 = vpack.c.b16 %v1655, %v1647
    %v2472 = vpack.c.b16 %v1656, %v1648
    %v2473 = vpack.c.b16 %v1657, %v1649
    %v2474 = vpack.c.b16 %v1658, %v1650
    %v2475 = vpack.c.b16 %v1659, %v1651
    %v2476 = vpack.c.b16 %v1668, %v1660
    %v2477 = vpack.c.b16 %v1669, %v1661
    %v2478 = vpack.c.b16 %v1670, %v1662
    %v2479 = vpack.c.b16 %v1671, %v1663
    %v2480 = vpack.c.b16 %v1672, %v1664
    %v2481 = vpack.c.b16 %v1673, %v1665
    %v2482 = vpack.c.b16 %v1674, %v1666
    %v2483 = vpack.c.b16 %v1675, %v1667
    %v2484 = vpack.c.b16 %v1684, %v1676
    %v2485 = vpack.c.b16 %v1685, %v1677
    %v2486 = vpack.c.b16 %v1686, %v1678
    %v2487 = vpack.c.b16 %v1687, %v1679
    %v2488 = vpack.c.b16 %v1688, %v1680
    %v2489 = vpack.c.b16 %v1689, %v1681
    %v2490 = vpack.c.b16 %v1690, %v1682
    %v2491 = vpack.c.b16 %v1691, %v1683
    %v2492 = vpack.c.b16 %v1700, %v1692
    %v2493 = vpack.c.b16 %v1701, %v1693
    %v2494 = vpack.c.b16 %v1702, %v1694
    %v2495 = vpack.c.b16 %v1703, %v1695
    %v2496 = vpack.c.b16 %v1704, %v1696
    %v2497 = vpack.c.b16 %v1705, %v1697
    %v2498 = vpack.c.b16 %v1706, %v1698
    %v2499 = vpack.c.b16 %v1707, %v1699
    %v2500 = vpack.c.b16 %v1716, %v1708
    %v2501 = vpack.c.b16 %v1717, %v1709
    %v2502 = vpack.c.b16 %v1718, %v1710
    %v2503 = vpack.c.b16 %v1719, %v1711
    %v2504 = vpack.c.b16 %v1720, %v1712
    %v2505 = vpack.c.b16 %v1721, %v1713
    %v2506 = vpack.c.b16 %v1722, %v1714
    %v2507 = vpack.c.b16 %v1723, %v1715
    %v2508 = vpack.c.b16 %v1732, %v1724
    %v2509 = vpack.c.b16 %v1733, %v1725
    %v2510 = vpack.c.b16 %v1734, %v1726
    %v2511 = vpack.c.b16 %v1735, %v1727
    %v2512 = vpack.c.b16 %v1736, %v1728
    %v2513 = vpack.c.b16 %v1737, %v1729
    %v2514 = vpack.c.b16 %v1738, %v1730
    %v2515 = vpack.c.b16 %v1739, %v1731
    %v2516 = vpack.c.b16 %v1748, %v1740
    %v2517 = vpack.c.b16 %v1749, %v1741
    %v2518 = vpack.c.b16 %v1750, %v1742
    %v2519 = vpack.c.b16 %v1751, %v1743
    %v2520 = vpack.c.b16 %v1752, %v1744
    %v2521 = vpack.c.b16 %v1753, %v1745
    %v2522 = vpack.c.b16 %v1754, %v1746
    %v2523 = vpack.c.b16 %v1755, %v1747
    %v2524 = vpack.c.b16 %v1764, %v1756
    %v2525 = vpack.c.b16 %v1765, %v1757
    %v2526 = vpack.c.b16 %v1766, %v1758
    %v2527 = vpack.c.b16 %v1767, %v1759
    %v2528 = vpack.c.b16 %v1768, %v1760
    %v2529 = vpack.c.b16 %v1769, %v1761
    %v2530 = vpack.c.b16 %v1770, %v1762
    %v2531 = vpack.c.b16 %v1771, %v1763
    %v2532 = vpack.c.b16 %v1780, %v1772
    %v2533 = vpack.c.b16 %v1781, %v1773
    %v2534 = vpack.c.b16 %v1782, %v1774
    %v2535 = vpack.c.b16 %v1783, %v1775
    %v2536 = vpack.c.b16 %v1784, %v1776
    %v2537 = vpack.c.b16 %v1785, %v1777
    %v2538 = vpack.c.b16 %v1786, %v1778
    %v2539 = vpack.c.b16 %v1787, %v1779
    %v2540 = vpack.c.b16 %v1796, %v1788
    %v2541 = vpack.c.b16 %v1797, %v1789
    %v2542 = vpack.c.b16 %v1798, %v1790
    %v2543 = vpack.c.b16 %v1799, %v1791
    %v2544 = vpack.c.b16 %v1800, %v1792
    %v2545 = vpack.c.b16 %v1801, %v1793
    %v2546 = vpack.c.b16 %v1802, %v1794
    %v2547 = vpack.c.b16 %v1803, %v1795
    %v2548 = vpack.c.b16 %v1812, %v1804
    %v2549 = vpack.c.b16 %v1813, %v1805
    %v2550 = vpack.c.b16 %v1814, %v1806
    %v2551 = vpack.c.b16 %v1815, %v1807
    %v2552 = vpack.c.b16 %v1816, %v1808
    %v2553 = vpack.c.b16 %v1817, %v1809
    %v2554 = vpack.c.b16 %v1818, %v1810
    %v2555 = vpack.c.b16 %v1819, %v1811
    %v2556 = vpack.c.b16 %v1828, %v1820
    %v2557 = vpack.c.b16 %v1829, %v1821
    %v2558 = vpack.c.b16 %v1830, %v1822
    %v2559 = vpack.c.b16 %v1831, %v1823
    %v2560 = vpack.c.b16 %v1832, %v1824
    %v2561 = vpack.c.b16 %v1833, %v1825
    %v2562 = vpack.c.b16 %v1834, %v1826
    %v2563 = vpack.c.b16 %v1835, %v1827
    %v2564 = vpack.c.b16 %v1844, %v1836
    %v2565 = vpack.c.b16 %v1845, %v1837
    %v2566 = vpack.c.b16 %v1846, %v1838
    %v2567 = vpack.c.b16 %v1847, %v1839
    %v2568 = vpack.c.b16 %v1848, %v1840
    %v2569 = vpack.c.b16 %v1849, %v1841
    %v2570 = vpack.c.b16 %v1850, %v1842
    %v2571 = vpack.c.b16 %v1851, %v1843
    %v2572 = vpack.c.b16 %v1860, %v1852
    %v2573 = vpack.c.b16 %v1861, %v1853
    %v2574 = vpack.c.b16 %v1862, %v1854
    %v2575 = vpack.c.b16 %v1863, %v1855
    %v2576 = vpack.c.b16 %v1864, %v1856
    %v2577 = vpack.c.b16 %v1865, %v1857
    %v2578 = vpack.c.b16 %v1866, %v1858
    %v2579 = vpack.c.b16 %v1867, %v1859
    %v2580 = vpack.c.b16 %v1876, %v1868
    %v2581 = vpack.c.b16 %v1877, %v1869
    %v2582 = vpack.c.b16 %v1878, %v1870
    %v2583 = vpack.c.b16 %v1879, %v1871
    %v2584 = vpack.c.b16 %v1880, %v1872
    %v2585 = vpack.c.b16 %v1881, %v1873
    %v2586 = vpack.c.b16 %v1882, %v1874
    %v2587 = vpack.c.b16 %v1883, %v1875
    %v2588 = vpack.c.b16 %v1892, %v1884
    %v2589 = vpack.c.b16 %v1893, %v1885
    %v2590 = vpack.c.b16 %v1894, %v1886
    %v2591 = vpack.c.b16 %v1895, %v1887
    %v2592 = vpack.c.b16 %v1896, %v1888
    %v2593 = vpack.c.b16 %v1897, %v1889
    %v2594 = vpack.c.b16 %v1898, %v1890
    %v2595 = vpack.c.b16 %v1899, %v1891
    %v2596 = vpack.c.b16 %v1908, %v1900
    %v2597 = vpack.c.b16 %v1909, %v1901
    %v2598 = vpack.c.b16 %v1910, %v1902
    %v2599 = vpack.c.b16 %v1911, %v1903
    %v2600 = vpack.c.b16 %v1912, %v1904
    %v2601 = vpack.c.b16 %v1913, %v1905
    %v2602 = vpack.c.b16 %v1914, %v1906
    %v2603 = vpack.c.b16 %v1915, %v1907
    %v2604 = vpack.c.b16 %v1924, %v1916
    %v2605 = vpack.c.b16 %v1925, %v1917
    %v2606 = vpack.c.b16 %v1926, %v1918
    %v2607 = vpack.c.b16 %v1927, %v1919
    %v2608 = vpack.c.b16 %v1928, %v1920
    %v2609 = vpack.c.b16 %v1929, %v1921
    %v2610 = vpack.c.b16 %v1930, %v1922
    %v2611 = vpack.c.b16 %v1931, %v1923
    %v2612 = vpack.c.b16 %v1940, %v1932
    %v2613 = vpack.c.b16 %v1941, %v1933
    %v2614 = vpack.c.b16 %v1942, %v1934
    %v2615 = vpack.c.b16 %v1943, %v1935
    %v2616 = vpack.c.b16 %v1944, %v1936
    %v2617 = vpack.c.b16 %v1945, %v1937
    %v2618 = vpack.c.b16 %v1946, %v1938
    %v2619 = vpack.c.b16 %v1947, %v1939
    %v2620 = vpack.c.b16 %v1956, %v1948
    %v2621 = vpack.c.b16 %v1957, %v1949
    %v2622 = vpack.c.b16 %v1958, %v1950
    %v2623 = vpack.c.b16 %v1959, %v1951
    %v2624 = vpack.c.b16 %v1960, %v1952
    %v2625 = vpack.c.b16 %v1961, %v1953
    %v2626 = vpack.c.b16 %v1962, %v1954
    %v2627 = vpack.c.b16 %v1963, %v1955
    %v2628 = vpack.c.b16 %v1972, %v1964
    %v2629 = vpack.c.b16 %v1973, %v1965
    %v2630 = vpack.c.b16 %v1974, %v1966
    %v2631 = vpack.c.b16 %v1975, %v1967
    %v2632 = vpack.c.b16 %v1976, %v1968
    %v2633 = vpack.c.b16 %v1977, %v1969
    %v2634 = vpack.c.b16 %v1978, %v1970
    %v2635 = vpack.c.b16 %v1979, %v1971
    %v2636 = vpack.c.b16 %v1988, %v1980
    %v2637 = vpack.c.b16 %v1989, %v1981
    %v2638 = vpack.c.b16 %v1990, %v1982
    %v2639 = vpack.c.b16 %v1991, %v1983
    %v2640 = vpack.c.b16 %v1992, %v1984
    %v2641 = vpack.c.b16 %v1993, %v1985
    %v2642 = vpack.c.b16 %v1994, %v1986
    %v2643 = vpack.c.b16 %v1995, %v1987
    %v2644 = vpack.c.b16 %v2004, %v1996
    %v2645 = vpack.c.b16 %v2005, %v1997
    %v2646 = vpack.c.b16 %v2006, %v1998
    %v2647 = vpack.c.b16 %v2007, %v1999
    %v2648 = vpack.c.b16 %v2008, %v2000
    %v2649 = vpack.c.b16 %v2009, %v2001
    %v2650 = vpack.c.b16 %v2010, %v2002
    %v2651 = vpack.c.b16 %v2011, %v2003
    %v2652 = vpack.c.b16 %v2020, %v2012
    %v2653 = vpack.c.b16 %v2021, %v2013
    %v2654 = vpack.c.b16 %v2022, %v2014
    %v2655 = vpack.c.b16 %v2023, %v2015
    %v2656 = vpack.c.b16 %v2024, %v2016
    %v2657 = vpack.c.b16 %v2025, %v2017
    %v2658 = vpack.c.b16 %v2026, %v2018
    %v2659 = vpack.c.b16 %v2027, %v2019
    %v2660 = vpack.c.b16 %v2036, %v2028
    %v2661 = vpack.c.b16 %v2037, %v2029
    %v2662 = vpack.c.b16 %v2038, %v2030
    %v2663 = vpack.c.b16 %v2039, %v2031
    %v2664 = vpack.c.b16 %v2040, %v2032
    %v2665 = vpack.c.b16 %v2041, %v2033
    %v2666 = vpack.c.b16 %v2042, %v2034
    %v2667 = vpack.c.b16 %v2043, %v2035
    %v2668 = vpack.c.b16 %v2052, %v2044
    %v2669 = vpack.c.b16 %v2053, %v2045
    %v2670 = vpack.c.b16 %v2054, %v2046
    %v2671 = vpack.c.b16 %v2055, %v2047
    %v2672 = vpack.c.b16 %v2056, %v2048
    %v2673 = vpack.c.b16 %v2057, %v2049
    %v2674 = vpack.c.b16 %v2058, %v2050
    %v2675 = vpack.c.b16 %v2059, %v2051
    %v2676 = vpack.c.b16 %v2068, %v2060
    %v2677 = vpack.c.b16 %v2069, %v2061
    %v2678 = vpack.c.b16 %v2070, %v2062
    %v2679 = vpack.c.b16 %v2071, %v2063
    %v2680 = vpack.c.b16 %v2072, %v2064
    %v2681 = vpack.c.b16 %v2073, %v2065
    %v2682 = vpack.c.b16 %v2074, %v2066
    %v2683 = vpack.c.b16 %v2075, %v2067
    %v2684 = vpack.c.b16 %v2084, %v2076
    %v2685 = vpack.c.b16 %v2085, %v2077
    %v2686 = vpack.c.b16 %v2086, %v2078
    %v2687 = vpack.c.b16 %v2087, %v2079
    %v2688 = vpack.c.b16 %v2088, %v2080
    %v2689 = vpack.c.b16 %v2089, %v2081
    %v2690 = vpack.c.b16 %v2090, %v2082
    %v2691 = vpack.c.b16 %v2091, %v2083
    %v2692 = vpack.c.b16 %v2100, %v2092
    %v2693 = vpack.c.b16 %v2101, %v2093
    %v2694 = vpack.c.b16 %v2102, %v2094
    %v2695 = vpack.c.b16 %v2103, %v2095
    %v2696 = vpack.c.b16 %v2104, %v2096
    %v2697 = vpack.c.b16 %v2105, %v2097
    %v2698 = vpack.c.b16 %v2106, %v2098
    %v2699 = vpack.c.b16 %v2107, %v2099
    %v2700 = vpack.c.b16 %v2116, %v2108
    %v2701 = vpack.c.b16 %v2117, %v2109
    %v2702 = vpack.c.b16 %v2118, %v2110
    %v2703 = vpack.c.b16 %v2119, %v2111
    %v2704 = vpack.c.b16 %v2120, %v2112
    %v2705 = vpack.c.b16 %v2121, %v2113
    %v2706 = vpack.c.b16 %v2122, %v2114
    %v2707 = vpack.c.b16 %v2123, %v2115
    %v2708 = vpack.c.b16 %v2132, %v2124
    %v2709 = vpack.c.b16 %v2133, %v2125
    %v2710 = vpack.c.b16 %v2134, %v2126
    %v2711 = vpack.c.b16 %v2135, %v2127
    %v2712 = vpack.c.b16 %v2136, %v2128
    %v2713 = vpack.c.b16 %v2137, %v2129
    %v2714 = vpack.c.b16 %v2138, %v2130
    %v2715 = vpack.c.b16 %v2139, %v2131
    %v2716 = vpack.c.b16 %v2148, %v2140
    %v2717 = vpack.c.b16 %v2149, %v2141
    %v2718 = vpack.c.b16 %v2150, %v2142
    %v2719 = vpack.c.b16 %v2151, %v2143
    %v2720 = vpack.c.b16 %v2152, %v2144
    %v2721 = vpack.c.b16 %v2153, %v2145
    %v2722 = vpack.c.b16 %v2154, %v2146
    %v2723 = vpack.c.b16 %v2155, %v2147
    %v2724 = vpack.c.b16 %v2164, %v2156
    %v2725 = vpack.c.b16 %v2165, %v2157
    %v2726 = vpack.c.b16 %v2166, %v2158
    %v2727 = vpack.c.b16 %v2167, %v2159
    %v2728 = vpack.c.b16 %v2168, %v2160
    %v2729 = vpack.c.b16 %v2169, %v2161
    %v2730 = vpack.c.b16 %v2170, %v2162
    %v2731 = vpack.c.b16 %v2171, %v2163
    %v2732 = vpack.c.b16 %v2180, %v2172
    %v2733 = vpack.c.b16 %v2181, %v2173
    %v2734 = vpack.c.b16 %v2182, %v2174
    %v2735 = vpack.c.b16 %v2183, %v2175
    %v2736 = vpack.c.b16 %v2184, %v2176
    %v2737 = vpack.c.b16 %v2185, %v2177
    %v2738 = vpack.c.b16 %v2186, %v2178
    %v2739 = vpack.c.b16 %v2187, %v2179
    %v2740 = vpack.c.b16 %v2196, %v2188
    %v2741 = vpack.c.b16 %v2197, %v2189
    %v2742 = vpack.c.b16 %v2198, %v2190
    %v2743 = vpack.c.b16 %v2199, %v2191
    %v2744 = vpack.c.b16 %v2200, %v2192
    %v2745 = vpack.c.b16 %v2201, %v2193
    %v2746 = vpack.c.b16 %v2202, %v2194
    %v2747 = vpack.c.b16 %v2203, %v2195
    %v2748 = vpack.c.b16 %v2212, %v2204
    %v2749 = vpack.c.b16 %v2213, %v2205
    %v2750 = vpack.c.b16 %v2214, %v2206
    %v2751 = vpack.c.b16 %v2215, %v2207
    %v2752 = vpack.c.b16 %v2216, %v2208
    %v2753 = vpack.c.b16 %v2217, %v2209
    %v2754 = vpack.c.b16 %v2218, %v2210
    %v2755 = vpack.c.b16 %v2219, %v2211
    %v2756 = vpack.c.b16 %v2228, %v2220
    %v2757 = vpack.c.b16 %v2229, %v2221
    %v2758 = vpack.c.b16 %v2230, %v2222
    %v2759 = vpack.c.b16 %v2231, %v2223
    %v2760 = vpack.c.b16 %v2232, %v2224
    %v2761 = vpack.c.b16 %v2233, %v2225
    %v2762 = vpack.c.b16 %v2234, %v2226
    %v2763 = vpack.c.b16 %v2235, %v2227
    %v2764 = vpack.c.b16 %v2244, %v2236
    %v2765 = vpack.c.b16 %v2245, %v2237
    %v2766 = vpack.c.b16 %v2246, %v2238
    %v2767 = vpack.c.b16 %v2247, %v2239
    %v2768 = vpack.c.b16 %v2248, %v2240
    %v2769 = vpack.c.b16 %v2249, %v2241
    %v2770 = vpack.c.b16 %v2250, %v2242
    %v2771 = vpack.c.b16 %v2251, %v2243
    %v2772 = vpack.c.b16 %v2260, %v2252
    %v2773 = vpack.c.b16 %v2261, %v2253
    %v2774 = vpack.c.b16 %v2262, %v2254
    %v2775 = vpack.c.b16 %v2263, %v2255
    %v2776 = vpack.c.b16 %v2264, %v2256
    %v2777 = vpack.c.b16 %v2265, %v2257
    %v2778 = vpack.c.b16 %v2266, %v2258
    %v2779 = vpack.c.b16 %v2267, %v2259
    %3292 = vmatprep.subr.bf16.mxu0 %v2325
    %3293 = vmatpush1.bf16.msra.mxu0 %v2324
    %3294 = vmatprep.subr.bf16.mxu0 %v2317
    %3295 = vmatpush1.bf16.msra.mxu0 %v2316
    %3296 = vmatprep.subr.bf16.mxu0 %v2309
    %3297 = vmatpush1.bf16.msra.mxu0 %v2308
    %3298 = vmatprep.subr.bf16.mxu0 %v2301
    %3299 = vmatpush1.bf16.msra.mxu0 %v2300
    %3300 = vmatprep.subr.bf16.mxu0 %v2293
    %3301 = vmatpush1.bf16.msra.mxu0 %v2292
    %3302 = vmatprep.subr.bf16.mxu0 %v2285
    %3303 = vmatpush1.bf16.msra.mxu0 %v2284
    %3304 = vmatprep.subr.bf16.mxu0 %v2277
    %3305 = vmatpush1.bf16.msra.mxu0 %v2276
    %3306 = vmatprep.subr.bf16.mxu0 %v2269
    %3307 = vmatpush1.bf16.msra.mxu0 %v2268
    %3308 = vmatprep.subr.bf16.mxu0 %v2389
    %3309 = vmatpush2.bf16.msra.mxu0 %v2388
    %3310 = vmatprep.subr.bf16.mxu0 %v2381
    %3311 = vmatpush2.bf16.msra.mxu0 %v2380
    %3312 = vmatprep.subr.bf16.mxu0 %v2373
    %3313 = vmatpush2.bf16.msra.mxu0 %v2372
    %3314 = vmatprep.subr.bf16.mxu0 %v2365
    %3315 = vmatpush2.bf16.msra.mxu0 %v2364
    %3316 = vmatprep.subr.bf16.mxu0 %v2357
    %3317 = vmatpush2.bf16.msra.mxu0 %v2356
    %3318 = vmatprep.subr.bf16.mxu0 %v2349
    %3319 = vmatpush2.bf16.msra.mxu0 %v2348
    %3320 = vmatprep.subr.bf16.mxu0 %v2341
    %3321 = vmatpush2.bf16.msra.mxu0 %v2340
    %3322 = vmatprep.subr.bf16.mxu0 %v2333
    %3323 = vmatpush2.bf16.msra.mxu0 %v2332
    %3324 = vmatprep.mubr.bf16.mxu0 %v717
    %3325 = vmatmul.mubr.bf16.gmra.mxu0 %v716
    %v3326 = vpop.f32.mrf.mxu0
    %v3327 = vadd.f32 %v667, %v3326
    %v3328 = vpop.f32.mrf.mxu0
    %v3329 = vadd.f32 %v671, %v3328
    %v3330 = vpop.f32.mrf.mxu0
    %v3331 = vpop.f32.mrf.mxu0
    %3332 = vdwg.mxu0
    %3333 = vmatprep.subr.bf16.mxu0 %v2453
    %3334 = vmatpush1.bf16.msra.mxu0 %v2452
    %3335 = vmatprep.subr.bf16.mxu0 %v2445
    %3336 = vmatpush1.bf16.msra.mxu0 %v2444
    %3337 = vmatprep.subr.bf16.mxu0 %v2437
    %3338 = vmatpush1.bf16.msra.mxu0 %v2436
    %3339 = vmatprep.subr.bf16.mxu0 %v2429
    %3340 = vmatpush1.bf16.msra.mxu0 %v2428
    %3341 = vmatprep.subr.bf16.mxu0 %v2421
    %3342 = vmatpush1.bf16.msra.mxu0 %v2420
    %3343 = vmatprep.subr.bf16.mxu0 %v2413
    %3344 = vmatpush1.bf16.msra.mxu0 %v2412
    %3345 = vmatprep.subr.bf16.mxu0 %v2405
    %3346 = vmatpush1.bf16.msra.mxu0 %v2404
    %3347 = vmatprep.subr.bf16.mxu0 %v2397
    %3348 = vmatpush1.bf16.msra.mxu0 %v2396
    %3349 = vmatprep.subr.bf16.mxu0 %v2517
    %3350 = vmatpush2.bf16.msra.mxu0 %v2516
    %3351 = vmatprep.subr.bf16.mxu0 %v2509
    %3352 = vmatpush2.bf16.msra.mxu0 %v2508
    %3353 = vmatprep.subr.bf16.mxu0 %v2501
    %3354 = vmatpush2.bf16.msra.mxu0 %v2500
    %3355 = vmatprep.subr.bf16.mxu0 %v2493
    %3356 = vmatpush2.bf16.msra.mxu0 %v2492
    %3357 = vmatprep.subr.bf16.mxu0 %v2485
    %3358 = vmatpush2.bf16.msra.mxu0 %v2484
    %3359 = vmatprep.subr.bf16.mxu0 %v2477
    %3360 = vmatpush2.bf16.msra.mxu0 %v2476
    %3361 = vmatprep.subr.bf16.mxu0 %v2469
    %3362 = vmatpush2.bf16.msra.mxu0 %v2468
    %3363 = vmatprep.subr.bf16.mxu0 %v2461
    %3364 = vmatpush2.bf16.msra.mxu0 %v2460
    %3365 = vmatprep.mubr.bf16.mxu0 %v719
    %3366 = vmatmul.mubr.bf16.gmra.mxu0 %v718
    %v3367 = vpop.f32.mrf.mxu0
    %v3368 = vadd.f32 %v3327, %v3367
    %v3369 = vpop.f32.mrf.mxu0
    %v3370 = vadd.f32 %v3329, %v3369
    %v3371 = vpop.f32.mrf.mxu0
    %v3372 = vpop.f32.mrf.mxu0
    %3373 = vdwg.mxu0
    %3374 = vmatprep.subr.bf16.mxu0 %v2581
    %3375 = vmatpush1.bf16.msra.mxu0 %v2580
    %3376 = vmatprep.subr.bf16.mxu0 %v2573
    %3377 = vmatpush1.bf16.msra.mxu0 %v2572
    %3378 = vmatprep.subr.bf16.mxu0 %v2565
    %3379 = vmatpush1.bf16.msra.mxu0 %v2564
    %3380 = vmatprep.subr.bf16.mxu0 %v2557
    %3381 = vmatpush1.bf16.msra.mxu0 %v2556
    %3382 = vmatprep.subr.bf16.mxu0 %v2549
    %3383 = vmatpush1.bf16.msra.mxu0 %v2548
    %3384 = vmatprep.subr.bf16.mxu0 %v2541
    %3385 = vmatpush1.bf16.msra.mxu0 %v2540
    %3386 = vmatprep.subr.bf16.mxu0 %v2533
    %3387 = vmatpush1.bf16.msra.mxu0 %v2532
    %3388 = vmatprep.subr.bf16.mxu0 %v2525
    %3389 = vmatpush1.bf16.msra.mxu0 %v2524
    %3390 = vmatprep.subr.bf16.mxu0 %v2645
    %3391 = vmatpush2.bf16.msra.mxu0 %v2644
    %3392 = vmatprep.subr.bf16.mxu0 %v2637
    %3393 = vmatpush2.bf16.msra.mxu0 %v2636
    %3394 = vmatprep.subr.bf16.mxu0 %v2629
    %3395 = vmatpush2.bf16.msra.mxu0 %v2628
    %3396 = vmatprep.subr.bf16.mxu0 %v2621
    %3397 = vmatpush2.bf16.msra.mxu0 %v2620
    %3398 = vmatprep.subr.bf16.mxu0 %v2613
    %3399 = vmatpush2.bf16.msra.mxu0 %v2612
    %3400 = vmatprep.subr.bf16.mxu0 %v2605
    %3401 = vmatpush2.bf16.msra.mxu0 %v2604
    %3402 = vmatprep.subr.bf16.mxu0 %v2597
    %3403 = vmatpush2.bf16.msra.mxu0 %v2596
    %3404 = vmatprep.subr.bf16.mxu0 %v2589
    %3405 = vmatpush2.bf16.msra.mxu0 %v2588
    %3406 = vmatprep.mubr.bf16.mxu0 %v721
    %3407 = vmatmul.mubr.bf16.gmra.mxu0 %v720
    %v3408 = vpop.f32.mrf.mxu0
    %v3409 = vadd.f32 %v3368, %v3408
    %v3410 = vpop.f32.mrf.mxu0
    %v3411 = vadd.f32 %v3370, %v3410
    %v3412 = vpop.f32.mrf.mxu0
    %v3413 = vpop.f32.mrf.mxu0
    %3414 = vdwg.mxu0
    %3415 = vmatprep.subr.bf16.mxu0 %v2709
    %3416 = vmatpush1.bf16.msra.mxu0 %v2708
    %3417 = vmatprep.subr.bf16.mxu0 %v2701
    %3418 = vmatpush1.bf16.msra.mxu0 %v2700
    %3419 = vmatprep.subr.bf16.mxu0 %v2693
    %3420 = vmatpush1.bf16.msra.mxu0 %v2692
    %3421 = vmatprep.subr.bf16.mxu0 %v2685
    %3422 = vmatpush1.bf16.msra.mxu0 %v2684
    %3423 = vmatprep.subr.bf16.mxu0 %v2677
    %3424 = vmatpush1.bf16.msra.mxu0 %v2676
    %3425 = vmatprep.subr.bf16.mxu0 %v2669
    %3426 = vmatpush1.bf16.msra.mxu0 %v2668
    %3427 = vmatprep.subr.bf16.mxu0 %v2661
    %3428 = vmatpush1.bf16.msra.mxu0 %v2660
    %3429 = vmatprep.subr.bf16.mxu0 %v2653
    %3430 = vmatpush1.bf16.msra.mxu0 %v2652
    %3431 = vmatprep.subr.bf16.mxu0 %v2773
    %3432 = vmatpush2.bf16.msra.mxu0 %v2772
    %3433 = vmatprep.subr.bf16.mxu0 %v2765
    %3434 = vmatpush2.bf16.msra.mxu0 %v2764
    %3435 = vmatprep.subr.bf16.mxu0 %v2757
    %3436 = vmatpush2.bf16.msra.mxu0 %v2756
    %3437 = vmatprep.subr.bf16.mxu0 %v2749
    %3438 = vmatpush2.bf16.msra.mxu0 %v2748
    %3439 = vmatprep.subr.bf16.mxu0 %v2741
    %3440 = vmatpush2.bf16.msra.mxu0 %v2740
    %3441 = vmatprep.subr.bf16.mxu0 %v2733
    %3442 = vmatpush2.bf16.msra.mxu0 %v2732
    %3443 = vmatprep.subr.bf16.mxu0 %v2725
    %3444 = vmatpush2.bf16.msra.mxu0 %v2724
    %3445 = vmatprep.subr.bf16.mxu0 %v2717
    %3446 = vmatpush2.bf16.msra.mxu0 %v2716
    %3447 = vmatprep.mubr.bf16.mxu0 %v723
    %3448 = vmatmul.mubr.bf16.gmra.mxu0 %v722
    %v3449 = vpop.f32.mrf.mxu0
    %v3450 = vadd.f32 %v3409, %v3449
    %v3451 = vpop.f32.mrf.mxu0
    %v3452 = vadd.f32 %v3411, %v3451
    %v3453 = vpop.f32.mrf.mxu0
    %v3454 = vpop.f32.mrf.mxu0
    %3455 = vdwg.mxu0
    %3456 = vmatprep.subr.bf16.mxu0 %v2327
    %3457 = vmatpush1.bf16.msra.mxu0 %v2326
    %3458 = vmatprep.subr.bf16.mxu0 %v2319
    %3459 = vmatpush1.bf16.msra.mxu0 %v2318
    %3460 = vmatprep.subr.bf16.mxu0 %v2311
    %3461 = vmatpush1.bf16.msra.mxu0 %v2310
    %3462 = vmatprep.subr.bf16.mxu0 %v2303
    %3463 = vmatpush1.bf16.msra.mxu0 %v2302
    %3464 = vmatprep.subr.bf16.mxu0 %v2295
    %3465 = vmatpush1.bf16.msra.mxu0 %v2294
    %3466 = vmatprep.subr.bf16.mxu0 %v2287
    %3467 = vmatpush1.bf16.msra.mxu0 %v2286
    %3468 = vmatprep.subr.bf16.mxu0 %v2279
    %3469 = vmatpush1.bf16.msra.mxu0 %v2278
    %3470 = vmatprep.subr.bf16.mxu0 %v2271
    %3471 = vmatpush1.bf16.msra.mxu0 %v2270
    %3472 = vmatprep.subr.bf16.mxu0 %v2391
    %3473 = vmatpush2.bf16.msra.mxu0 %v2390
    %3474 = vmatprep.subr.bf16.mxu0 %v2383
    %3475 = vmatpush2.bf16.msra.mxu0 %v2382
    %3476 = vmatprep.subr.bf16.mxu0 %v2375
    %3477 = vmatpush2.bf16.msra.mxu0 %v2374
    %3478 = vmatprep.subr.bf16.mxu0 %v2367
    %3479 = vmatpush2.bf16.msra.mxu0 %v2366
    %3480 = vmatprep.subr.bf16.mxu0 %v2359
    %3481 = vmatpush2.bf16.msra.mxu0 %v2358
    %3482 = vmatprep.subr.bf16.mxu0 %v2351
    %3483 = vmatpush2.bf16.msra.mxu0 %v2350
    %3484 = vmatprep.subr.bf16.mxu0 %v2343
    %3485 = vmatpush2.bf16.msra.mxu0 %v2342
    %3486 = vmatprep.subr.bf16.mxu0 %v2335
    %3487 = vmatpush2.bf16.msra.mxu0 %v2334
    %3488 = vmatprep.mubr.bf16.mxu0 %v717
    %3489 = vmatmul.mubr.bf16.gmra.mxu0 %v716
    %v3490 = vpop.f32.mrf.mxu0
    %v3491 = vadd.f32 %v675, %v3490
    %v3492 = vpop.f32.mrf.mxu0
    %v3493 = vadd.f32 %v679, %v3492
    %v3494 = vpop.f32.mrf.mxu0
    %v3495 = vpop.f32.mrf.mxu0
    %3496 = vdwg.mxu0
    %3497 = vmatprep.subr.bf16.mxu0 %v2455
    %3498 = vmatpush1.bf16.msra.mxu0 %v2454
    %3499 = vmatprep.subr.bf16.mxu0 %v2447
    %3500 = vmatpush1.bf16.msra.mxu0 %v2446
    %3501 = vmatprep.subr.bf16.mxu0 %v2439
    %3502 = vmatpush1.bf16.msra.mxu0 %v2438
    %3503 = vmatprep.subr.bf16.mxu0 %v2431
    %3504 = vmatpush1.bf16.msra.mxu0 %v2430
    %3505 = vmatprep.subr.bf16.mxu0 %v2423
    %3506 = vmatpush1.bf16.msra.mxu0 %v2422
    %3507 = vmatprep.subr.bf16.mxu0 %v2415
    %3508 = vmatpush1.bf16.msra.mxu0 %v2414
    %3509 = vmatprep.subr.bf16.mxu0 %v2407
    %3510 = vmatpush1.bf16.msra.mxu0 %v2406
    %3511 = vmatprep.subr.bf16.mxu0 %v2399
    %3512 = vmatpush1.bf16.msra.mxu0 %v2398
    %3513 = vmatprep.subr.bf16.mxu0 %v2519
    %3514 = vmatpush2.bf16.msra.mxu0 %v2518
    %3515 = vmatprep.subr.bf16.mxu0 %v2511
    %3516 = vmatpush2.bf16.msra.mxu0 %v2510
    %3517 = vmatprep.subr.bf16.mxu0 %v2503
    %3518 = vmatpush2.bf16.msra.mxu0 %v2502
    %3519 = vmatprep.subr.bf16.mxu0 %v2495
    %3520 = vmatpush2.bf16.msra.mxu0 %v2494
    %3521 = vmatprep.subr.bf16.mxu0 %v2487
    %3522 = vmatpush2.bf16.msra.mxu0 %v2486
    %3523 = vmatprep.subr.bf16.mxu0 %v2479
    %3524 = vmatpush2.bf16.msra.mxu0 %v2478
    %3525 = vmatprep.subr.bf16.mxu0 %v2471
    %3526 = vmatpush2.bf16.msra.mxu0 %v2470
    %3527 = vmatprep.subr.bf16.mxu0 %v2463
    %3528 = vmatpush2.bf16.msra.mxu0 %v2462
    %3529 = vmatprep.mubr.bf16.mxu0 %v719
    %3530 = vmatmul.mubr.bf16.gmra.mxu0 %v718
    %v3531 = vpop.f32.mrf.mxu0
    %v3532 = vadd.f32 %v3491, %v3531
    %v3533 = vpop.f32.mrf.mxu0
    %v3534 = vadd.f32 %v3493, %v3533
    %v3535 = vpop.f32.mrf.mxu0
    %v3536 = vpop.f32.mrf.mxu0
    %3537 = vdwg.mxu0
    %3538 = vmatprep.subr.bf16.mxu0 %v2583
    %3539 = vmatpush1.bf16.msra.mxu0 %v2582
    %3540 = vmatprep.subr.bf16.mxu0 %v2575
    %3541 = vmatpush1.bf16.msra.mxu0 %v2574
    %3542 = vmatprep.subr.bf16.mxu0 %v2567
    %3543 = vmatpush1.bf16.msra.mxu0 %v2566
    %3544 = vmatprep.subr.bf16.mxu0 %v2559
    %3545 = vmatpush1.bf16.msra.mxu0 %v2558
    %3546 = vmatprep.subr.bf16.mxu0 %v2551
    %3547 = vmatpush1.bf16.msra.mxu0 %v2550
    %3548 = vmatprep.subr.bf16.mxu0 %v2543
    %3549 = vmatpush1.bf16.msra.mxu0 %v2542
    %3550 = vmatprep.subr.bf16.mxu0 %v2535
    %3551 = vmatpush1.bf16.msra.mxu0 %v2534
    %3552 = vmatprep.subr.bf16.mxu0 %v2527
    %3553 = vmatpush1.bf16.msra.mxu0 %v2526
    %3554 = vmatprep.subr.bf16.mxu0 %v2647
    %3555 = vmatpush2.bf16.msra.mxu0 %v2646
    %3556 = vmatprep.subr.bf16.mxu0 %v2639
    %3557 = vmatpush2.bf16.msra.mxu0 %v2638
    %3558 = vmatprep.subr.bf16.mxu0 %v2631
    %3559 = vmatpush2.bf16.msra.mxu0 %v2630
    %3560 = vmatprep.subr.bf16.mxu0 %v2623
    %3561 = vmatpush2.bf16.msra.mxu0 %v2622
    %3562 = vmatprep.subr.bf16.mxu0 %v2615
    %3563 = vmatpush2.bf16.msra.mxu0 %v2614
    %3564 = vmatprep.subr.bf16.mxu0 %v2607
    %3565 = vmatpush2.bf16.msra.mxu0 %v2606
    %3566 = vmatprep.subr.bf16.mxu0 %v2599
    %3567 = vmatpush2.bf16.msra.mxu0 %v2598
    %3568 = vmatprep.subr.bf16.mxu0 %v2591
    %3569 = vmatpush2.bf16.msra.mxu0 %v2590
    %3570 = vmatprep.mubr.bf16.mxu0 %v721
    %3571 = vmatmul.mubr.bf16.gmra.mxu0 %v720
    %v3572 = vpop.f32.mrf.mxu0
    %v3573 = vadd.f32 %v3532, %v3572
    %v3574 = vpop.f32.mrf.mxu0
    %v3575 = vadd.f32 %v3534, %v3574
    %v3576 = vpop.f32.mrf.mxu0
    %v3577 = vpop.f32.mrf.mxu0
    %3578 = vdwg.mxu0
    %3579 = vmatprep.subr.bf16.mxu0 %v2711
    %3580 = vmatpush1.bf16.msra.mxu0 %v2710
    %3581 = vmatprep.subr.bf16.mxu0 %v2703
    %3582 = vmatpush1.bf16.msra.mxu0 %v2702
    %3583 = vmatprep.subr.bf16.mxu0 %v2695
    %3584 = vmatpush1.bf16.msra.mxu0 %v2694
    %3585 = vmatprep.subr.bf16.mxu0 %v2687
    %3586 = vmatpush1.bf16.msra.mxu0 %v2686
    %3587 = vmatprep.subr.bf16.mxu0 %v2679
    %3588 = vmatpush1.bf16.msra.mxu0 %v2678
    %3589 = vmatprep.subr.bf16.mxu0 %v2671
    %3590 = vmatpush1.bf16.msra.mxu0 %v2670
    %3591 = vmatprep.subr.bf16.mxu0 %v2663
    %3592 = vmatpush1.bf16.msra.mxu0 %v2662
    %3593 = vmatprep.subr.bf16.mxu0 %v2655
    %3594 = vmatpush1.bf16.msra.mxu0 %v2654
    %3595 = vmatprep.subr.bf16.mxu0 %v2775
    %3596 = vmatpush2.bf16.msra.mxu0 %v2774
    %3597 = vmatprep.subr.bf16.mxu0 %v2767
    %3598 = vmatpush2.bf16.msra.mxu0 %v2766
    %3599 = vmatprep.subr.bf16.mxu0 %v2759
    %3600 = vmatpush2.bf16.msra.mxu0 %v2758
    %3601 = vmatprep.subr.bf16.mxu0 %v2751
    %3602 = vmatpush2.bf16.msra.mxu0 %v2750
    %3603 = vmatprep.subr.bf16.mxu0 %v2743
    %3604 = vmatpush2.bf16.msra.mxu0 %v2742
    %3605 = vmatprep.subr.bf16.mxu0 %v2735
    %3606 = vmatpush2.bf16.msra.mxu0 %v2734
    %3607 = vmatprep.subr.bf16.mxu0 %v2727
    %3608 = vmatpush2.bf16.msra.mxu0 %v2726
    %3609 = vmatprep.subr.bf16.mxu0 %v2719
    %3610 = vmatpush2.bf16.msra.mxu0 %v2718
    %3611 = vmatprep.mubr.bf16.mxu0 %v723
    %3612 = vmatmul.mubr.bf16.gmra.mxu0 %v722
    %v3613 = vpop.f32.mrf.mxu0
    %v3614 = vadd.f32 %v3573, %v3613
    %v3615 = vpop.f32.mrf.mxu0
    %v3616 = vadd.f32 %v3575, %v3615
    %v3617 = vpop.f32.mrf.mxu0
    %v3618 = vpop.f32.mrf.mxu0
    %3619 = vdwg.mxu0
    %3620 = vmatprep.subr.bf16.mxu0 %v2329
    %3621 = vmatpush1.bf16.msra.mxu0 %v2328
    %3622 = vmatprep.subr.bf16.mxu0 %v2321
    %3623 = vmatpush1.bf16.msra.mxu0 %v2320
    %3624 = vmatprep.subr.bf16.mxu0 %v2313
    %3625 = vmatpush1.bf16.msra.mxu0 %v2312
    %3626 = vmatprep.subr.bf16.mxu0 %v2305
    %3627 = vmatpush1.bf16.msra.mxu0 %v2304
    %3628 = vmatprep.subr.bf16.mxu0 %v2297
    %3629 = vmatpush1.bf16.msra.mxu0 %v2296
    %3630 = vmatprep.subr.bf16.mxu0 %v2289
    %3631 = vmatpush1.bf16.msra.mxu0 %v2288
    %3632 = vmatprep.subr.bf16.mxu0 %v2281
    %3633 = vmatpush1.bf16.msra.mxu0 %v2280
    %3634 = vmatprep.subr.bf16.mxu0 %v2273
    %3635 = vmatpush1.bf16.msra.mxu0 %v2272
    %3636 = vmatprep.subr.bf16.mxu0 %v2393
    %3637 = vmatpush2.bf16.msra.mxu0 %v2392
    %3638 = vmatprep.subr.bf16.mxu0 %v2385
    %3639 = vmatpush2.bf16.msra.mxu0 %v2384
    %3640 = vmatprep.subr.bf16.mxu0 %v2377
    %3641 = vmatpush2.bf16.msra.mxu0 %v2376
    %3642 = vmatprep.subr.bf16.mxu0 %v2369
    %3643 = vmatpush2.bf16.msra.mxu0 %v2368
    %3644 = vmatprep.subr.bf16.mxu0 %v2361
    %3645 = vmatpush2.bf16.msra.mxu0 %v2360
    %3646 = vmatprep.subr.bf16.mxu0 %v2353
    %3647 = vmatpush2.bf16.msra.mxu0 %v2352
    %3648 = vmatprep.subr.bf16.mxu0 %v2345
    %3649 = vmatpush2.bf16.msra.mxu0 %v2344
    %3650 = vmatprep.subr.bf16.mxu0 %v2337
    %3651 = vmatpush2.bf16.msra.mxu0 %v2336
    %3652 = vmatprep.mubr.bf16.mxu0 %v717
    %3653 = vmatmul.mubr.bf16.gmra.mxu0 %v716
    %v3654 = vpop.f32.mrf.mxu0
    %v3655 = vadd.f32 %v683, %v3654
    %v3656 = vpop.f32.mrf.mxu0
    %v3657 = vadd.f32 %v687, %v3656
    %v3658 = vpop.f32.mrf.mxu0
    %v3659 = vpop.f32.mrf.mxu0
    %3660 = vdwg.mxu0
    %3661 = vmatprep.subr.bf16.mxu0 %v2457
    %3662 = vmatpush1.bf16.msra.mxu0 %v2456
    %3663 = vmatprep.subr.bf16.mxu0 %v2449
    %3664 = vmatpush1.bf16.msra.mxu0 %v2448
    %3665 = vmatprep.subr.bf16.mxu0 %v2441
    %3666 = vmatpush1.bf16.msra.mxu0 %v2440
    %3667 = vmatprep.subr.bf16.mxu0 %v2433
    %3668 = vmatpush1.bf16.msra.mxu0 %v2432
    %3669 = vmatprep.subr.bf16.mxu0 %v2425
    %3670 = vmatpush1.bf16.msra.mxu0 %v2424
    %3671 = vmatprep.subr.bf16.mxu0 %v2417
    %3672 = vmatpush1.bf16.msra.mxu0 %v2416
    %3673 = vmatprep.subr.bf16.mxu0 %v2409
    %3674 = vmatpush1.bf16.msra.mxu0 %v2408
    %3675 = vmatprep.subr.bf16.mxu0 %v2401
    %3676 = vmatpush1.bf16.msra.mxu0 %v2400
    %3677 = vmatprep.subr.bf16.mxu0 %v2521
    %3678 = vmatpush2.bf16.msra.mxu0 %v2520
    %3679 = vmatprep.subr.bf16.mxu0 %v2513
    %3680 = vmatpush2.bf16.msra.mxu0 %v2512
    %3681 = vmatprep.subr.bf16.mxu0 %v2505
    %3682 = vmatpush2.bf16.msra.mxu0 %v2504
    %3683 = vmatprep.subr.bf16.mxu0 %v2497
    %3684 = vmatpush2.bf16.msra.mxu0 %v2496
    %3685 = vmatprep.subr.bf16.mxu0 %v2489
    %3686 = vmatpush2.bf16.msra.mxu0 %v2488
    %3687 = vmatprep.subr.bf16.mxu0 %v2481
    %3688 = vmatpush2.bf16.msra.mxu0 %v2480
    %3689 = vmatprep.subr.bf16.mxu0 %v2473
    %3690 = vmatpush2.bf16.msra.mxu0 %v2472
    %3691 = vmatprep.subr.bf16.mxu0 %v2465
    %3692 = vmatpush2.bf16.msra.mxu0 %v2464
    %3693 = vmatprep.mubr.bf16.mxu0 %v719
    %3694 = vmatmul.mubr.bf16.gmra.mxu0 %v718
    %v3695 = vpop.f32.mrf.mxu0
    %v3696 = vadd.f32 %v3655, %v3695
    %v3697 = vpop.f32.mrf.mxu0
    %v3698 = vadd.f32 %v3657, %v3697
    %v3699 = vpop.f32.mrf.mxu0
    %v3700 = vpop.f32.mrf.mxu0
    %3701 = vdwg.mxu0
    %3702 = vmatprep.subr.bf16.mxu0 %v2585
    %3703 = vmatpush1.bf16.msra.mxu0 %v2584
    %3704 = vmatprep.subr.bf16.mxu0 %v2577
    %3705 = vmatpush1.bf16.msra.mxu0 %v2576
    %3706 = vmatprep.subr.bf16.mxu0 %v2569
    %3707 = vmatpush1.bf16.msra.mxu0 %v2568
    %3708 = vmatprep.subr.bf16.mxu0 %v2561
    %3709 = vmatpush1.bf16.msra.mxu0 %v2560
    %3710 = vmatprep.subr.bf16.mxu0 %v2553
    %3711 = vmatpush1.bf16.msra.mxu0 %v2552
    %3712 = vmatprep.subr.bf16.mxu0 %v2545
    %3713 = vmatpush1.bf16.msra.mxu0 %v2544
    %3714 = vmatprep.subr.bf16.mxu0 %v2537
    %3715 = vmatpush1.bf16.msra.mxu0 %v2536
    %3716 = vmatprep.subr.bf16.mxu0 %v2529
    %3717 = vmatpush1.bf16.msra.mxu0 %v2528
    %3718 = vmatprep.subr.bf16.mxu0 %v2649
    %3719 = vmatpush2.bf16.msra.mxu0 %v2648
    %3720 = vmatprep.subr.bf16.mxu0 %v2641
    %3721 = vmatpush2.bf16.msra.mxu0 %v2640
    %3722 = vmatprep.subr.bf16.mxu0 %v2633
    %3723 = vmatpush2.bf16.msra.mxu0 %v2632
    %3724 = vmatprep.subr.bf16.mxu0 %v2625
    %3725 = vmatpush2.bf16.msra.mxu0 %v2624
    %3726 = vmatprep.subr.bf16.mxu0 %v2617
    %3727 = vmatpush2.bf16.msra.mxu0 %v2616
    %3728 = vmatprep.subr.bf16.mxu0 %v2609
    %3729 = vmatpush2.bf16.msra.mxu0 %v2608
    %3730 = vmatprep.subr.bf16.mxu0 %v2601
    %3731 = vmatpush2.bf16.msra.mxu0 %v2600
    %3732 = vmatprep.subr.bf16.mxu0 %v2593
    %3733 = vmatpush2.bf16.msra.mxu0 %v2592
    %3734 = vmatprep.mubr.bf16.mxu0 %v721
    %3735 = vmatmul.mubr.bf16.gmra.mxu0 %v720
    %v3736 = vpop.f32.mrf.mxu0
    %v3737 = vadd.f32 %v3696, %v3736
    %v3738 = vpop.f32.mrf.mxu0
    %v3739 = vadd.f32 %v3698, %v3738
    %v3740 = vpop.f32.mrf.mxu0
    %v3741 = vpop.f32.mrf.mxu0
    %3742 = vdwg.mxu0
    %3743 = vmatprep.subr.bf16.mxu0 %v2713
    %3744 = vmatpush1.bf16.msra.mxu0 %v2712
    %3745 = vmatprep.subr.bf16.mxu0 %v2705
    %3746 = vmatpush1.bf16.msra.mxu0 %v2704
    %3747 = vmatprep.subr.bf16.mxu0 %v2697
    %3748 = vmatpush1.bf16.msra.mxu0 %v2696
    %3749 = vmatprep.subr.bf16.mxu0 %v2689
    %3750 = vmatpush1.bf16.msra.mxu0 %v2688
    %3751 = vmatprep.subr.bf16.mxu0 %v2681
    %3752 = vmatpush1.bf16.msra.mxu0 %v2680
    %3753 = vmatprep.subr.bf16.mxu0 %v2673
    %3754 = vmatpush1.bf16.msra.mxu0 %v2672
    %3755 = vmatprep.subr.bf16.mxu0 %v2665
    %3756 = vmatpush1.bf16.msra.mxu0 %v2664
    %3757 = vmatprep.subr.bf16.mxu0 %v2657
    %3758 = vmatpush1.bf16.msra.mxu0 %v2656
    %3759 = vmatprep.subr.bf16.mxu0 %v2777
    %3760 = vmatpush2.bf16.msra.mxu0 %v2776
    %3761 = vmatprep.subr.bf16.mxu0 %v2769
    %3762 = vmatpush2.bf16.msra.mxu0 %v2768
    %3763 = vmatprep.subr.bf16.mxu0 %v2761
    %3764 = vmatpush2.bf16.msra.mxu0 %v2760
    %3765 = vmatprep.subr.bf16.mxu0 %v2753
    %3766 = vmatpush2.bf16.msra.mxu0 %v2752
    %3767 = vmatprep.subr.bf16.mxu0 %v2745
    %3768 = vmatpush2.bf16.msra.mxu0 %v2744
    %3769 = vmatprep.subr.bf16.mxu0 %v2737
    %3770 = vmatpush2.bf16.msra.mxu0 %v2736
    %3771 = vmatprep.subr.bf16.mxu0 %v2729
    %3772 = vmatpush2.bf16.msra.mxu0 %v2728
    %3773 = vmatprep.subr.bf16.mxu0 %v2721
    %3774 = vmatpush2.bf16.msra.mxu0 %v2720
    %3775 = vmatprep.mubr.bf16.mxu0 %v723
    %3776 = vmatmul.mubr.bf16.gmra.mxu0 %v722
    %v3777 = vpop.f32.mrf.mxu0
    %v3778 = vadd.f32 %v3737, %v3777
    %v3779 = vpop.f32.mrf.mxu0
    %v3780 = vadd.f32 %v3739, %v3779
    %v3781 = vpop.f32.mrf.mxu0
    %v3782 = vpop.f32.mrf.mxu0
    %3783 = vdwg.mxu0
    %3784 = vmatprep.subr.bf16.mxu0 %v2331
    %3785 = vmatpush1.bf16.msra.mxu0 %v2330
    %3786 = vmatprep.subr.bf16.mxu0 %v2323
    %3787 = vmatpush1.bf16.msra.mxu0 %v2322
    %3788 = vmatprep.subr.bf16.mxu0 %v2315
    %3789 = vmatpush1.bf16.msra.mxu0 %v2314
    %3790 = vmatprep.subr.bf16.mxu0 %v2307
    %3791 = vmatpush1.bf16.msra.mxu0 %v2306
    %3792 = vmatprep.subr.bf16.mxu0 %v2299
    %3793 = vmatpush1.bf16.msra.mxu0 %v2298
    %3794 = vmatprep.subr.bf16.mxu0 %v2291
    %3795 = vmatpush1.bf16.msra.mxu0 %v2290
    %3796 = vmatprep.subr.bf16.mxu0 %v2283
    %3797 = vmatpush1.bf16.msra.mxu0 %v2282
    %3798 = vmatprep.subr.bf16.mxu0 %v2275
    %3799 = vmatpush1.bf16.msra.mxu0 %v2274
    %3800 = vmatprep.subr.bf16.mxu0 %v2395
    %3801 = vmatpush2.bf16.msra.mxu0 %v2394
    %3802 = vmatprep.subr.bf16.mxu0 %v2387
    %3803 = vmatpush2.bf16.msra.mxu0 %v2386
    %3804 = vmatprep.subr.bf16.mxu0 %v2379
    %3805 = vmatpush2.bf16.msra.mxu0 %v2378
    %3806 = vmatprep.subr.bf16.mxu0 %v2371
    %3807 = vmatpush2.bf16.msra.mxu0 %v2370
    %3808 = vmatprep.subr.bf16.mxu0 %v2363
    %3809 = vmatpush2.bf16.msra.mxu0 %v2362
    %3810 = vmatprep.subr.bf16.mxu0 %v2355
    %3811 = vmatpush2.bf16.msra.mxu0 %v2354
    %3812 = vmatprep.subr.bf16.mxu0 %v2347
    %3813 = vmatpush2.bf16.msra.mxu0 %v2346
    %3814 = vmatprep.subr.bf16.mxu0 %v2339
    %3815 = vmatpush2.bf16.msra.mxu0 %v2338
    %3816 = vmatprep.mubr.bf16.mxu0 %v717
    %3817 = vmatmul.mubr.bf16.gmra.mxu0 %v716
    %v3818 = vpop.f32.mrf.mxu0
    %v3819 = vadd.f32 %v691, %v3818
    %v3820 = vpop.f32.mrf.mxu0
    %v3821 = vadd.f32 %v695, %v3820
    %v3822 = vpop.f32.mrf.mxu0
    %v3823 = vpop.f32.mrf.mxu0
    %3824 = vdwg.mxu0
    %3825 = vmatprep.subr.bf16.mxu0 %v2459
    %3826 = vmatpush1.bf16.msra.mxu0 %v2458
    %3827 = vmatprep.subr.bf16.mxu0 %v2451
    %3828 = vmatpush1.bf16.msra.mxu0 %v2450
    %3829 = vmatprep.subr.bf16.mxu0 %v2443
    %3830 = vmatpush1.bf16.msra.mxu0 %v2442
    %3831 = vmatprep.subr.bf16.mxu0 %v2435
    %3832 = vmatpush1.bf16.msra.mxu0 %v2434
    %3833 = vmatprep.subr.bf16.mxu0 %v2427
    %3834 = vmatpush1.bf16.msra.mxu0 %v2426
    %3835 = vmatprep.subr.bf16.mxu0 %v2419
    %3836 = vmatpush1.bf16.msra.mxu0 %v2418
    %3837 = vmatprep.subr.bf16.mxu0 %v2411
    %3838 = vmatpush1.bf16.msra.mxu0 %v2410
    %3839 = vmatprep.subr.bf16.mxu0 %v2403
    %3840 = vmatpush1.bf16.msra.mxu0 %v2402
    %3841 = vmatprep.subr.bf16.mxu0 %v2523
    %3842 = vmatpush2.bf16.msra.mxu0 %v2522
    %3843 = vmatprep.subr.bf16.mxu0 %v2515
    %3844 = vmatpush2.bf16.msra.mxu0 %v2514
    %3845 = vmatprep.subr.bf16.mxu0 %v2507
    %3846 = vmatpush2.bf16.msra.mxu0 %v2506
    %3847 = vmatprep.subr.bf16.mxu0 %v2499
    %3848 = vmatpush2.bf16.msra.mxu0 %v2498
    %3849 = vmatprep.subr.bf16.mxu0 %v2491
    %3850 = vmatpush2.bf16.msra.mxu0 %v2490
    %3851 = vmatprep.subr.bf16.mxu0 %v2483
    %3852 = vmatpush2.bf16.msra.mxu0 %v2482
    %3853 = vmatprep.subr.bf16.mxu0 %v2475
    %3854 = vmatpush2.bf16.msra.mxu0 %v2474
    %3855 = vmatprep.subr.bf16.mxu0 %v2467
    %3856 = vmatpush2.bf16.msra.mxu0 %v2466
    %3857 = vmatprep.mubr.bf16.mxu0 %v719
    %3858 = vmatmul.mubr.bf16.gmra.mxu0 %v718
    %v3859 = vpop.f32.mrf.mxu0
    %v3860 = vadd.f32 %v3819, %v3859
    %v3861 = vpop.f32.mrf.mxu0
    %v3862 = vadd.f32 %v3821, %v3861
    %v3863 = vpop.f32.mrf.mxu0
    %v3864 = vpop.f32.mrf.mxu0
    %3865 = vdwg.mxu0
    %3866 = vmatprep.subr.bf16.mxu0 %v2587
    %3867 = vmatpush1.bf16.msra.mxu0 %v2586
    %3868 = vmatprep.subr.bf16.mxu0 %v2579
    %3869 = vmatpush1.bf16.msra.mxu0 %v2578
    %3870 = vmatprep.subr.bf16.mxu0 %v2571
    %3871 = vmatpush1.bf16.msra.mxu0 %v2570
    %3872 = vmatprep.subr.bf16.mxu0 %v2563
    %3873 = vmatpush1.bf16.msra.mxu0 %v2562
    %3874 = vmatprep.subr.bf16.mxu0 %v2555
    %3875 = vmatpush1.bf16.msra.mxu0 %v2554
    %3876 = vmatprep.subr.bf16.mxu0 %v2547
    %3877 = vmatpush1.bf16.msra.mxu0 %v2546
    %3878 = vmatprep.subr.bf16.mxu0 %v2539
    %3879 = vmatpush1.bf16.msra.mxu0 %v2538
    %3880 = vmatprep.subr.bf16.mxu0 %v2531
    %3881 = vmatpush1.bf16.msra.mxu0 %v2530
    %3882 = vmatprep.subr.bf16.mxu0 %v2651
    %3883 = vmatpush2.bf16.msra.mxu0 %v2650
    %3884 = vmatprep.subr.bf16.mxu0 %v2643
    %3885 = vmatpush2.bf16.msra.mxu0 %v2642
    %3886 = vmatprep.subr.bf16.mxu0 %v2635
    %3887 = vmatpush2.bf16.msra.mxu0 %v2634
    %3888 = vmatprep.subr.bf16.mxu0 %v2627
    %3889 = vmatpush2.bf16.msra.mxu0 %v2626
    %3890 = vmatprep.subr.bf16.mxu0 %v2619
    %3891 = vmatpush2.bf16.msra.mxu0 %v2618
    %3892 = vmatprep.subr.bf16.mxu0 %v2611
    %3893 = vmatpush2.bf16.msra.mxu0 %v2610
    %3894 = vmatprep.subr.bf16.mxu0 %v2603
    %3895 = vmatpush2.bf16.msra.mxu0 %v2602
    %3896 = vmatprep.subr.bf16.mxu0 %v2595
    %3897 = vmatpush2.bf16.msra.mxu0 %v2594
    %3898 = vmatprep.mubr.bf16.mxu0 %v721
    %3899 = vmatmul.mubr.bf16.gmra.mxu0 %v720
    %v3900 = vpop.f32.mrf.mxu0
    %v3901 = vadd.f32 %v3860, %v3900
    %v3902 = vpop.f32.mrf.mxu0
    %v3903 = vadd.f32 %v3862, %v3902
    %v3904 = vpop.f32.mrf.mxu0
    %v3905 = vpop.f32.mrf.mxu0
    %3906 = vdwg.mxu0
    %3907 = vmatprep.subr.bf16.mxu0 %v2715
    %3908 = vmatpush1.bf16.msra.mxu0 %v2714
    %3909 = vmatprep.subr.bf16.mxu0 %v2707
    %3910 = vmatpush1.bf16.msra.mxu0 %v2706
    %3911 = vmatprep.subr.bf16.mxu0 %v2699
    %3912 = vmatpush1.bf16.msra.mxu0 %v2698
    %3913 = vmatprep.subr.bf16.mxu0 %v2691
    %3914 = vmatpush1.bf16.msra.mxu0 %v2690
    %3915 = vmatprep.subr.bf16.mxu0 %v2683
    %3916 = vmatpush1.bf16.msra.mxu0 %v2682
    %3917 = vmatprep.subr.bf16.mxu0 %v2675
    %3918 = vmatpush1.bf16.msra.mxu0 %v2674
    %3919 = vmatprep.subr.bf16.mxu0 %v2667
    %3920 = vmatpush1.bf16.msra.mxu0 %v2666
    %3921 = vmatprep.subr.bf16.mxu0 %v2659
    %3922 = vmatpush1.bf16.msra.mxu0 %v2658
    %3923 = vmatprep.subr.bf16.mxu0 %v2779
    %3924 = vmatpush2.bf16.msra.mxu0 %v2778
    %3925 = vmatprep.subr.bf16.mxu0 %v2771
    %3926 = vmatpush2.bf16.msra.mxu0 %v2770
    %3927 = vmatprep.subr.bf16.mxu0 %v2763
    %3928 = vmatpush2.bf16.msra.mxu0 %v2762
    %3929 = vmatprep.subr.bf16.mxu0 %v2755
    %3930 = vmatpush2.bf16.msra.mxu0 %v2754
    %3931 = vmatprep.subr.bf16.mxu0 %v2747
    %3932 = vmatpush2.bf16.msra.mxu0 %v2746
    %3933 = vmatprep.subr.bf16.mxu0 %v2739
    %3934 = vmatpush2.bf16.msra.mxu0 %v2738
    %3935 = vmatprep.subr.bf16.mxu0 %v2731
    %3936 = vmatpush2.bf16.msra.mxu0 %v2730
    %3937 = vmatprep.subr.bf16.mxu0 %v2723
    %3938 = vmatpush2.bf16.msra.mxu0 %v2722
    %3939 = vmatprep.mubr.bf16.mxu0 %v723
    %3940 = vmatmul.mubr.bf16.gmra.mxu0 %v722
    %v3941 = vpop.f32.mrf.mxu0
    %v3942 = vadd.f32 %v3901, %v3941
    %v3943 = vpop.f32.mrf.mxu0
    %v3944 = vadd.f32 %v3903, %v3943
    %v3945 = vpop.f32.mrf.mxu0
    %v3946 = vpop.f32.mrf.mxu0
    %3947 = vdwg.mxu0
    %v3948 = vmax.f32 %v3450, 0.0
    %v3949 = vmax.f32 %v3452, 0.0
    %v3950 = vmax.f32 %v3614, 0.0
    %v3951 = vmax.f32 %v3616, 0.0
    %v3952 = vmax.f32 %v3778, 0.0
    %v3953 = vmax.f32 %v3780, 0.0
    %v3954 = vmax.f32 %v3942, 0.0
    %v3955 = vmax.f32 %v3944, 0.0
    %v3956 = vpack.c.bf16 %v3948, %v3948
    %v3957 = vpack.c.bf16 %v3949, %v3949
    %v3958 = vpack.c.bf16 %v3950, %v3950
    %v3959 = vpack.c.bf16 %v3951, %v3951
    %v3960 = vpack.c.bf16 %v3952, %v3952
    %v3961 = vpack.c.bf16 %v3953, %v3953
    %v3962 = vpack.c.bf16 %v3954, %v3954
    %v3963 = vpack.c.bf16 %v3955, %v3955
    %v3964 = vld [vmem:[#allocation8] sm:$0xff]
    %v3965 = vld [vmem:[#allocation8 + $0x8] sm:$0xff]
    %v3966 = vld [vmem:[#allocation8 + $0x10] sm:$0xff]
    %v3967 = vld [vmem:[#allocation8 + $0x18] sm:$0xff]
    %v3968 = vld [vmem:[#allocation8 + $0x20] sm:$0xff]
    %v3969 = vld [vmem:[#allocation8 + $0x28] sm:$0xff]
    %v3970 = vld [vmem:[#allocation8 + $0x30] sm:$0xff]
    %v3971 = vld [vmem:[#allocation8 + $0x38] sm:$0xff]
    %v3972 = vld [vmem:[#allocation8 + $0x40] sm:$0xff]
    %v3973 = vld [vmem:[#allocation8 + $0x48] sm:$0xff]
    %v3974 = vld [vmem:[#allocation8 + $0x50] sm:$0xff]
    %v3975 = vld [vmem:[#allocation8 + $0x58] sm:$0xff]
    %v3976 = vld [vmem:[#allocation8 + $0x60] sm:$0xff]
    %v3977 = vld [vmem:[#allocation8 + $0x68] sm:$0xff]
    %v3978 = vld [vmem:[#allocation8 + $0x70] sm:$0xff]
    %v3979 = vld [vmem:[#allocation8 + $0x78] sm:$0xff]
    %v3980 = vld [vmem:[#allocation8 + $0x80] sm:$0xff]
    %v3981 = vld [vmem:[#allocation8 + $0x88] sm:$0xff]
    %v3982 = vld [vmem:[#allocation8 + $0x90] sm:$0xff]
    %v3983 = vld [vmem:[#allocation8 + $0x98] sm:$0xff]
    %v3984 = vld [vmem:[#allocation8 + $0xa0] sm:$0xff]
    %v3985 = vld [vmem:[#allocation8 + $0xa8] sm:$0xff]
    %v3986 = vld [vmem:[#allocation8 + $0xb0] sm:$0xff]
    %v3987 = vld [vmem:[#allocation8 + $0xb8] sm:$0xff]
    %v3988 = vld [vmem:[#allocation8 + $0xc0] sm:$0xff]
    %v3989 = vld [vmem:[#allocation8 + $0xc8] sm:$0xff]
    %v3990 = vld [vmem:[#allocation8 + $0xd0] sm:$0xff]
    %v3991 = vld [vmem:[#allocation8 + $0xd8] sm:$0xff]
    %v3992 = vld [vmem:[#allocation8 + $0xe0] sm:$0xff]
    %v3993 = vld [vmem:[#allocation8 + $0xe8] sm:$0xff]
    %v3994 = vld [vmem:[#allocation8 + $0xf0] sm:$0xff]
    %v3995 = vld [vmem:[#allocation8 + $0xf8] sm:$0xff]
    %v3996 = vld [vmem:[#allocation8 + $0x100] sm:$0xff]
    %v3997 = vld [vmem:[#allocation8 + $0x108] sm:$0xff]
    %v3998 = vld [vmem:[#allocation8 + $0x110] sm:$0xff]
    %v3999 = vld [vmem:[#allocation8 + $0x118] sm:$0xff]
    %v4000 = vld [vmem:[#allocation8 + $0x120] sm:$0xff]
    %v4001 = vld [vmem:[#allocation8 + $0x128] sm:$0xff]
    %v4002 = vld [vmem:[#allocation8 + $0x130] sm:$0xff]
    %v4003 = vld [vmem:[#allocation8 + $0x138] sm:$0xff]
    %v4004 = vld [vmem:[#allocation8 + $0x140] sm:$0xff]
    %v4005 = vld [vmem:[#allocation8 + $0x148] sm:$0xff]
    %v4006 = vld [vmem:[#allocation8 + $0x150] sm:$0xff]
    %v4007 = vld [vmem:[#allocation8 + $0x158] sm:$0xff]
    %v4008 = vld [vmem:[#allocation8 + $0x160] sm:$0xff]
    %v4009 = vld [vmem:[#allocation8 + $0x168] sm:$0xff]
    %v4010 = vld [vmem:[#allocation8 + $0x170] sm:$0xff]
    %v4011 = vld [vmem:[#allocation8 + $0x178] sm:$0xff]
    %v4012 = vld [vmem:[#allocation8 + $0x180] sm:$0xff]
    %v4013 = vld [vmem:[#allocation8 + $0x188] sm:$0xff]
    %v4014 = vld [vmem:[#allocation8 + $0x190] sm:$0xff]
    %v4015 = vld [vmem:[#allocation8 + $0x198] sm:$0xff]
    %v4016 = vld [vmem:[#allocation8 + $0x1a0] sm:$0xff]
    %v4017 = vld [vmem:[#allocation8 + $0x1a8] sm:$0xff]
    %v4018 = vld [vmem:[#allocation8 + $0x1b0] sm:$0xff]
    %v4019 = vld [vmem:[#allocation8 + $0x1b8] sm:$0xff]
    %v4020 = vld [vmem:[#allocation8 + $0x1c0] sm:$0xff]
    %v4021 = vld [vmem:[#allocation8 + $0x1c8] sm:$0xff]
    %v4022 = vld [vmem:[#allocation8 + $0x1d0] sm:$0xff]
    %v4023 = vld [vmem:[#allocation8 + $0x1d8] sm:$0xff]
    %v4024 = vld [vmem:[#allocation8 + $0x1e0] sm:$0xff]
    %v4025 = vld [vmem:[#allocation8 + $0x1e8] sm:$0xff]
    %v4026 = vld [vmem:[#allocation8 + $0x1f0] sm:$0xff]
    %v4027 = vld [vmem:[#allocation8 + $0x1f8] sm:$0xff]
    %v4028 = vld [vmem:[#allocation8 + $0x200] sm:$0xff]
    %v4029 = vld [vmem:[#allocation8 + $0x208] sm:$0xff]
    %v4030 = vld [vmem:[#allocation8 + $0x210] sm:$0xff]
    %v4031 = vld [vmem:[#allocation8 + $0x218] sm:$0xff]
    %v4032 = vld [vmem:[#allocation8 + $0x220] sm:$0xff]
    %v4033 = vld [vmem:[#allocation8 + $0x228] sm:$0xff]
    %v4034 = vld [vmem:[#allocation8 + $0x230] sm:$0xff]
    %v4035 = vld [vmem:[#allocation8 + $0x238] sm:$0xff]
    %v4036 = vld [vmem:[#allocation8 + $0x240] sm:$0xff]
    %v4037 = vld [vmem:[#allocation8 + $0x248] sm:$0xff]
    %v4038 = vld [vmem:[#allocation8 + $0x250] sm:$0xff]
    %v4039 = vld [vmem:[#allocation8 + $0x258] sm:$0xff]
    %v4040 = vld [vmem:[#allocation8 + $0x260] sm:$0xff]
    %v4041 = vld [vmem:[#allocation8 + $0x268] sm:$0xff]
    %v4042 = vld [vmem:[#allocation8 + $0x270] sm:$0xff]
    %v4043 = vld [vmem:[#allocation8 + $0x278] sm:$0xff]
    %v4044 = vld [vmem:[#allocation8 + $0x280] sm:$0xff]
    %v4045 = vld [vmem:[#allocation8 + $0x288] sm:$0xff]
    %v4046 = vld [vmem:[#allocation8 + $0x290] sm:$0xff]
    %v4047 = vld [vmem:[#allocation8 + $0x298] sm:$0xff]
    %v4048 = vld [vmem:[#allocation8 + $0x2a0] sm:$0xff]
    %v4049 = vld [vmem:[#allocation8 + $0x2a8] sm:$0xff]
    %v4050 = vld [vmem:[#allocation8 + $0x2b0] sm:$0xff]
    %v4051 = vld [vmem:[#allocation8 + $0x2b8] sm:$0xff]
    %v4052 = vld [vmem:[#allocation8 + $0x2c0] sm:$0xff]
    %v4053 = vld [vmem:[#allocation8 + $0x2c8] sm:$0xff]
    %v4054 = vld [vmem:[#allocation8 + $0x2d0] sm:$0xff]
    %v4055 = vld [vmem:[#allocation8 + $0x2d8] sm:$0xff]
    %v4056 = vld [vmem:[#allocation8 + $0x2e0] sm:$0xff]
    %v4057 = vld [vmem:[#allocation8 + $0x2e8] sm:$0xff]
    %v4058 = vld [vmem:[#allocation8 + $0x2f0] sm:$0xff]
    %v4059 = vld [vmem:[#allocation8 + $0x2f8] sm:$0xff]
    %v4060 = vld [vmem:[#allocation8 + $0x300] sm:$0xff]
    %v4061 = vld [vmem:[#allocation8 + $0x308] sm:$0xff]
    %v4062 = vld [vmem:[#allocation8 + $0x310] sm:$0xff]
    %v4063 = vld [vmem:[#allocation8 + $0x318] sm:$0xff]
    %v4064 = vld [vmem:[#allocation8 + $0x320] sm:$0xff]
    %v4065 = vld [vmem:[#allocation8 + $0x328] sm:$0xff]
    %v4066 = vld [vmem:[#allocation8 + $0x330] sm:$0xff]
    %v4067 = vld [vmem:[#allocation8 + $0x338] sm:$0xff]
    %v4068 = vld [vmem:[#allocation8 + $0x340] sm:$0xff]
    %v4069 = vld [vmem:[#allocation8 + $0x348] sm:$0xff]
    %v4070 = vld [vmem:[#allocation8 + $0x350] sm:$0xff]
    %v4071 = vld [vmem:[#allocation8 + $0x358] sm:$0xff]
    %v4072 = vld [vmem:[#allocation8 + $0x360] sm:$0xff]
    %v4073 = vld [vmem:[#allocation8 + $0x368] sm:$0xff]
    %v4074 = vld [vmem:[#allocation8 + $0x370] sm:$0xff]
    %v4075 = vld [vmem:[#allocation8 + $0x378] sm:$0xff]
    %v4076 = vld [vmem:[#allocation8 + $0x380] sm:$0xff]
    %v4077 = vld [vmem:[#allocation8 + $0x388] sm:$0xff]
    %v4078 = vld [vmem:[#allocation8 + $0x390] sm:$0xff]
    %v4079 = vld [vmem:[#allocation8 + $0x398] sm:$0xff]
    %v4080 = vld [vmem:[#allocation8 + $0x3a0] sm:$0xff]
    %v4081 = vld [vmem:[#allocation8 + $0x3a8] sm:$0xff]
    %v4082 = vld [vmem:[#allocation8 + $0x3b0] sm:$0xff]
    %v4083 = vld [vmem:[#allocation8 + $0x3b8] sm:$0xff]
    %v4084 = vld [vmem:[#allocation8 + $0x3c0] sm:$0xff]
    %v4085 = vld [vmem:[#allocation8 + $0x3c8] sm:$0xff]
    %v4086 = vld [vmem:[#allocation8 + $0x3d0] sm:$0xff]
    %v4087 = vld [vmem:[#allocation8 + $0x3d8] sm:$0xff]
    %v4088 = vld [vmem:[#allocation8 + $0x3e0] sm:$0xff]
    %v4089 = vld [vmem:[#allocation8 + $0x3e8] sm:$0xff]
    %v4090 = vld [vmem:[#allocation8 + $0x3f0] sm:$0xff]
    %v4091 = vld [vmem:[#allocation8 + $0x3f8] sm:$0xff]
    %v4092 = vld [vmem:[#allocation8 + $0x400] sm:$0xff]
    %v4093 = vld [vmem:[#allocation8 + $0x408] sm:$0xff]
    %v4094 = vld [vmem:[#allocation8 + $0x410] sm:$0xff]
    %v4095 = vld [vmem:[#allocation8 + $0x418] sm:$0xff]
    %v4096 = vld [vmem:[#allocation8 + $0x420] sm:$0xff]
    %v4097 = vld [vmem:[#allocation8 + $0x428] sm:$0xff]
    %v4098 = vld [vmem:[#allocation8 + $0x430] sm:$0xff]
    %v4099 = vld [vmem:[#allocation8 + $0x438] sm:$0xff]
    %v4100 = vld [vmem:[#allocation8 + $0x440] sm:$0xff]
    %v4101 = vld [vmem:[#allocation8 + $0x448] sm:$0xff]
    %v4102 = vld [vmem:[#allocation8 + $0x450] sm:$0xff]
    %v4103 = vld [vmem:[#allocation8 + $0x458] sm:$0xff]
    %v4104 = vld [vmem:[#allocation8 + $0x460] sm:$0xff]
    %v4105 = vld [vmem:[#allocation8 + $0x468] sm:$0xff]
    %v4106 = vld [vmem:[#allocation8 + $0x470] sm:$0xff]
    %v4107 = vld [vmem:[#allocation8 + $0x478] sm:$0xff]
    %v4108 = vld [vmem:[#allocation8 + $0x480] sm:$0xff]
    %v4109 = vld [vmem:[#allocation8 + $0x488] sm:$0xff]
    %v4110 = vld [vmem:[#allocation8 + $0x490] sm:$0xff]
    %v4111 = vld [vmem:[#allocation8 + $0x498] sm:$0xff]
    %v4112 = vld [vmem:[#allocation8 + $0x4a0] sm:$0xff]
    %v4113 = vld [vmem:[#allocation8 + $0x4a8] sm:$0xff]
    %v4114 = vld [vmem:[#allocation8 + $0x4b0] sm:$0xff]
    %v4115 = vld [vmem:[#allocation8 + $0x4b8] sm:$0xff]
    %v4116 = vld [vmem:[#allocation8 + $0x4c0] sm:$0xff]
    %v4117 = vld [vmem:[#allocation8 + $0x4c8] sm:$0xff]
    %v4118 = vld [vmem:[#allocation8 + $0x4d0] sm:$0xff]
    %v4119 = vld [vmem:[#allocation8 + $0x4d8] sm:$0xff]
    %v4120 = vld [vmem:[#allocation8 + $0x4e0] sm:$0xff]
    %v4121 = vld [vmem:[#allocation8 + $0x4e8] sm:$0xff]
    %v4122 = vld [vmem:[#allocation8 + $0x4f0] sm:$0xff]
    %v4123 = vld [vmem:[#allocation8 + $0x4f8] sm:$0xff]
    %v4124 = vld [vmem:[#allocation8 + $0x500] sm:$0xff]
    %v4125 = vld [vmem:[#allocation8 + $0x508] sm:$0xff]
    %v4126 = vld [vmem:[#allocation8 + $0x510] sm:$0xff]
    %v4127 = vld [vmem:[#allocation8 + $0x518] sm:$0xff]
    %v4128 = vld [vmem:[#allocation8 + $0x520] sm:$0xff]
    %v4129 = vld [vmem:[#allocation8 + $0x528] sm:$0xff]
    %v4130 = vld [vmem:[#allocation8 + $0x530] sm:$0xff]
    %v4131 = vld [vmem:[#allocation8 + $0x538] sm:$0xff]
    %v4132 = vld [vmem:[#allocation8 + $0x540] sm:$0xff]
    %v4133 = vld [vmem:[#allocation8 + $0x548] sm:$0xff]
    %v4134 = vld [vmem:[#allocation8 + $0x550] sm:$0xff]
    %v4135 = vld [vmem:[#allocation8 + $0x558] sm:$0xff]
    %v4136 = vld [vmem:[#allocation8 + $0x560] sm:$0xff]
    %v4137 = vld [vmem:[#allocation8 + $0x568] sm:$0xff]
    %v4138 = vld [vmem:[#allocation8 + $0x570] sm:$0xff]
    %v4139 = vld [vmem:[#allocation8 + $0x578] sm:$0xff]
    %v4140 = vld [vmem:[#allocation8 + $0x580] sm:$0xff]
    %v4141 = vld [vmem:[#allocation8 + $0x588] sm:$0xff]
    %v4142 = vld [vmem:[#allocation8 + $0x590] sm:$0xff]
    %v4143 = vld [vmem:[#allocation8 + $0x598] sm:$0xff]
    %v4144 = vld [vmem:[#allocation8 + $0x5a0] sm:$0xff]
    %v4145 = vld [vmem:[#allocation8 + $0x5a8] sm:$0xff]
    %v4146 = vld [vmem:[#allocation8 + $0x5b0] sm:$0xff]
    %v4147 = vld [vmem:[#allocation8 + $0x5b8] sm:$0xff]
    %v4148 = vld [vmem:[#allocation8 + $0x5c0] sm:$0xff]
    %v4149 = vld [vmem:[#allocation8 + $0x5c8] sm:$0xff]
    %v4150 = vld [vmem:[#allocation8 + $0x5d0] sm:$0xff]
    %v4151 = vld [vmem:[#allocation8 + $0x5d8] sm:$0xff]
    %v4152 = vld [vmem:[#allocation8 + $0x5e0] sm:$0xff]
    %v4153 = vld [vmem:[#allocation8 + $0x5e8] sm:$0xff]
    %v4154 = vld [vmem:[#allocation8 + $0x5f0] sm:$0xff]
    %v4155 = vld [vmem:[#allocation8 + $0x5f8] sm:$0xff]
    %v4156 = vld [vmem:[#allocation8 + $0x600] sm:$0xff]
    %v4157 = vld [vmem:[#allocation8 + $0x608] sm:$0xff]
    %v4158 = vld [vmem:[#allocation8 + $0x610] sm:$0xff]
    %v4159 = vld [vmem:[#allocation8 + $0x618] sm:$0xff]
    %v4160 = vld [vmem:[#allocation8 + $0x620] sm:$0xff]
    %v4161 = vld [vmem:[#allocation8 + $0x628] sm:$0xff]
    %v4162 = vld [vmem:[#allocation8 + $0x630] sm:$0xff]
    %v4163 = vld [vmem:[#allocation8 + $0x638] sm:$0xff]
    %v4164 = vld [vmem:[#allocation8 + $0x640] sm:$0xff]
    %v4165 = vld [vmem:[#allocation8 + $0x648] sm:$0xff]
    %v4166 = vld [vmem:[#allocation8 + $0x650] sm:$0xff]
    %v4167 = vld [vmem:[#allocation8 + $0x658] sm:$0xff]
    %v4168 = vld [vmem:[#allocation8 + $0x660] sm:$0xff]
    %v4169 = vld [vmem:[#allocation8 + $0x668] sm:$0xff]
    %v4170 = vld [vmem:[#allocation8 + $0x670] sm:$0xff]
    %v4171 = vld [vmem:[#allocation8 + $0x678] sm:$0xff]
    %v4172 = vld [vmem:[#allocation8 + $0x680] sm:$0xff]
    %v4173 = vld [vmem:[#allocation8 + $0x688] sm:$0xff]
    %v4174 = vld [vmem:[#allocation8 + $0x690] sm:$0xff]
    %v4175 = vld [vmem:[#allocation8 + $0x698] sm:$0xff]
    %v4176 = vld [vmem:[#allocation8 + $0x6a0] sm:$0xff]
    %v4177 = vld [vmem:[#allocation8 + $0x6a8] sm:$0xff]
    %v4178 = vld [vmem:[#allocation8 + $0x6b0] sm:$0xff]
    %v4179 = vld [vmem:[#allocation8 + $0x6b8] sm:$0xff]
    %v4180 = vld [vmem:[#allocation8 + $0x6c0] sm:$0xff]
    %v4181 = vld [vmem:[#allocation8 + $0x6c8] sm:$0xff]
    %v4182 = vld [vmem:[#allocation8 + $0x6d0] sm:$0xff]
    %v4183 = vld [vmem:[#allocation8 + $0x6d8] sm:$0xff]
    %v4184 = vld [vmem:[#allocation8 + $0x6e0] sm:$0xff]
    %v4185 = vld [vmem:[#allocation8 + $0x6e8] sm:$0xff]
    %v4186 = vld [vmem:[#allocation8 + $0x6f0] sm:$0xff]
    %v4187 = vld [vmem:[#allocation8 + $0x6f8] sm:$0xff]
    %v4188 = vld [vmem:[#allocation8 + $0x700] sm:$0xff]
    %v4189 = vld [vmem:[#allocation8 + $0x708] sm:$0xff]
    %v4190 = vld [vmem:[#allocation8 + $0x710] sm:$0xff]
    %v4191 = vld [vmem:[#allocation8 + $0x718] sm:$0xff]
    %v4192 = vld [vmem:[#allocation8 + $0x720] sm:$0xff]
    %v4193 = vld [vmem:[#allocation8 + $0x728] sm:$0xff]
    %v4194 = vld [vmem:[#allocation8 + $0x730] sm:$0xff]
    %v4195 = vld [vmem:[#allocation8 + $0x738] sm:$0xff]
    %v4196 = vld [vmem:[#allocation8 + $0x740] sm:$0xff]
    %v4197 = vld [vmem:[#allocation8 + $0x748] sm:$0xff]
    %v4198 = vld [vmem:[#allocation8 + $0x750] sm:$0xff]
    %v4199 = vld [vmem:[#allocation8 + $0x758] sm:$0xff]
    %v4200 = vld [vmem:[#allocation8 + $0x760] sm:$0xff]
    %v4201 = vld [vmem:[#allocation8 + $0x768] sm:$0xff]
    %v4202 = vld [vmem:[#allocation8 + $0x770] sm:$0xff]
    %v4203 = vld [vmem:[#allocation8 + $0x778] sm:$0xff]
    %v4204 = vld [vmem:[#allocation8 + $0x780] sm:$0xff]
    %v4205 = vld [vmem:[#allocation8 + $0x788] sm:$0xff]
    %v4206 = vld [vmem:[#allocation8 + $0x790] sm:$0xff]
    %v4207 = vld [vmem:[#allocation8 + $0x798] sm:$0xff]
    %v4208 = vld [vmem:[#allocation8 + $0x7a0] sm:$0xff]
    %v4209 = vld [vmem:[#allocation8 + $0x7a8] sm:$0xff]
    %v4210 = vld [vmem:[#allocation8 + $0x7b0] sm:$0xff]
    %v4211 = vld [vmem:[#allocation8 + $0x7b8] sm:$0xff]
    %v4212 = vld [vmem:[#allocation8 + $0x7c0] sm:$0xff]
    %v4213 = vld [vmem:[#allocation8 + $0x7c8] sm:$0xff]
    %v4214 = vld [vmem:[#allocation8 + $0x7d0] sm:$0xff]
    %v4215 = vld [vmem:[#allocation8 + $0x7d8] sm:$0xff]
    %v4216 = vld [vmem:[#allocation8 + $0x7e0] sm:$0xff]
    %v4217 = vld [vmem:[#allocation8 + $0x7e8] sm:$0xff]
    %v4218 = vld [vmem:[#allocation8 + $0x7f0] sm:$0xff]
    %v4219 = vld [vmem:[#allocation8 + $0x7f8] sm:$0xff]
    %v4220 = vld [vmem:[#allocation10] sm:$0xf]
    %v4222 = vlaneseq
    %v4223 = vshrl.u32 %v4222, 7
    %v4224 = vsub.s32 0, %v4223
    %v4225 = vrot.slane %v4220, %v4224
    %v4226 = vlaneseq
    %v4227 = vshrl.u32 %v4226, 7
    %v4228 = vsub.s32 1, %v4227
    %v4229 = vrot.slane %v4220, %v4228
    %v4230 = vlaneseq
    %v4231 = vshrl.u32 %v4230, 7
    %v4232 = vsub.s32 2, %v4231
    %v4233 = vrot.slane %v4220, %v4232
    %v4234 = vlaneseq
    %v4235 = vshrl.u32 %v4234, 7
    %v4236 = vsub.s32 3, %v4235
    %v4237 = vrot.slane %v4220, %v4236
    %v4498 = vunpack.c.l.b16 %v3964
    %v4499 = vunpack.c.h.b16 %v3964
    %v4500 = vunpack.c.l.b16 %v3965
    %v4501 = vunpack.c.h.b16 %v3965
    %v4502 = vunpack.c.l.b16 %v3966
    %v4503 = vunpack.c.h.b16 %v3966
    %v4504 = vunpack.c.l.b16 %v3967
    %v4505 = vunpack.c.h.b16 %v3967
    %v4506 = vunpack.c.l.b16 %v3968
    %v4507 = vunpack.c.h.b16 %v3968
    %v4508 = vunpack.c.l.b16 %v3969
    %v4509 = vunpack.c.h.b16 %v3969
    %v4510 = vunpack.c.l.b16 %v3970
    %v4511 = vunpack.c.h.b16 %v3970
    %v4512 = vunpack.c.l.b16 %v3971
    %v4513 = vunpack.c.h.b16 %v3971
    %v4514 = vunpack.c.l.b16 %v3972
    %v4515 = vunpack.c.h.b16 %v3972
    %v4516 = vunpack.c.l.b16 %v3973
    %v4517 = vunpack.c.h.b16 %v3973
    %v4518 = vunpack.c.l.b16 %v3974
    %v4519 = vunpack.c.h.b16 %v3974
    %v4520 = vunpack.c.l.b16 %v3975
    %v4521 = vunpack.c.h.b16 %v3975
    %v4522 = vunpack.c.l.b16 %v3976
    %v4523 = vunpack.c.h.b16 %v3976
    %v4524 = vunpack.c.l.b16 %v3977
    %v4525 = vunpack.c.h.b16 %v3977
    %v4526 = vunpack.c.l.b16 %v3978
    %v4527 = vunpack.c.h.b16 %v3978
    %v4528 = vunpack.c.l.b16 %v3979
    %v4529 = vunpack.c.h.b16 %v3979
    %v4530 = vunpack.c.l.b16 %v3980
    %v4531 = vunpack.c.h.b16 %v3980
    %v4532 = vunpack.c.l.b16 %v3981
    %v4533 = vunpack.c.h.b16 %v3981
    %v4534 = vunpack.c.l.b16 %v3982
    %v4535 = vunpack.c.h.b16 %v3982
    %v4536 = vunpack.c.l.b16 %v3983
    %v4537 = vunpack.c.h.b16 %v3983
    %v4538 = vunpack.c.l.b16 %v3984
    %v4539 = vunpack.c.h.b16 %v3984
    %v4540 = vunpack.c.l.b16 %v3985
    %v4541 = vunpack.c.h.b16 %v3985
    %v4542 = vunpack.c.l.b16 %v3986
    %v4543 = vunpack.c.h.b16 %v3986
    %v4544 = vunpack.c.l.b16 %v3987
    %v4545 = vunpack.c.h.b16 %v3987
    %v4546 = vunpack.c.l.b16 %v3988
    %v4547 = vunpack.c.h.b16 %v3988
    %v4548 = vunpack.c.l.b16 %v3989
    %v4549 = vunpack.c.h.b16 %v3989
    %v4550 = vunpack.c.l.b16 %v3990
    %v4551 = vunpack.c.h.b16 %v3990
    %v4552 = vunpack.c.l.b16 %v3991
    %v4553 = vunpack.c.h.b16 %v3991
    %v4554 = vunpack.c.l.b16 %v3992
    %v4555 = vunpack.c.h.b16 %v3992
    %v4556 = vunpack.c.l.b16 %v3993
    %v4557 = vunpack.c.h.b16 %v3993
    %v4558 = vunpack.c.l.b16 %v3994
    %v4559 = vunpack.c.h.b16 %v3994
    %v4560 = vunpack.c.l.b16 %v3995
    %v4561 = vunpack.c.h.b16 %v3995
    %v4562 = vunpack.c.l.b16 %v3996
    %v4563 = vunpack.c.h.b16 %v3996
    %v4564 = vunpack.c.l.b16 %v3997
    %v4565 = vunpack.c.h.b16 %v3997
    %v4566 = vunpack.c.l.b16 %v3998
    %v4567 = vunpack.c.h.b16 %v3998
    %v4568 = vunpack.c.l.b16 %v3999
    %v4569 = vunpack.c.h.b16 %v3999
    %v4570 = vunpack.c.l.b16 %v4000
    %v4571 = vunpack.c.h.b16 %v4000
    %v4572 = vunpack.c.l.b16 %v4001
    %v4573 = vunpack.c.h.b16 %v4001
    %v4574 = vunpack.c.l.b16 %v4002
    %v4575 = vunpack.c.h.b16 %v4002
    %v4576 = vunpack.c.l.b16 %v4003
    %v4577 = vunpack.c.h.b16 %v4003
    %v4578 = vunpack.c.l.b16 %v4004
    %v4579 = vunpack.c.h.b16 %v4004
    %v4580 = vunpack.c.l.b16 %v4005
    %v4581 = vunpack.c.h.b16 %v4005
    %v4582 = vunpack.c.l.b16 %v4006
    %v4583 = vunpack.c.h.b16 %v4006
    %v4584 = vunpack.c.l.b16 %v4007
    %v4585 = vunpack.c.h.b16 %v4007
    %v4586 = vunpack.c.l.b16 %v4008
    %v4587 = vunpack.c.h.b16 %v4008
    %v4588 = vunpack.c.l.b16 %v4009
    %v4589 = vunpack.c.h.b16 %v4009
    %v4590 = vunpack.c.l.b16 %v4010
    %v4591 = vunpack.c.h.b16 %v4010
    %v4592 = vunpack.c.l.b16 %v4011
    %v4593 = vunpack.c.h.b16 %v4011
    %v4594 = vunpack.c.l.b16 %v4012
    %v4595 = vunpack.c.h.b16 %v4012
    %v4596 = vunpack.c.l.b16 %v4013
    %v4597 = vunpack.c.h.b16 %v4013
    %v4598 = vunpack.c.l.b16 %v4014
    %v4599 = vunpack.c.h.b16 %v4014
    %v4600 = vunpack.c.l.b16 %v4015
    %v4601 = vunpack.c.h.b16 %v4015
    %v4602 = vunpack.c.l.b16 %v4016
    %v4603 = vunpack.c.h.b16 %v4016
    %v4604 = vunpack.c.l.b16 %v4017
    %v4605 = vunpack.c.h.b16 %v4017
    %v4606 = vunpack.c.l.b16 %v4018
    %v4607 = vunpack.c.h.b16 %v4018
    %v4608 = vunpack.c.l.b16 %v4019
    %v4609 = vunpack.c.h.b16 %v4019
    %v4610 = vunpack.c.l.b16 %v4020
    %v4611 = vunpack.c.h.b16 %v4020
    %v4612 = vunpack.c.l.b16 %v4021
    %v4613 = vunpack.c.h.b16 %v4021
    %v4614 = vunpack.c.l.b16 %v4022
    %v4615 = vunpack.c.h.b16 %v4022
    %v4616 = vunpack.c.l.b16 %v4023
    %v4617 = vunpack.c.h.b16 %v4023
    %v4618 = vunpack.c.l.b16 %v4024
    %v4619 = vunpack.c.h.b16 %v4024
    %v4620 = vunpack.c.l.b16 %v4025
    %v4621 = vunpack.c.h.b16 %v4025
    %v4622 = vunpack.c.l.b16 %v4026
    %v4623 = vunpack.c.h.b16 %v4026
    %v4624 = vunpack.c.l.b16 %v4027
    %v4625 = vunpack.c.h.b16 %v4027
    %v4626 = vunpack.c.l.b16 %v4028
    %v4627 = vunpack.c.h.b16 %v4028
    %v4628 = vunpack.c.l.b16 %v4029
    %v4629 = vunpack.c.h.b16 %v4029
    %v4630 = vunpack.c.l.b16 %v4030
    %v4631 = vunpack.c.h.b16 %v4030
    %v4632 = vunpack.c.l.b16 %v4031
    %v4633 = vunpack.c.h.b16 %v4031
    %v4634 = vunpack.c.l.b16 %v4032
    %v4635 = vunpack.c.h.b16 %v4032
    %v4636 = vunpack.c.l.b16 %v4033
    %v4637 = vunpack.c.h.b16 %v4033
    %v4638 = vunpack.c.l.b16 %v4034
    %v4639 = vunpack.c.h.b16 %v4034
    %v4640 = vunpack.c.l.b16 %v4035
    %v4641 = vunpack.c.h.b16 %v4035
    %v4642 = vunpack.c.l.b16 %v4036
    %v4643 = vunpack.c.h.b16 %v4036
    %v4644 = vunpack.c.l.b16 %v4037
    %v4645 = vunpack.c.h.b16 %v4037
    %v4646 = vunpack.c.l.b16 %v4038
    %v4647 = vunpack.c.h.b16 %v4038
    %v4648 = vunpack.c.l.b16 %v4039
    %v4649 = vunpack.c.h.b16 %v4039
    %v4650 = vunpack.c.l.b16 %v4040
    %v4651 = vunpack.c.h.b16 %v4040
    %v4652 = vunpack.c.l.b16 %v4041
    %v4653 = vunpack.c.h.b16 %v4041
    %v4654 = vunpack.c.l.b16 %v4042
    %v4655 = vunpack.c.h.b16 %v4042
    %v4656 = vunpack.c.l.b16 %v4043
    %v4657 = vunpack.c.h.b16 %v4043
    %v4658 = vunpack.c.l.b16 %v4044
    %v4659 = vunpack.c.h.b16 %v4044
    %v4660 = vunpack.c.l.b16 %v4045
    %v4661 = vunpack.c.h.b16 %v4045
    %v4662 = vunpack.c.l.b16 %v4046
    %v4663 = vunpack.c.h.b16 %v4046
    %v4664 = vunpack.c.l.b16 %v4047
    %v4665 = vunpack.c.h.b16 %v4047
    %v4666 = vunpack.c.l.b16 %v4048
    %v4667 = vunpack.c.h.b16 %v4048
    %v4668 = vunpack.c.l.b16 %v4049
    %v4669 = vunpack.c.h.b16 %v4049
    %v4670 = vunpack.c.l.b16 %v4050
    %v4671 = vunpack.c.h.b16 %v4050
    %v4672 = vunpack.c.l.b16 %v4051
    %v4673 = vunpack.c.h.b16 %v4051
    %v4674 = vunpack.c.l.b16 %v4052
    %v4675 = vunpack.c.h.b16 %v4052
    %v4676 = vunpack.c.l.b16 %v4053
    %v4677 = vunpack.c.h.b16 %v4053
    %v4678 = vunpack.c.l.b16 %v4054
    %v4679 = vunpack.c.h.b16 %v4054
    %v4680 = vunpack.c.l.b16 %v4055
    %v4681 = vunpack.c.h.b16 %v4055
    %v4682 = vunpack.c.l.b16 %v4056
    %v4683 = vunpack.c.h.b16 %v4056
    %v4684 = vunpack.c.l.b16 %v4057
    %v4685 = vunpack.c.h.b16 %v4057
    %v4686 = vunpack.c.l.b16 %v4058
    %v4687 = vunpack.c.h.b16 %v4058
    %v4688 = vunpack.c.l.b16 %v4059
    %v4689 = vunpack.c.h.b16 %v4059
    %v4690 = vunpack.c.l.b16 %v4060
    %v4691 = vunpack.c.h.b16 %v4060
    %v4692 = vunpack.c.l.b16 %v4061
    %v4693 = vunpack.c.h.b16 %v4061
    %v4694 = vunpack.c.l.b16 %v4062
    %v4695 = vunpack.c.h.b16 %v4062
    %v4696 = vunpack.c.l.b16 %v4063
    %v4697 = vunpack.c.h.b16 %v4063
    %v4698 = vunpack.c.l.b16 %v4064
    %v4699 = vunpack.c.h.b16 %v4064
    %v4700 = vunpack.c.l.b16 %v4065
    %v4701 = vunpack.c.h.b16 %v4065
    %v4702 = vunpack.c.l.b16 %v4066
    %v4703 = vunpack.c.h.b16 %v4066
    %v4704 = vunpack.c.l.b16 %v4067
    %v4705 = vunpack.c.h.b16 %v4067
    %v4706 = vunpack.c.l.b16 %v4068
    %v4707 = vunpack.c.h.b16 %v4068
    %v4708 = vunpack.c.l.b16 %v4069
    %v4709 = vunpack.c.h.b16 %v4069
    %v4710 = vunpack.c.l.b16 %v4070
    %v4711 = vunpack.c.h.b16 %v4070
    %v4712 = vunpack.c.l.b16 %v4071
    %v4713 = vunpack.c.h.b16 %v4071
    %v4714 = vunpack.c.l.b16 %v4072
    %v4715 = vunpack.c.h.b16 %v4072
    %v4716 = vunpack.c.l.b16 %v4073
    %v4717 = vunpack.c.h.b16 %v4073
    %v4718 = vunpack.c.l.b16 %v4074
    %v4719 = vunpack.c.h.b16 %v4074
    %v4720 = vunpack.c.l.b16 %v4075
    %v4721 = vunpack.c.h.b16 %v4075
    %v4722 = vunpack.c.l.b16 %v4076
    %v4723 = vunpack.c.h.b16 %v4076
    %v4724 = vunpack.c.l.b16 %v4077
    %v4725 = vunpack.c.h.b16 %v4077
    %v4726 = vunpack.c.l.b16 %v4078
    %v4727 = vunpack.c.h.b16 %v4078
    %v4728 = vunpack.c.l.b16 %v4079
    %v4729 = vunpack.c.h.b16 %v4079
    %v4730 = vunpack.c.l.b16 %v4080
    %v4731 = vunpack.c.h.b16 %v4080
    %v4732 = vunpack.c.l.b16 %v4081
    %v4733 = vunpack.c.h.b16 %v4081
    %v4734 = vunpack.c.l.b16 %v4082
    %v4735 = vunpack.c.h.b16 %v4082
    %v4736 = vunpack.c.l.b16 %v4083
    %v4737 = vunpack.c.h.b16 %v4083
    %v4738 = vunpack.c.l.b16 %v4084
    %v4739 = vunpack.c.h.b16 %v4084
    %v4740 = vunpack.c.l.b16 %v4085
    %v4741 = vunpack.c.h.b16 %v4085
    %v4742 = vunpack.c.l.b16 %v4086
    %v4743 = vunpack.c.h.b16 %v4086
    %v4744 = vunpack.c.l.b16 %v4087
    %v4745 = vunpack.c.h.b16 %v4087
    %v4746 = vunpack.c.l.b16 %v4088
    %v4747 = vunpack.c.h.b16 %v4088
    %v4748 = vunpack.c.l.b16 %v4089
    %v4749 = vunpack.c.h.b16 %v4089
    %v4750 = vunpack.c.l.b16 %v4090
    %v4751 = vunpack.c.h.b16 %v4090
    %v4752 = vunpack.c.l.b16 %v4091
    %v4753 = vunpack.c.h.b16 %v4091
    %v4754 = vunpack.c.l.b16 %v4092
    %v4755 = vunpack.c.h.b16 %v4092
    %v4756 = vunpack.c.l.b16 %v4093
    %v4757 = vunpack.c.h.b16 %v4093
    %v4758 = vunpack.c.l.b16 %v4094
    %v4759 = vunpack.c.h.b16 %v4094
    %v4760 = vunpack.c.l.b16 %v4095
    %v4761 = vunpack.c.h.b16 %v4095
    %v4762 = vunpack.c.l.b16 %v4096
    %v4763 = vunpack.c.h.b16 %v4096
    %v4764 = vunpack.c.l.b16 %v4097
    %v4765 = vunpack.c.h.b16 %v4097
    %v4766 = vunpack.c.l.b16 %v4098
    %v4767 = vunpack.c.h.b16 %v4098
    %v4768 = vunpack.c.l.b16 %v4099
    %v4769 = vunpack.c.h.b16 %v4099
    %v4770 = vunpack.c.l.b16 %v4100
    %v4771 = vunpack.c.h.b16 %v4100
    %v4772 = vunpack.c.l.b16 %v4101
    %v4773 = vunpack.c.h.b16 %v4101
    %v4774 = vunpack.c.l.b16 %v4102
    %v4775 = vunpack.c.h.b16 %v4102
    %v4776 = vunpack.c.l.b16 %v4103
    %v4777 = vunpack.c.h.b16 %v4103
    %v4778 = vunpack.c.l.b16 %v4104
    %v4779 = vunpack.c.h.b16 %v4104
    %v4780 = vunpack.c.l.b16 %v4105
    %v4781 = vunpack.c.h.b16 %v4105
    %v4782 = vunpack.c.l.b16 %v4106
    %v4783 = vunpack.c.h.b16 %v4106
    %v4784 = vunpack.c.l.b16 %v4107
    %v4785 = vunpack.c.h.b16 %v4107
    %v4786 = vunpack.c.l.b16 %v4108
    %v4787 = vunpack.c.h.b16 %v4108
    %v4788 = vunpack.c.l.b16 %v4109
    %v4789 = vunpack.c.h.b16 %v4109
    %v4790 = vunpack.c.l.b16 %v4110
    %v4791 = vunpack.c.h.b16 %v4110
    %v4792 = vunpack.c.l.b16 %v4111
    %v4793 = vunpack.c.h.b16 %v4111
    %v4794 = vunpack.c.l.b16 %v4112
    %v4795 = vunpack.c.h.b16 %v4112
    %v4796 = vunpack.c.l.b16 %v4113
    %v4797 = vunpack.c.h.b16 %v4113
    %v4798 = vunpack.c.l.b16 %v4114
    %v4799 = vunpack.c.h.b16 %v4114
    %v4800 = vunpack.c.l.b16 %v4115
    %v4801 = vunpack.c.h.b16 %v4115
    %v4802 = vunpack.c.l.b16 %v4116
    %v4803 = vunpack.c.h.b16 %v4116
    %v4804 = vunpack.c.l.b16 %v4117
    %v4805 = vunpack.c.h.b16 %v4117
    %v4806 = vunpack.c.l.b16 %v4118
    %v4807 = vunpack.c.h.b16 %v4118
    %v4808 = vunpack.c.l.b16 %v4119
    %v4809 = vunpack.c.h.b16 %v4119
    %v4810 = vunpack.c.l.b16 %v4120
    %v4811 = vunpack.c.h.b16 %v4120
    %v4812 = vunpack.c.l.b16 %v4121
    %v4813 = vunpack.c.h.b16 %v4121
    %v4814 = vunpack.c.l.b16 %v4122
    %v4815 = vunpack.c.h.b16 %v4122
    %v4816 = vunpack.c.l.b16 %v4123
    %v4817 = vunpack.c.h.b16 %v4123
    %v4818 = vunpack.c.l.b16 %v4124
    %v4819 = vunpack.c.h.b16 %v4124
    %v4820 = vunpack.c.l.b16 %v4125
    %v4821 = vunpack.c.h.b16 %v4125
    %v4822 = vunpack.c.l.b16 %v4126
    %v4823 = vunpack.c.h.b16 %v4126
    %v4824 = vunpack.c.l.b16 %v4127
    %v4825 = vunpack.c.h.b16 %v4127
    %v4826 = vunpack.c.l.b16 %v4128
    %v4827 = vunpack.c.h.b16 %v4128
    %v4828 = vunpack.c.l.b16 %v4129
    %v4829 = vunpack.c.h.b16 %v4129
    %v4830 = vunpack.c.l.b16 %v4130
    %v4831 = vunpack.c.h.b16 %v4130
    %v4832 = vunpack.c.l.b16 %v4131
    %v4833 = vunpack.c.h.b16 %v4131
    %v4834 = vunpack.c.l.b16 %v4132
    %v4835 = vunpack.c.h.b16 %v4132
    %v4836 = vunpack.c.l.b16 %v4133
    %v4837 = vunpack.c.h.b16 %v4133
    %v4838 = vunpack.c.l.b16 %v4134
    %v4839 = vunpack.c.h.b16 %v4134
    %v4840 = vunpack.c.l.b16 %v4135
    %v4841 = vunpack.c.h.b16 %v4135
    %v4842 = vunpack.c.l.b16 %v4136
    %v4843 = vunpack.c.h.b16 %v4136
    %v4844 = vunpack.c.l.b16 %v4137
    %v4845 = vunpack.c.h.b16 %v4137
    %v4846 = vunpack.c.l.b16 %v4138
    %v4847 = vunpack.c.h.b16 %v4138
    %v4848 = vunpack.c.l.b16 %v4139
    %v4849 = vunpack.c.h.b16 %v4139
    %v4850 = vunpack.c.l.b16 %v4140
    %v4851 = vunpack.c.h.b16 %v4140
    %v4852 = vunpack.c.l.b16 %v4141
    %v4853 = vunpack.c.h.b16 %v4141
    %v4854 = vunpack.c.l.b16 %v4142
    %v4855 = vunpack.c.h.b16 %v4142
    %v4856 = vunpack.c.l.b16 %v4143
    %v4857 = vunpack.c.h.b16 %v4143
    %v4858 = vunpack.c.l.b16 %v4144
    %v4859 = vunpack.c.h.b16 %v4144
    %v4860 = vunpack.c.l.b16 %v4145
    %v4861 = vunpack.c.h.b16 %v4145
    %v4862 = vunpack.c.l.b16 %v4146
    %v4863 = vunpack.c.h.b16 %v4146
    %v4864 = vunpack.c.l.b16 %v4147
    %v4865 = vunpack.c.h.b16 %v4147
    %v4866 = vunpack.c.l.b16 %v4148
    %v4867 = vunpack.c.h.b16 %v4148
    %v4868 = vunpack.c.l.b16 %v4149
    %v4869 = vunpack.c.h.b16 %v4149
    %v4870 = vunpack.c.l.b16 %v4150
    %v4871 = vunpack.c.h.b16 %v4150
    %v4872 = vunpack.c.l.b16 %v4151
    %v4873 = vunpack.c.h.b16 %v4151
    %v4874 = vunpack.c.l.b16 %v4152
    %v4875 = vunpack.c.h.b16 %v4152
    %v4876 = vunpack.c.l.b16 %v4153
    %v4877 = vunpack.c.h.b16 %v4153
    %v4878 = vunpack.c.l.b16 %v4154
    %v4879 = vunpack.c.h.b16 %v4154
    %v4880 = vunpack.c.l.b16 %v4155
    %v4881 = vunpack.c.h.b16 %v4155
    %v4882 = vunpack.c.l.b16 %v4156
    %v4883 = vunpack.c.h.b16 %v4156
    %v4884 = vunpack.c.l.b16 %v4157
    %v4885 = vunpack.c.h.b16 %v4157
    %v4886 = vunpack.c.l.b16 %v4158
    %v4887 = vunpack.c.h.b16 %v4158
    %v4888 = vunpack.c.l.b16 %v4159
    %v4889 = vunpack.c.h.b16 %v4159
    %v4890 = vunpack.c.l.b16 %v4160
    %v4891 = vunpack.c.h.b16 %v4160
    %v4892 = vunpack.c.l.b16 %v4161
    %v4893 = vunpack.c.h.b16 %v4161
    %v4894 = vunpack.c.l.b16 %v4162
    %v4895 = vunpack.c.h.b16 %v4162
    %v4896 = vunpack.c.l.b16 %v4163
    %v4897 = vunpack.c.h.b16 %v4163
    %v4898 = vunpack.c.l.b16 %v4164
    %v4899 = vunpack.c.h.b16 %v4164
    %v4900 = vunpack.c.l.b16 %v4165
    %v4901 = vunpack.c.h.b16 %v4165
    %v4902 = vunpack.c.l.b16 %v4166
    %v4903 = vunpack.c.h.b16 %v4166
    %v4904 = vunpack.c.l.b16 %v4167
    %v4905 = vunpack.c.h.b16 %v4167
    %v4906 = vunpack.c.l.b16 %v4168
    %v4907 = vunpack.c.h.b16 %v4168
    %v4908 = vunpack.c.l.b16 %v4169
    %v4909 = vunpack.c.h.b16 %v4169
    %v4910 = vunpack.c.l.b16 %v4170
    %v4911 = vunpack.c.h.b16 %v4170
    %v4912 = vunpack.c.l.b16 %v4171
    %v4913 = vunpack.c.h.b16 %v4171
    %v4914 = vunpack.c.l.b16 %v4172
    %v4915 = vunpack.c.h.b16 %v4172
    %v4916 = vunpack.c.l.b16 %v4173
    %v4917 = vunpack.c.h.b16 %v4173
    %v4918 = vunpack.c.l.b16 %v4174
    %v4919 = vunpack.c.h.b16 %v4174
    %v4920 = vunpack.c.l.b16 %v4175
    %v4921 = vunpack.c.h.b16 %v4175
    %v4922 = vunpack.c.l.b16 %v4176
    %v4923 = vunpack.c.h.b16 %v4176
    %v4924 = vunpack.c.l.b16 %v4177
    %v4925 = vunpack.c.h.b16 %v4177
    %v4926 = vunpack.c.l.b16 %v4178
    %v4927 = vunpack.c.h.b16 %v4178
    %v4928 = vunpack.c.l.b16 %v4179
    %v4929 = vunpack.c.h.b16 %v4179
    %v4930 = vunpack.c.l.b16 %v4180
    %v4931 = vunpack.c.h.b16 %v4180
    %v4932 = vunpack.c.l.b16 %v4181
    %v4933 = vunpack.c.h.b16 %v4181
    %v4934 = vunpack.c.l.b16 %v4182
    %v4935 = vunpack.c.h.b16 %v4182
    %v4936 = vunpack.c.l.b16 %v4183
    %v4937 = vunpack.c.h.b16 %v4183
    %v4938 = vunpack.c.l.b16 %v4184
    %v4939 = vunpack.c.h.b16 %v4184
    %v4940 = vunpack.c.l.b16 %v4185
    %v4941 = vunpack.c.h.b16 %v4185
    %v4942 = vunpack.c.l.b16 %v4186
    %v4943 = vunpack.c.h.b16 %v4186
    %v4944 = vunpack.c.l.b16 %v4187
    %v4945 = vunpack.c.h.b16 %v4187
    %v4946 = vunpack.c.l.b16 %v4188
    %v4947 = vunpack.c.h.b16 %v4188
    %v4948 = vunpack.c.l.b16 %v4189
    %v4949 = vunpack.c.h.b16 %v4189
    %v4950 = vunpack.c.l.b16 %v4190
    %v4951 = vunpack.c.h.b16 %v4190
    %v4952 = vunpack.c.l.b16 %v4191
    %v4953 = vunpack.c.h.b16 %v4191
    %v4954 = vunpack.c.l.b16 %v4192
    %v4955 = vunpack.c.h.b16 %v4192
    %v4956 = vunpack.c.l.b16 %v4193
    %v4957 = vunpack.c.h.b16 %v4193
    %v4958 = vunpack.c.l.b16 %v4194
    %v4959 = vunpack.c.h.b16 %v4194
    %v4960 = vunpack.c.l.b16 %v4195
    %v4961 = vunpack.c.h.b16 %v4195
    %v4962 = vunpack.c.l.b16 %v4196
    %v4963 = vunpack.c.h.b16 %v4196
    %v4964 = vunpack.c.l.b16 %v4197
    %v4965 = vunpack.c.h.b16 %v4197
    %v4966 = vunpack.c.l.b16 %v4198
    %v4967 = vunpack.c.h.b16 %v4198
    %v4968 = vunpack.c.l.b16 %v4199
    %v4969 = vunpack.c.h.b16 %v4199
    %v4970 = vunpack.c.l.b16 %v4200
    %v4971 = vunpack.c.h.b16 %v4200
    %v4972 = vunpack.c.l.b16 %v4201
    %v4973 = vunpack.c.h.b16 %v4201
    %v4974 = vunpack.c.l.b16 %v4202
    %v4975 = vunpack.c.h.b16 %v4202
    %v4976 = vunpack.c.l.b16 %v4203
    %v4977 = vunpack.c.h.b16 %v4203
    %v4978 = vunpack.c.l.b16 %v4204
    %v4979 = vunpack.c.h.b16 %v4204
    %v4980 = vunpack.c.l.b16 %v4205
    %v4981 = vunpack.c.h.b16 %v4205
    %v4982 = vunpack.c.l.b16 %v4206
    %v4983 = vunpack.c.h.b16 %v4206
    %v4984 = vunpack.c.l.b16 %v4207
    %v4985 = vunpack.c.h.b16 %v4207
    %v4986 = vunpack.c.l.b16 %v4208
    %v4987 = vunpack.c.h.b16 %v4208
    %v4988 = vunpack.c.l.b16 %v4209
    %v4989 = vunpack.c.h.b16 %v4209
    %v4990 = vunpack.c.l.b16 %v4210
    %v4991 = vunpack.c.h.b16 %v4210
    %v4992 = vunpack.c.l.b16 %v4211
    %v4993 = vunpack.c.h.b16 %v4211
    %v4994 = vunpack.c.l.b16 %v4212
    %v4995 = vunpack.c.h.b16 %v4212
    %v4996 = vunpack.c.l.b16 %v4213
    %v4997 = vunpack.c.h.b16 %v4213
    %v4998 = vunpack.c.l.b16 %v4214
    %v4999 = vunpack.c.h.b16 %v4214
    %v5000 = vunpack.c.l.b16 %v4215
    %v5001 = vunpack.c.h.b16 %v4215
    %v5002 = vunpack.c.l.b16 %v4216
    %v5003 = vunpack.c.h.b16 %v4216
    %v5004 = vunpack.c.l.b16 %v4217
    %v5005 = vunpack.c.h.b16 %v4217
    %v5006 = vunpack.c.l.b16 %v4218
    %v5007 = vunpack.c.h.b16 %v4218
    %v5008 = vunpack.c.l.b16 %v4219
    %v5009 = vunpack.c.h.b16 %v4219
    %v5010 = vpack.c.b16 %v4502, %v4498
    %v5011 = vpack.c.b16 %v4503, %v4499
    %v5012 = vpack.c.b16 %v4504, %v4500
    %v5013 = vpack.c.b16 %v4505, %v4501
    %v5014 = vpack.c.b16 %v4510, %v4506
    %v5015 = vpack.c.b16 %v4511, %v4507
    %v5016 = vpack.c.b16 %v4512, %v4508
    %v5017 = vpack.c.b16 %v4513, %v4509
    %v5018 = vpack.c.b16 %v4518, %v4514
    %v5019 = vpack.c.b16 %v4519, %v4515
    %v5020 = vpack.c.b16 %v4520, %v4516
    %v5021 = vpack.c.b16 %v4521, %v4517
    %v5022 = vpack.c.b16 %v4526, %v4522
    %v5023 = vpack.c.b16 %v4527, %v4523
    %v5024 = vpack.c.b16 %v4528, %v4524
    %v5025 = vpack.c.b16 %v4529, %v4525
    %v5026 = vpack.c.b16 %v4534, %v4530
    %v5027 = vpack.c.b16 %v4535, %v4531
    %v5028 = vpack.c.b16 %v4536, %v4532
    %v5029 = vpack.c.b16 %v4537, %v4533
    %v5030 = vpack.c.b16 %v4542, %v4538
    %v5031 = vpack.c.b16 %v4543, %v4539
    %v5032 = vpack.c.b16 %v4544, %v4540
    %v5033 = vpack.c.b16 %v4545, %v4541
    %v5034 = vpack.c.b16 %v4550, %v4546
    %v5035 = vpack.c.b16 %v4551, %v4547
    %v5036 = vpack.c.b16 %v4552, %v4548
    %v5037 = vpack.c.b16 %v4553, %v4549
    %v5038 = vpack.c.b16 %v4558, %v4554
    %v5039 = vpack.c.b16 %v4559, %v4555
    %v5040 = vpack.c.b16 %v4560, %v4556
    %v5041 = vpack.c.b16 %v4561, %v4557
    %v5042 = vpack.c.b16 %v4566, %v4562
    %v5043 = vpack.c.b16 %v4567, %v4563
    %v5044 = vpack.c.b16 %v4568, %v4564
    %v5045 = vpack.c.b16 %v4569, %v4565
    %v5046 = vpack.c.b16 %v4574, %v4570
    %v5047 = vpack.c.b16 %v4575, %v4571
    %v5048 = vpack.c.b16 %v4576, %v4572
    %v5049 = vpack.c.b16 %v4577, %v4573
    %v5050 = vpack.c.b16 %v4582, %v4578
    %v5051 = vpack.c.b16 %v4583, %v4579
    %v5052 = vpack.c.b16 %v4584, %v4580
    %v5053 = vpack.c.b16 %v4585, %v4581
    %v5054 = vpack.c.b16 %v4590, %v4586
    %v5055 = vpack.c.b16 %v4591, %v4587
    %v5056 = vpack.c.b16 %v4592, %v4588
    %v5057 = vpack.c.b16 %v4593, %v4589
    %v5058 = vpack.c.b16 %v4598, %v4594
    %v5059 = vpack.c.b16 %v4599, %v4595
    %v5060 = vpack.c.b16 %v4600, %v4596
    %v5061 = vpack.c.b16 %v4601, %v4597
    %v5062 = vpack.c.b16 %v4606, %v4602
    %v5063 = vpack.c.b16 %v4607, %v4603
    %v5064 = vpack.c.b16 %v4608, %v4604
    %v5065 = vpack.c.b16 %v4609, %v4605
    %v5066 = vpack.c.b16 %v4614, %v4610
    %v5067 = vpack.c.b16 %v4615, %v4611
    %v5068 = vpack.c.b16 %v4616, %v4612
    %v5069 = vpack.c.b16 %v4617, %v4613
    %v5070 = vpack.c.b16 %v4622, %v4618
    %v5071 = vpack.c.b16 %v4623, %v4619
    %v5072 = vpack.c.b16 %v4624, %v4620
    %v5073 = vpack.c.b16 %v4625, %v4621
    %v5074 = vpack.c.b16 %v4630, %v4626
    %v5075 = vpack.c.b16 %v4631, %v4627
    %v5076 = vpack.c.b16 %v4632, %v4628
    %v5077 = vpack.c.b16 %v4633, %v4629
    %v5078 = vpack.c.b16 %v4638, %v4634
    %v5079 = vpack.c.b16 %v4639, %v4635
    %v5080 = vpack.c.b16 %v4640, %v4636
    %v5081 = vpack.c.b16 %v4641, %v4637
    %v5082 = vpack.c.b16 %v4646, %v4642
    %v5083 = vpack.c.b16 %v4647, %v4643
    %v5084 = vpack.c.b16 %v4648, %v4644
    %v5085 = vpack.c.b16 %v4649, %v4645
    %v5086 = vpack.c.b16 %v4654, %v4650
    %v5087 = vpack.c.b16 %v4655, %v4651
    %v5088 = vpack.c.b16 %v4656, %v4652
    %v5089 = vpack.c.b16 %v4657, %v4653
    %v5090 = vpack.c.b16 %v4662, %v4658
    %v5091 = vpack.c.b16 %v4663, %v4659
    %v5092 = vpack.c.b16 %v4664, %v4660
    %v5093 = vpack.c.b16 %v4665, %v4661
    %v5094 = vpack.c.b16 %v4670, %v4666
    %v5095 = vpack.c.b16 %v4671, %v4667
    %v5096 = vpack.c.b16 %v4672, %v4668
    %v5097 = vpack.c.b16 %v4673, %v4669
    %v5098 = vpack.c.b16 %v4678, %v4674
    %v5099 = vpack.c.b16 %v4679, %v4675
    %v5100 = vpack.c.b16 %v4680, %v4676
    %v5101 = vpack.c.b16 %v4681, %v4677
    %v5102 = vpack.c.b16 %v4686, %v4682
    %v5103 = vpack.c.b16 %v4687, %v4683
    %v5104 = vpack.c.b16 %v4688, %v4684
    %v5105 = vpack.c.b16 %v4689, %v4685
    %v5106 = vpack.c.b16 %v4694, %v4690
    %v5107 = vpack.c.b16 %v4695, %v4691
    %v5108 = vpack.c.b16 %v4696, %v4692
    %v5109 = vpack.c.b16 %v4697, %v4693
    %v5110 = vpack.c.b16 %v4702, %v4698
    %v5111 = vpack.c.b16 %v4703, %v4699
    %v5112 = vpack.c.b16 %v4704, %v4700
    %v5113 = vpack.c.b16 %v4705, %v4701
    %v5114 = vpack.c.b16 %v4710, %v4706
    %v5115 = vpack.c.b16 %v4711, %v4707
    %v5116 = vpack.c.b16 %v4712, %v4708
    %v5117 = vpack.c.b16 %v4713, %v4709
    %v5118 = vpack.c.b16 %v4718, %v4714
    %v5119 = vpack.c.b16 %v4719, %v4715
    %v5120 = vpack.c.b16 %v4720, %v4716
    %v5121 = vpack.c.b16 %v4721, %v4717
    %v5122 = vpack.c.b16 %v4726, %v4722
    %v5123 = vpack.c.b16 %v4727, %v4723
    %v5124 = vpack.c.b16 %v4728, %v4724
    %v5125 = vpack.c.b16 %v4729, %v4725
    %v5126 = vpack.c.b16 %v4734, %v4730
    %v5127 = vpack.c.b16 %v4735, %v4731
    %v5128 = vpack.c.b16 %v4736, %v4732
    %v5129 = vpack.c.b16 %v4737, %v4733
    %v5130 = vpack.c.b16 %v4742, %v4738
    %v5131 = vpack.c.b16 %v4743, %v4739
    %v5132 = vpack.c.b16 %v4744, %v4740
    %v5133 = vpack.c.b16 %v4745, %v4741
    %v5134 = vpack.c.b16 %v4750, %v4746
    %v5135 = vpack.c.b16 %v4751, %v4747
    %v5136 = vpack.c.b16 %v4752, %v4748
    %v5137 = vpack.c.b16 %v4753, %v4749
    %v5138 = vpack.c.b16 %v4758, %v4754
    %v5139 = vpack.c.b16 %v4759, %v4755
    %v5140 = vpack.c.b16 %v4760, %v4756
    %v5141 = vpack.c.b16 %v4761, %v4757
    %v5142 = vpack.c.b16 %v4766, %v4762
    %v5143 = vpack.c.b16 %v4767, %v4763
    %v5144 = vpack.c.b16 %v4768, %v4764
    %v5145 = vpack.c.b16 %v4769, %v4765
    %v5146 = vpack.c.b16 %v4774, %v4770
    %v5147 = vpack.c.b16 %v4775, %v4771
    %v5148 = vpack.c.b16 %v4776, %v4772
    %v5149 = vpack.c.b16 %v4777, %v4773
    %v5150 = vpack.c.b16 %v4782, %v4778
    %v5151 = vpack.c.b16 %v4783, %v4779
    %v5152 = vpack.c.b16 %v4784, %v4780
    %v5153 = vpack.c.b16 %v4785, %v4781
    %v5154 = vpack.c.b16 %v4790, %v4786
    %v5155 = vpack.c.b16 %v4791, %v4787
    %v5156 = vpack.c.b16 %v4792, %v4788
    %v5157 = vpack.c.b16 %v4793, %v4789
    %v5158 = vpack.c.b16 %v4798, %v4794
    %v5159 = vpack.c.b16 %v4799, %v4795
    %v5160 = vpack.c.b16 %v4800, %v4796
    %v5161 = vpack.c.b16 %v4801, %v4797
    %v5162 = vpack.c.b16 %v4806, %v4802
    %v5163 = vpack.c.b16 %v4807, %v4803
    %v5164 = vpack.c.b16 %v4808, %v4804
    %v5165 = vpack.c.b16 %v4809, %v4805
    %v5166 = vpack.c.b16 %v4814, %v4810
    %v5167 = vpack.c.b16 %v4815, %v4811
    %v5168 = vpack.c.b16 %v4816, %v4812
    %v5169 = vpack.c.b16 %v4817, %v4813
    %v5170 = vpack.c.b16 %v4822, %v4818
    %v5171 = vpack.c.b16 %v4823, %v4819
    %v5172 = vpack.c.b16 %v4824, %v4820
    %v5173 = vpack.c.b16 %v4825, %v4821
    %v5174 = vpack.c.b16 %v4830, %v4826
    %v5175 = vpack.c.b16 %v4831, %v4827
    %v5176 = vpack.c.b16 %v4832, %v4828
    %v5177 = vpack.c.b16 %v4833, %v4829
    %v5178 = vpack.c.b16 %v4838, %v4834
    %v5179 = vpack.c.b16 %v4839, %v4835
    %v5180 = vpack.c.b16 %v4840, %v4836
    %v5181 = vpack.c.b16 %v4841, %v4837
    %v5182 = vpack.c.b16 %v4846, %v4842
    %v5183 = vpack.c.b16 %v4847, %v4843
    %v5184 = vpack.c.b16 %v4848, %v4844
    %v5185 = vpack.c.b16 %v4849, %v4845
    %v5186 = vpack.c.b16 %v4854, %v4850
    %v5187 = vpack.c.b16 %v4855, %v4851
    %v5188 = vpack.c.b16 %v4856, %v4852
    %v5189 = vpack.c.b16 %v4857, %v4853
    %v5190 = vpack.c.b16 %v4862, %v4858
    %v5191 = vpack.c.b16 %v4863, %v4859
    %v5192 = vpack.c.b16 %v4864, %v4860
    %v5193 = vpack.c.b16 %v4865, %v4861
    %v5194 = vpack.c.b16 %v4870, %v4866
    %v5195 = vpack.c.b16 %v4871, %v4867
    %v5196 = vpack.c.b16 %v4872, %v4868
    %v5197 = vpack.c.b16 %v4873, %v4869
    %v5198 = vpack.c.b16 %v4878, %v4874
    %v5199 = vpack.c.b16 %v4879, %v4875
    %v5200 = vpack.c.b16 %v4880, %v4876
    %v5201 = vpack.c.b16 %v4881, %v4877
    %v5202 = vpack.c.b16 %v4886, %v4882
    %v5203 = vpack.c.b16 %v4887, %v4883
    %v5204 = vpack.c.b16 %v4888, %v4884
    %v5205 = vpack.c.b16 %v4889, %v4885
    %v5206 = vpack.c.b16 %v4894, %v4890
    %v5207 = vpack.c.b16 %v4895, %v4891
    %v5208 = vpack.c.b16 %v4896, %v4892
    %v5209 = vpack.c.b16 %v4897, %v4893
    %v5210 = vpack.c.b16 %v4902, %v4898
    %v5211 = vpack.c.b16 %v4903, %v4899
    %v5212 = vpack.c.b16 %v4904, %v4900
    %v5213 = vpack.c.b16 %v4905, %v4901
    %v5214 = vpack.c.b16 %v4910, %v4906
    %v5215 = vpack.c.b16 %v4911, %v4907
    %v5216 = vpack.c.b16 %v4912, %v4908
    %v5217 = vpack.c.b16 %v4913, %v4909
    %v5218 = vpack.c.b16 %v4918, %v4914
    %v5219 = vpack.c.b16 %v4919, %v4915
    %v5220 = vpack.c.b16 %v4920, %v4916
    %v5221 = vpack.c.b16 %v4921, %v4917
    %v5222 = vpack.c.b16 %v4926, %v4922
    %v5223 = vpack.c.b16 %v4927, %v4923
    %v5224 = vpack.c.b16 %v4928, %v4924
    %v5225 = vpack.c.b16 %v4929, %v4925
    %v5226 = vpack.c.b16 %v4934, %v4930
    %v5227 = vpack.c.b16 %v4935, %v4931
    %v5228 = vpack.c.b16 %v4936, %v4932
    %v5229 = vpack.c.b16 %v4937, %v4933
    %v5230 = vpack.c.b16 %v4942, %v4938
    %v5231 = vpack.c.b16 %v4943, %v4939
    %v5232 = vpack.c.b16 %v4944, %v4940
    %v5233 = vpack.c.b16 %v4945, %v4941
    %v5234 = vpack.c.b16 %v4950, %v4946
    %v5235 = vpack.c.b16 %v4951, %v4947
    %v5236 = vpack.c.b16 %v4952, %v4948
    %v5237 = vpack.c.b16 %v4953, %v4949
    %v5238 = vpack.c.b16 %v4958, %v4954
    %v5239 = vpack.c.b16 %v4959, %v4955
    %v5240 = vpack.c.b16 %v4960, %v4956
    %v5241 = vpack.c.b16 %v4961, %v4957
    %v5242 = vpack.c.b16 %v4966, %v4962
    %v5243 = vpack.c.b16 %v4967, %v4963
    %v5244 = vpack.c.b16 %v4968, %v4964
    %v5245 = vpack.c.b16 %v4969, %v4965
    %v5246 = vpack.c.b16 %v4974, %v4970
    %v5247 = vpack.c.b16 %v4975, %v4971
    %v5248 = vpack.c.b16 %v4976, %v4972
    %v5249 = vpack.c.b16 %v4977, %v4973
    %v5250 = vpack.c.b16 %v4982, %v4978
    %v5251 = vpack.c.b16 %v4983, %v4979
    %v5252 = vpack.c.b16 %v4984, %v4980
    %v5253 = vpack.c.b16 %v4985, %v4981
    %v5254 = vpack.c.b16 %v4990, %v4986
    %v5255 = vpack.c.b16 %v4991, %v4987
    %v5256 = vpack.c.b16 %v4992, %v4988
    %v5257 = vpack.c.b16 %v4993, %v4989
    %v5258 = vpack.c.b16 %v4998, %v4994
    %v5259 = vpack.c.b16 %v4999, %v4995
    %v5260 = vpack.c.b16 %v5000, %v4996
    %v5261 = vpack.c.b16 %v5001, %v4997
    %v5262 = vpack.c.b16 %v5006, %v5002
    %v5263 = vpack.c.b16 %v5007, %v5003
    %v5264 = vpack.c.b16 %v5008, %v5004
    %v5265 = vpack.c.b16 %v5009, %v5005
    %5522 = vmatprep.subr.bf16.mxu0 %v5039
    %5523 = vmatpush1.bf16.msra.mxu0 %v5038
    %5524 = vmatprep.subr.bf16.mxu0 %v5035
    %5525 = vmatpush1.bf16.msra.mxu0 %v5034
    %5526 = vmatprep.subr.bf16.mxu0 %v5031
    %5527 = vmatpush1.bf16.msra.mxu0 %v5030
    %5528 = vmatprep.subr.bf16.mxu0 %v5027
    %5529 = vmatpush1.bf16.msra.mxu0 %v5026
    %5530 = vmatprep.subr.bf16.mxu0 %v5023
    %5531 = vmatpush1.bf16.msra.mxu0 %v5022
    %5532 = vmatprep.subr.bf16.mxu0 %v5019
    %5533 = vmatpush1.bf16.msra.mxu0 %v5018
    %5534 = vmatprep.subr.bf16.mxu0 %v5015
    %5535 = vmatpush1.bf16.msra.mxu0 %v5014
    %5536 = vmatprep.subr.bf16.mxu0 %v5011
    %5537 = vmatpush1.bf16.msra.mxu0 %v5010
    %5538 = vmatprep.subr.bf16.mxu0 %v5071
    %5539 = vmatpush2.bf16.msra.mxu0 %v5070
    %5540 = vmatprep.subr.bf16.mxu0 %v5067
    %5541 = vmatpush2.bf16.msra.mxu0 %v5066
    %5542 = vmatprep.subr.bf16.mxu0 %v5063
    %5543 = vmatpush2.bf16.msra.mxu0 %v5062
    %5544 = vmatprep.subr.bf16.mxu0 %v5059
    %5545 = vmatpush2.bf16.msra.mxu0 %v5058
    %5546 = vmatprep.subr.bf16.mxu0 %v5055
    %5547 = vmatpush2.bf16.msra.mxu0 %v5054
    %5548 = vmatprep.subr.bf16.mxu0 %v5051
    %5549 = vmatpush2.bf16.msra.mxu0 %v5050
    %5550 = vmatprep.subr.bf16.mxu0 %v5047
    %5551 = vmatpush2.bf16.msra.mxu0 %v5046
    %5552 = vmatprep.subr.bf16.mxu0 %v5043
    %5553 = vmatpush2.bf16.msra.mxu0 %v5042
    %5554 = vmatprep.mubr.bf16.mxu0 %v3957
    %5555 = vmatmul.mubr.bf16.gmra.mxu0 %v3956
    %v5556 = vpop.f32.mrf.mxu0
    %v5557 = vadd.f32 %v4225, %v5556
    %v5558 = vpop.f32.mrf.mxu0
    %v5559 = vadd.f32 %v4229, %v5558
    %v5560 = vpop.f32.mrf.mxu0
    %v5561 = vpop.f32.mrf.mxu0
    %5562 = vdwg.mxu0
    %5563 = vmatprep.subr.bf16.mxu0 %v5103
    %5564 = vmatpush1.bf16.msra.mxu0 %v5102
    %5565 = vmatprep.subr.bf16.mxu0 %v5099
    %5566 = vmatpush1.bf16.msra.mxu0 %v5098
    %5567 = vmatprep.subr.bf16.mxu0 %v5095
    %5568 = vmatpush1.bf16.msra.mxu0 %v5094
    %5569 = vmatprep.subr.bf16.mxu0 %v5091
    %5570 = vmatpush1.bf16.msra.mxu0 %v5090
    %5571 = vmatprep.subr.bf16.mxu0 %v5087
    %5572 = vmatpush1.bf16.msra.mxu0 %v5086
    %5573 = vmatprep.subr.bf16.mxu0 %v5083
    %5574 = vmatpush1.bf16.msra.mxu0 %v5082
    %5575 = vmatprep.subr.bf16.mxu0 %v5079
    %5576 = vmatpush1.bf16.msra.mxu0 %v5078
    %5577 = vmatprep.subr.bf16.mxu0 %v5075
    %5578 = vmatpush1.bf16.msra.mxu0 %v5074
    %5579 = vmatprep.subr.bf16.mxu0 %v5135
    %5580 = vmatpush2.bf16.msra.mxu0 %v5134
    %5581 = vmatprep.subr.bf16.mxu0 %v5131
    %5582 = vmatpush2.bf16.msra.mxu0 %v5130
    %5583 = vmatprep.subr.bf16.mxu0 %v5127
    %5584 = vmatpush2.bf16.msra.mxu0 %v5126
    %5585 = vmatprep.subr.bf16.mxu0 %v5123
    %5586 = vmatpush2.bf16.msra.mxu0 %v5122
    %5587 = vmatprep.subr.bf16.mxu0 %v5119
    %5588 = vmatpush2.bf16.msra.mxu0 %v5118
    %5589 = vmatprep.subr.bf16.mxu0 %v5115
    %5590 = vmatpush2.bf16.msra.mxu0 %v5114
    %5591 = vmatprep.subr.bf16.mxu0 %v5111
    %5592 = vmatpush2.bf16.msra.mxu0 %v5110
    %5593 = vmatprep.subr.bf16.mxu0 %v5107
    %5594 = vmatpush2.bf16.msra.mxu0 %v5106
    %5595 = vmatprep.mubr.bf16.mxu0 %v3959
    %5596 = vmatmul.mubr.bf16.gmra.mxu0 %v3958
    %v5597 = vpop.f32.mrf.mxu0
    %v5598 = vadd.f32 %v5557, %v5597
    %v5599 = vpop.f32.mrf.mxu0
    %v5600 = vadd.f32 %v5559, %v5599
    %v5601 = vpop.f32.mrf.mxu0
    %v5602 = vpop.f32.mrf.mxu0
    %5603 = vdwg.mxu0
    %5604 = vmatprep.subr.bf16.mxu0 %v5167
    %5605 = vmatpush1.bf16.msra.mxu0 %v5166
    %5606 = vmatprep.subr.bf16.mxu0 %v5163
    %5607 = vmatpush1.bf16.msra.mxu0 %v5162
    %5608 = vmatprep.subr.bf16.mxu0 %v5159
    %5609 = vmatpush1.bf16.msra.mxu0 %v5158
    %5610 = vmatprep.subr.bf16.mxu0 %v5155
    %5611 = vmatpush1.bf16.msra.mxu0 %v5154
    %5612 = vmatprep.subr.bf16.mxu0 %v5151
    %5613 = vmatpush1.bf16.msra.mxu0 %v5150
    %5614 = vmatprep.subr.bf16.mxu0 %v5147
    %5615 = vmatpush1.bf16.msra.mxu0 %v5146
    %5616 = vmatprep.subr.bf16.mxu0 %v5143
    %5617 = vmatpush1.bf16.msra.mxu0 %v5142
    %5618 = vmatprep.subr.bf16.mxu0 %v5139
    %5619 = vmatpush1.bf16.msra.mxu0 %v5138
    %5620 = vmatprep.subr.bf16.mxu0 %v5199
    %5621 = vmatpush2.bf16.msra.mxu0 %v5198
    %5622 = vmatprep.subr.bf16.mxu0 %v5195
    %5623 = vmatpush2.bf16.msra.mxu0 %v5194
    %5624 = vmatprep.subr.bf16.mxu0 %v5191
    %5625 = vmatpush2.bf16.msra.mxu0 %v5190
    %5626 = vmatprep.subr.bf16.mxu0 %v5187
    %5627 = vmatpush2.bf16.msra.mxu0 %v5186
    %5628 = vmatprep.subr.bf16.mxu0 %v5183
    %5629 = vmatpush2.bf16.msra.mxu0 %v5182
    %5630 = vmatprep.subr.bf16.mxu0 %v5179
    %5631 = vmatpush2.bf16.msra.mxu0 %v5178
    %5632 = vmatprep.subr.bf16.mxu0 %v5175
    %5633 = vmatpush2.bf16.msra.mxu0 %v5174
    %5634 = vmatprep.subr.bf16.mxu0 %v5171
    %5635 = vmatpush2.bf16.msra.mxu0 %v5170
    %5636 = vmatprep.mubr.bf16.mxu0 %v3961
    %5637 = vmatmul.mubr.bf16.gmra.mxu0 %v3960
    %v5638 = vpop.f32.mrf.mxu0
    %v5639 = vadd.f32 %v5598, %v5638
    %v5640 = vpop.f32.mrf.mxu0
    %v5641 = vadd.f32 %v5600, %v5640
    %v5642 = vpop.f32.mrf.mxu0
    %v5643 = vpop.f32.mrf.mxu0
    %5644 = vdwg.mxu0
    %5645 = vmatprep.subr.bf16.mxu0 %v5231
    %5646 = vmatpush1.bf16.msra.mxu0 %v5230
    %5647 = vmatprep.subr.bf16.mxu0 %v5227
    %5648 = vmatpush1.bf16.msra.mxu0 %v5226
    %5649 = vmatprep.subr.bf16.mxu0 %v5223
    %5650 = vmatpush1.bf16.msra.mxu0 %v5222
    %5651 = vmatprep.subr.bf16.mxu0 %v5219
    %5652 = vmatpush1.bf16.msra.mxu0 %v5218
    %5653 = vmatprep.subr.bf16.mxu0 %v5215
    %5654 = vmatpush1.bf16.msra.mxu0 %v5214
    %5655 = vmatprep.subr.bf16.mxu0 %v5211
    %5656 = vmatpush1.bf16.msra.mxu0 %v5210
    %5657 = vmatprep.subr.bf16.mxu0 %v5207
    %5658 = vmatpush1.bf16.msra.mxu0 %v5206
    %5659 = vmatprep.subr.bf16.mxu0 %v5203
    %5660 = vmatpush1.bf16.msra.mxu0 %v5202
    %5661 = vmatprep.subr.bf16.mxu0 %v5263
    %5662 = vmatpush2.bf16.msra.mxu0 %v5262
    %5663 = vmatprep.subr.bf16.mxu0 %v5259
    %5664 = vmatpush2.bf16.msra.mxu0 %v5258
    %5665 = vmatprep.subr.bf16.mxu0 %v5255
    %5666 = vmatpush2.bf16.msra.mxu0 %v5254
    %5667 = vmatprep.subr.bf16.mxu0 %v5251
    %5668 = vmatpush2.bf16.msra.mxu0 %v5250
    %5669 = vmatprep.subr.bf16.mxu0 %v5247
    %5670 = vmatpush2.bf16.msra.mxu0 %v5246
    %5671 = vmatprep.subr.bf16.mxu0 %v5243
    %5672 = vmatpush2.bf16.msra.mxu0 %v5242
    %5673 = vmatprep.subr.bf16.mxu0 %v5239
    %5674 = vmatpush2.bf16.msra.mxu0 %v5238
    %5675 = vmatprep.subr.bf16.mxu0 %v5235
    %5676 = vmatpush2.bf16.msra.mxu0 %v5234
    %5677 = vmatprep.mubr.bf16.mxu0 %v3963
    %5678 = vmatmul.mubr.bf16.gmra.mxu0 %v3962
    %v5679 = vpop.f32.mrf.mxu0
    %v5680 = vadd.f32 %v5639, %v5679
    %v5681 = vpop.f32.mrf.mxu0
    %v5682 = vadd.f32 %v5641, %v5681
    %v5683 = vpop.f32.mrf.mxu0
    %v5684 = vpop.f32.mrf.mxu0
    %5685 = vdwg.mxu0
    %5686 = vmatprep.subr.bf16.mxu0 %v5041
    %5687 = vmatpush1.bf16.msra.mxu0 %v5040
    %5688 = vmatprep.subr.bf16.mxu0 %v5037
    %5689 = vmatpush1.bf16.msra.mxu0 %v5036
    %5690 = vmatprep.subr.bf16.mxu0 %v5033
    %5691 = vmatpush1.bf16.msra.mxu0 %v5032
    %5692 = vmatprep.subr.bf16.mxu0 %v5029
    %5693 = vmatpush1.bf16.msra.mxu0 %v5028
    %5694 = vmatprep.subr.bf16.mxu0 %v5025
    %5695 = vmatpush1.bf16.msra.mxu0 %v5024
    %5696 = vmatprep.subr.bf16.mxu0 %v5021
    %5697 = vmatpush1.bf16.msra.mxu0 %v5020
    %5698 = vmatprep.subr.bf16.mxu0 %v5017
    %5699 = vmatpush1.bf16.msra.mxu0 %v5016
    %5700 = vmatprep.subr.bf16.mxu0 %v5013
    %5701 = vmatpush1.bf16.msra.mxu0 %v5012
    %5702 = vmatprep.subr.bf16.mxu0 %v5073
    %5703 = vmatpush2.bf16.msra.mxu0 %v5072
    %5704 = vmatprep.subr.bf16.mxu0 %v5069
    %5705 = vmatpush2.bf16.msra.mxu0 %v5068
    %5706 = vmatprep.subr.bf16.mxu0 %v5065
    %5707 = vmatpush2.bf16.msra.mxu0 %v5064
    %5708 = vmatprep.subr.bf16.mxu0 %v5061
    %5709 = vmatpush2.bf16.msra.mxu0 %v5060
    %5710 = vmatprep.subr.bf16.mxu0 %v5057
    %5711 = vmatpush2.bf16.msra.mxu0 %v5056
    %5712 = vmatprep.subr.bf16.mxu0 %v5053
    %5713 = vmatpush2.bf16.msra.mxu0 %v5052
    %5714 = vmatprep.subr.bf16.mxu0 %v5049
    %5715 = vmatpush2.bf16.msra.mxu0 %v5048
    %5716 = vmatprep.subr.bf16.mxu0 %v5045
    %5717 = vmatpush2.bf16.msra.mxu0 %v5044
    %5718 = vmatprep.mubr.bf16.mxu0 %v3957
    %5719 = vmatmul.mubr.bf16.gmra.mxu0 %v3956
    %v5720 = vpop.f32.mrf.mxu0
    %v5721 = vadd.f32 %v4233, %v5720
    %v5722 = vpop.f32.mrf.mxu0
    %v5723 = vadd.f32 %v4237, %v5722
    %v5724 = vpop.f32.mrf.mxu0
    %v5725 = vpop.f32.mrf.mxu0
    %5726 = vdwg.mxu0
    %5727 = vmatprep.subr.bf16.mxu0 %v5105
    %5728 = vmatpush1.bf16.msra.mxu0 %v5104
    %5729 = vmatprep.subr.bf16.mxu0 %v5101
    %5730 = vmatpush1.bf16.msra.mxu0 %v5100
    %5731 = vmatprep.subr.bf16.mxu0 %v5097
    %5732 = vmatpush1.bf16.msra.mxu0 %v5096
    %5733 = vmatprep.subr.bf16.mxu0 %v5093
    %5734 = vmatpush1.bf16.msra.mxu0 %v5092
    %5735 = vmatprep.subr.bf16.mxu0 %v5089
    %5736 = vmatpush1.bf16.msra.mxu0 %v5088
    %5737 = vmatprep.subr.bf16.mxu0 %v5085
    %5738 = vmatpush1.bf16.msra.mxu0 %v5084
    %5739 = vmatprep.subr.bf16.mxu0 %v5081
    %5740 = vmatpush1.bf16.msra.mxu0 %v5080
    %5741 = vmatprep.subr.bf16.mxu0 %v5077
    %5742 = vmatpush1.bf16.msra.mxu0 %v5076
    %5743 = vmatprep.subr.bf16.mxu0 %v5137
    %5744 = vmatpush2.bf16.msra.mxu0 %v5136
    %5745 = vmatprep.subr.bf16.mxu0 %v5133
    %5746 = vmatpush2.bf16.msra.mxu0 %v5132
    %5747 = vmatprep.subr.bf16.mxu0 %v5129
    %5748 = vmatpush2.bf16.msra.mxu0 %v5128
    %5749 = vmatprep.subr.bf16.mxu0 %v5125
    %5750 = vmatpush2.bf16.msra.mxu0 %v5124
    %5751 = vmatprep.subr.bf16.mxu0 %v5121
    %5752 = vmatpush2.bf16.msra.mxu0 %v5120
    %5753 = vmatprep.subr.bf16.mxu0 %v5117
    %5754 = vmatpush2.bf16.msra.mxu0 %v5116
    %5755 = vmatprep.subr.bf16.mxu0 %v5113
    %5756 = vmatpush2.bf16.msra.mxu0 %v5112
    %5757 = vmatprep.subr.bf16.mxu0 %v5109
    %5758 = vmatpush2.bf16.msra.mxu0 %v5108
    %5759 = vmatprep.mubr.bf16.mxu0 %v3959
    %5760 = vmatmul.mubr.bf16.gmra.mxu0 %v3958
    %v5761 = vpop.f32.mrf.mxu0
    %v5762 = vadd.f32 %v5721, %v5761
    %v5763 = vpop.f32.mrf.mxu0
    %v5764 = vadd.f32 %v5723, %v5763
    %v5765 = vpop.f32.mrf.mxu0
    %v5766 = vpop.f32.mrf.mxu0
    %5767 = vdwg.mxu0
    %5768 = vmatprep.subr.bf16.mxu0 %v5169
    %5769 = vmatpush1.bf16.msra.mxu0 %v5168
    %5770 = vmatprep.subr.bf16.mxu0 %v5165
    %5771 = vmatpush1.bf16.msra.mxu0 %v5164
    %5772 = vmatprep.subr.bf16.mxu0 %v5161
    %5773 = vmatpush1.bf16.msra.mxu0 %v5160
    %5774 = vmatprep.subr.bf16.mxu0 %v5157
    %5775 = vmatpush1.bf16.msra.mxu0 %v5156
    %5776 = vmatprep.subr.bf16.mxu0 %v5153
    %5777 = vmatpush1.bf16.msra.mxu0 %v5152
    %5778 = vmatprep.subr.bf16.mxu0 %v5149
    %5779 = vmatpush1.bf16.msra.mxu0 %v5148
    %5780 = vmatprep.subr.bf16.mxu0 %v5145
    %5781 = vmatpush1.bf16.msra.mxu0 %v5144
    %5782 = vmatprep.subr.bf16.mxu0 %v5141
    %5783 = vmatpush1.bf16.msra.mxu0 %v5140
    %5784 = vmatprep.subr.bf16.mxu0 %v5201
    %5785 = vmatpush2.bf16.msra.mxu0 %v5200
    %5786 = vmatprep.subr.bf16.mxu0 %v5197
    %5787 = vmatpush2.bf16.msra.mxu0 %v5196
    %5788 = vmatprep.subr.bf16.mxu0 %v5193
    %5789 = vmatpush2.bf16.msra.mxu0 %v5192
    %5790 = vmatprep.subr.bf16.mxu0 %v5189
    %5791 = vmatpush2.bf16.msra.mxu0 %v5188
    %5792 = vmatprep.subr.bf16.mxu0 %v5185
    %5793 = vmatpush2.bf16.msra.mxu0 %v5184
    %5794 = vmatprep.subr.bf16.mxu0 %v5181
    %5795 = vmatpush2.bf16.msra.mxu0 %v5180
    %5796 = vmatprep.subr.bf16.mxu0 %v5177
    %5797 = vmatpush2.bf16.msra.mxu0 %v5176
    %5798 = vmatprep.subr.bf16.mxu0 %v5173
    %5799 = vmatpush2.bf16.msra.mxu0 %v5172
    %5800 = vmatprep.mubr.bf16.mxu0 %v3961
    %5801 = vmatmul.mubr.bf16.gmra.mxu0 %v3960
    %v5802 = vpop.f32.mrf.mxu0
    %v5803 = vadd.f32 %v5762, %v5802
    %v5804 = vpop.f32.mrf.mxu0
    %v5805 = vadd.f32 %v5764, %v5804
    %v5806 = vpop.f32.mrf.mxu0
    %v5807 = vpop.f32.mrf.mxu0
    %5808 = vdwg.mxu0
    %5809 = vmatprep.subr.bf16.mxu0 %v5233
    %5810 = vmatpush1.bf16.msra.mxu0 %v5232
    %5811 = vmatprep.subr.bf16.mxu0 %v5229
    %5812 = vmatpush1.bf16.msra.mxu0 %v5228
    %5813 = vmatprep.subr.bf16.mxu0 %v5225
    %5814 = vmatpush1.bf16.msra.mxu0 %v5224
    %5815 = vmatprep.subr.bf16.mxu0 %v5221
    %5816 = vmatpush1.bf16.msra.mxu0 %v5220
    %5817 = vmatprep.subr.bf16.mxu0 %v5217
    %5818 = vmatpush1.bf16.msra.mxu0 %v5216
    %5819 = vmatprep.subr.bf16.mxu0 %v5213
    %5820 = vmatpush1.bf16.msra.mxu0 %v5212
    %5821 = vmatprep.subr.bf16.mxu0 %v5209
    %5822 = vmatpush1.bf16.msra.mxu0 %v5208
    %5823 = vmatprep.subr.bf16.mxu0 %v5205
    %5824 = vmatpush1.bf16.msra.mxu0 %v5204
    %5825 = vmatprep.subr.bf16.mxu0 %v5265
    %5826 = vmatpush2.bf16.msra.mxu0 %v5264
    %5827 = vmatprep.subr.bf16.mxu0 %v5261
    %5828 = vmatpush2.bf16.msra.mxu0 %v5260
    %5829 = vmatprep.subr.bf16.mxu0 %v5257
    %5830 = vmatpush2.bf16.msra.mxu0 %v5256
    %5831 = vmatprep.subr.bf16.mxu0 %v5253
    %5832 = vmatpush2.bf16.msra.mxu0 %v5252
    %5833 = vmatprep.subr.bf16.mxu0 %v5249
    %5834 = vmatpush2.bf16.msra.mxu0 %v5248
    %5835 = vmatprep.subr.bf16.mxu0 %v5245
    %5836 = vmatpush2.bf16.msra.mxu0 %v5244
    %5837 = vmatprep.subr.bf16.mxu0 %v5241
    %5838 = vmatpush2.bf16.msra.mxu0 %v5240
    %5839 = vmatprep.subr.bf16.mxu0 %v5237
    %5840 = vmatpush2.bf16.msra.mxu0 %v5236
    %5841 = vmatprep.mubr.bf16.mxu0 %v3963
    %5842 = vmatmul.mubr.bf16.gmra.mxu0 %v3962
    %v5843 = vpop.f32.mrf.mxu0
    %v5844 = vadd.f32 %v5803, %v5843
    %v5845 = vpop.f32.mrf.mxu0
    %v5846 = vadd.f32 %v5805, %v5845
    %v5847 = vpop.f32.mrf.mxu0
    %v5848 = vpop.f32.mrf.mxu0
    %5849 = vdwg.mxu0
    %v5850 = vmax.f32 %v5680, 0.0
    %v5851 = vmax.f32 %v5682, 0.0
    %v5852 = vmax.f32 %v5844, 0.0
    %v5853 = vmax.f32 %v5846, 0.0
    %v5854 = vpack.c.bf16 %v5850, %v5850
    %v5855 = vpack.c.bf16 %v5851, %v5851
    %v5856 = vpack.c.bf16 %v5852, %v5852
    %v5857 = vpack.c.bf16 %v5853, %v5853
    %v5858 = vld [vmem:[#allocation11] sm:$0xff]
    %v5859 = vld [vmem:[#allocation11 + $0x8] sm:$0xff]
    %v5860 = vld [vmem:[#allocation11 + $0x10] sm:$0xff]
    %v5861 = vld [vmem:[#allocation11 + $0x18] sm:$0xff]
    %v5862 = vld [vmem:[#allocation11 + $0x20] sm:$0xff]
    %v5863 = vld [vmem:[#allocation11 + $0x28] sm:$0xff]
    %v5864 = vld [vmem:[#allocation11 + $0x30] sm:$0xff]
    %v5865 = vld [vmem:[#allocation11 + $0x38] sm:$0xff]
    %v5866 = vld [vmem:[#allocation11 + $0x40] sm:$0xff]
    %v5867 = vld [vmem:[#allocation11 + $0x48] sm:$0xff]
    %v5868 = vld [vmem:[#allocation11 + $0x50] sm:$0xff]
    %v5869 = vld [vmem:[#allocation11 + $0x58] sm:$0xff]
    %v5870 = vld [vmem:[#allocation11 + $0x60] sm:$0xff]
    %v5871 = vld [vmem:[#allocation11 + $0x68] sm:$0xff]
    %v5872 = vld [vmem:[#allocation11 + $0x70] sm:$0xff]
    %v5873 = vld [vmem:[#allocation11 + $0x78] sm:$0xff]
    %v5874 = vld [vmem:[#allocation11 + $0x80] sm:$0xff]
    %v5875 = vld [vmem:[#allocation11 + $0x88] sm:$0xff]
    %v5876 = vld [vmem:[#allocation11 + $0x90] sm:$0xff]
    %v5877 = vld [vmem:[#allocation11 + $0x98] sm:$0xff]
    %v5878 = vld [vmem:[#allocation11 + $0xa0] sm:$0xff]
    %v5879 = vld [vmem:[#allocation11 + $0xa8] sm:$0xff]
    %v5880 = vld [vmem:[#allocation11 + $0xb0] sm:$0xff]
    %v5881 = vld [vmem:[#allocation11 + $0xb8] sm:$0xff]
    %v5882 = vld [vmem:[#allocation11 + $0xc0] sm:$0xff]
    %v5883 = vld [vmem:[#allocation11 + $0xc8] sm:$0xff]
    %v5884 = vld [vmem:[#allocation11 + $0xd0] sm:$0xff]
    %v5885 = vld [vmem:[#allocation11 + $0xd8] sm:$0xff]
    %v5886 = vld [vmem:[#allocation11 + $0xe0] sm:$0xff]
    %v5887 = vld [vmem:[#allocation11 + $0xe8] sm:$0xff]
    %v5888 = vld [vmem:[#allocation11 + $0xf0] sm:$0xff]
    %v5889 = vld [vmem:[#allocation11 + $0xf8] sm:$0xff]
    %v5890 = vld [vmem:[#allocation11 + $0x100] sm:$0xff]
    %v5891 = vld [vmem:[#allocation11 + $0x108] sm:$0xff]
    %v5892 = vld [vmem:[#allocation11 + $0x110] sm:$0xff]
    %v5893 = vld [vmem:[#allocation11 + $0x118] sm:$0xff]
    %v5894 = vld [vmem:[#allocation11 + $0x120] sm:$0xff]
    %v5895 = vld [vmem:[#allocation11 + $0x128] sm:$0xff]
    %v5896 = vld [vmem:[#allocation11 + $0x130] sm:$0xff]
    %v5897 = vld [vmem:[#allocation11 + $0x138] sm:$0xff]
    %v5898 = vld [vmem:[#allocation11 + $0x140] sm:$0xff]
    %v5899 = vld [vmem:[#allocation11 + $0x148] sm:$0xff]
    %v5900 = vld [vmem:[#allocation11 + $0x150] sm:$0xff]
    %v5901 = vld [vmem:[#allocation11 + $0x158] sm:$0xff]
    %v5902 = vld [vmem:[#allocation11 + $0x160] sm:$0xff]
    %v5903 = vld [vmem:[#allocation11 + $0x168] sm:$0xff]
    %v5904 = vld [vmem:[#allocation11 + $0x170] sm:$0xff]
    %v5905 = vld [vmem:[#allocation11 + $0x178] sm:$0xff]
    %v5906 = vld [vmem:[#allocation11 + $0x180] sm:$0xff]
    %v5907 = vld [vmem:[#allocation11 + $0x188] sm:$0xff]
    %v5908 = vld [vmem:[#allocation11 + $0x190] sm:$0xff]
    %v5909 = vld [vmem:[#allocation11 + $0x198] sm:$0xff]
    %v5910 = vld [vmem:[#allocation11 + $0x1a0] sm:$0xff]
    %v5911 = vld [vmem:[#allocation11 + $0x1a8] sm:$0xff]
    %v5912 = vld [vmem:[#allocation11 + $0x1b0] sm:$0xff]
    %v5913 = vld [vmem:[#allocation11 + $0x1b8] sm:$0xff]
    %v5914 = vld [vmem:[#allocation11 + $0x1c0] sm:$0xff]
    %v5915 = vld [vmem:[#allocation11 + $0x1c8] sm:$0xff]
    %v5916 = vld [vmem:[#allocation11 + $0x1d0] sm:$0xff]
    %v5917 = vld [vmem:[#allocation11 + $0x1d8] sm:$0xff]
    %v5918 = vld [vmem:[#allocation11 + $0x1e0] sm:$0xff]
    %v5919 = vld [vmem:[#allocation11 + $0x1e8] sm:$0xff]
    %v5920 = vld [vmem:[#allocation11 + $0x1f0] sm:$0xff]
    %v5921 = vld [vmem:[#allocation11 + $0x1f8] sm:$0xff]
    %v5922 = vld [vmem:[#allocation13] sm:$0x3]
    %v5924 = vlaneseq
    %v5925 = vshrl.u32 %v5924, 7
    %v5926 = vsub.s32 0, %v5925
    %v5927 = vrot.slane %v5922, %v5926
    %v5928 = vlaneseq
    %v5929 = vshrl.u32 %v5928, 7
    %v5930 = vsub.s32 1, %v5929
    %v5931 = vrot.slane %v5922, %v5930
    %v5998 = vunpack.c.l.b16 %v5858
    %v5999 = vunpack.c.h.b16 %v5858
    %v6000 = vunpack.c.l.b16 %v5859
    %v6001 = vunpack.c.h.b16 %v5859
    %v6002 = vunpack.c.l.b16 %v5860
    %v6003 = vunpack.c.h.b16 %v5860
    %v6004 = vunpack.c.l.b16 %v5861
    %v6005 = vunpack.c.h.b16 %v5861
    %v6006 = vunpack.c.l.b16 %v5862
    %v6007 = vunpack.c.h.b16 %v5862
    %v6008 = vunpack.c.l.b16 %v5863
    %v6009 = vunpack.c.h.b16 %v5863
    %v6010 = vunpack.c.l.b16 %v5864
    %v6011 = vunpack.c.h.b16 %v5864
    %v6012 = vunpack.c.l.b16 %v5865
    %v6013 = vunpack.c.h.b16 %v5865
    %v6014 = vunpack.c.l.b16 %v5866
    %v6015 = vunpack.c.h.b16 %v5866
    %v6016 = vunpack.c.l.b16 %v5867
    %v6017 = vunpack.c.h.b16 %v5867
    %v6018 = vunpack.c.l.b16 %v5868
    %v6019 = vunpack.c.h.b16 %v5868
    %v6020 = vunpack.c.l.b16 %v5869
    %v6021 = vunpack.c.h.b16 %v5869
    %v6022 = vunpack.c.l.b16 %v5870
    %v6023 = vunpack.c.h.b16 %v5870
    %v6024 = vunpack.c.l.b16 %v5871
    %v6025 = vunpack.c.h.b16 %v5871
    %v6026 = vunpack.c.l.b16 %v5872
    %v6027 = vunpack.c.h.b16 %v5872
    %v6028 = vunpack.c.l.b16 %v5873
    %v6029 = vunpack.c.h.b16 %v5873
    %v6030 = vunpack.c.l.b16 %v5874
    %v6031 = vunpack.c.h.b16 %v5874
    %v6032 = vunpack.c.l.b16 %v5875
    %v6033 = vunpack.c.h.b16 %v5875
    %v6034 = vunpack.c.l.b16 %v5876
    %v6035 = vunpack.c.h.b16 %v5876
    %v6036 = vunpack.c.l.b16 %v5877
    %v6037 = vunpack.c.h.b16 %v5877
    %v6038 = vunpack.c.l.b16 %v5878
    %v6039 = vunpack.c.h.b16 %v5878
    %v6040 = vunpack.c.l.b16 %v5879
    %v6041 = vunpack.c.h.b16 %v5879
    %v6042 = vunpack.c.l.b16 %v5880
    %v6043 = vunpack.c.h.b16 %v5880
    %v6044 = vunpack.c.l.b16 %v5881
    %v6045 = vunpack.c.h.b16 %v5881
    %v6046 = vunpack.c.l.b16 %v5882
    %v6047 = vunpack.c.h.b16 %v5882
    %v6048 = vunpack.c.l.b16 %v5883
    %v6049 = vunpack.c.h.b16 %v5883
    %v6050 = vunpack.c.l.b16 %v5884
    %v6051 = vunpack.c.h.b16 %v5884
    %v6052 = vunpack.c.l.b16 %v5885
    %v6053 = vunpack.c.h.b16 %v5885
    %v6054 = vunpack.c.l.b16 %v5886
    %v6055 = vunpack.c.h.b16 %v5886
    %v6056 = vunpack.c.l.b16 %v5887
    %v6057 = vunpack.c.h.b16 %v5887
    %v6058 = vunpack.c.l.b16 %v5888
    %v6059 = vunpack.c.h.b16 %v5888
    %v6060 = vunpack.c.l.b16 %v5889
    %v6061 = vunpack.c.h.b16 %v5889
    %v6062 = vunpack.c.l.b16 %v5890
    %v6063 = vunpack.c.h.b16 %v5890
    %v6064 = vunpack.c.l.b16 %v5891
    %v6065 = vunpack.c.h.b16 %v5891
    %v6066 = vunpack.c.l.b16 %v5892
    %v6067 = vunpack.c.h.b16 %v5892
    %v6068 = vunpack.c.l.b16 %v5893
    %v6069 = vunpack.c.h.b16 %v5893
    %v6070 = vunpack.c.l.b16 %v5894
    %v6071 = vunpack.c.h.b16 %v5894
    %v6072 = vunpack.c.l.b16 %v5895
    %v6073 = vunpack.c.h.b16 %v5895
    %v6074 = vunpack.c.l.b16 %v5896
    %v6075 = vunpack.c.h.b16 %v5896
    %v6076 = vunpack.c.l.b16 %v5897
    %v6077 = vunpack.c.h.b16 %v5897
    %v6078 = vunpack.c.l.b16 %v5898
    %v6079 = vunpack.c.h.b16 %v5898
    %v6080 = vunpack.c.l.b16 %v5899
    %v6081 = vunpack.c.h.b16 %v5899
    %v6082 = vunpack.c.l.b16 %v5900
    %v6083 = vunpack.c.h.b16 %v5900
    %v6084 = vunpack.c.l.b16 %v5901
    %v6085 = vunpack.c.h.b16 %v5901
    %v6086 = vunpack.c.l.b16 %v5902
    %v6087 = vunpack.c.h.b16 %v5902
    %v6088 = vunpack.c.l.b16 %v5903
    %v6089 = vunpack.c.h.b16 %v5903
    %v6090 = vunpack.c.l.b16 %v5904
    %v6091 = vunpack.c.h.b16 %v5904
    %v6092 = vunpack.c.l.b16 %v5905
    %v6093 = vunpack.c.h.b16 %v5905
    %v6094 = vunpack.c.l.b16 %v5906
    %v6095 = vunpack.c.h.b16 %v5906
    %v6096 = vunpack.c.l.b16 %v5907
    %v6097 = vunpack.c.h.b16 %v5907
    %v6098 = vunpack.c.l.b16 %v5908
    %v6099 = vunpack.c.h.b16 %v5908
    %v6100 = vunpack.c.l.b16 %v5909
    %v6101 = vunpack.c.h.b16 %v5909
    %v6102 = vunpack.c.l.b16 %v5910
    %v6103 = vunpack.c.h.b16 %v5910
    %v6104 = vunpack.c.l.b16 %v5911
    %v6105 = vunpack.c.h.b16 %v5911
    %v6106 = vunpack.c.l.b16 %v5912
    %v6107 = vunpack.c.h.b16 %v5912
    %v6108 = vunpack.c.l.b16 %v5913
    %v6109 = vunpack.c.h.b16 %v5913
    %v6110 = vunpack.c.l.b16 %v5914
    %v6111 = vunpack.c.h.b16 %v5914
    %v6112 = vunpack.c.l.b16 %v5915
    %v6113 = vunpack.c.h.b16 %v5915
    %v6114 = vunpack.c.l.b16 %v5916
    %v6115 = vunpack.c.h.b16 %v5916
    %v6116 = vunpack.c.l.b16 %v5917
    %v6117 = vunpack.c.h.b16 %v5917
    %v6118 = vunpack.c.l.b16 %v5918
    %v6119 = vunpack.c.h.b16 %v5918
    %v6120 = vunpack.c.l.b16 %v5919
    %v6121 = vunpack.c.h.b16 %v5919
    %v6122 = vunpack.c.l.b16 %v5920
    %v6123 = vunpack.c.h.b16 %v5920
    %v6124 = vunpack.c.l.b16 %v5921
    %v6125 = vunpack.c.h.b16 %v5921
    %v6126 = vpack.c.b16 %v6000, %v5998
    %v6127 = vpack.c.b16 %v6001, %v5999
    %v6128 = vpack.c.b16 %v6004, %v6002
    %v6129 = vpack.c.b16 %v6005, %v6003
    %v6130 = vpack.c.b16 %v6008, %v6006
    %v6131 = vpack.c.b16 %v6009, %v6007
    %v6132 = vpack.c.b16 %v6012, %v6010
    %v6133 = vpack.c.b16 %v6013, %v6011
    %v6134 = vpack.c.b16 %v6016, %v6014
    %v6135 = vpack.c.b16 %v6017, %v6015
    %v6136 = vpack.c.b16 %v6020, %v6018
    %v6137 = vpack.c.b16 %v6021, %v6019
    %v6138 = vpack.c.b16 %v6024, %v6022
    %v6139 = vpack.c.b16 %v6025, %v6023
    %v6140 = vpack.c.b16 %v6028, %v6026
    %v6141 = vpack.c.b16 %v6029, %v6027
    %v6142 = vpack.c.b16 %v6032, %v6030
    %v6143 = vpack.c.b16 %v6033, %v6031
    %v6144 = vpack.c.b16 %v6036, %v6034
    %v6145 = vpack.c.b16 %v6037, %v6035
    %v6146 = vpack.c.b16 %v6040, %v6038
    %v6147 = vpack.c.b16 %v6041, %v6039
    %v6148 = vpack.c.b16 %v6044, %v6042
    %v6149 = vpack.c.b16 %v6045, %v6043
    %v6150 = vpack.c.b16 %v6048, %v6046
    %v6151 = vpack.c.b16 %v6049, %v6047
    %v6152 = vpack.c.b16 %v6052, %v6050
    %v6153 = vpack.c.b16 %v6053, %v6051
    %v6154 = vpack.c.b16 %v6056, %v6054
    %v6155 = vpack.c.b16 %v6057, %v6055
    %v6156 = vpack.c.b16 %v6060, %v6058
    %v6157 = vpack.c.b16 %v6061, %v6059
    %v6158 = vpack.c.b16 %v6064, %v6062
    %v6159 = vpack.c.b16 %v6065, %v6063
    %v6160 = vpack.c.b16 %v6068, %v6066
    %v6161 = vpack.c.b16 %v6069, %v6067
    %v6162 = vpack.c.b16 %v6072, %v6070
    %v6163 = vpack.c.b16 %v6073, %v6071
    %v6164 = vpack.c.b16 %v6076, %v6074
    %v6165 = vpack.c.b16 %v6077, %v6075
    %v6166 = vpack.c.b16 %v6080, %v6078
    %v6167 = vpack.c.b16 %v6081, %v6079
    %v6168 = vpack.c.b16 %v6084, %v6082
    %v6169 = vpack.c.b16 %v6085, %v6083
    %v6170 = vpack.c.b16 %v6088, %v6086
    %v6171 = vpack.c.b16 %v6089, %v6087
    %v6172 = vpack.c.b16 %v6092, %v6090
    %v6173 = vpack.c.b16 %v6093, %v6091
    %v6174 = vpack.c.b16 %v6096, %v6094
    %v6175 = vpack.c.b16 %v6097, %v6095
    %v6176 = vpack.c.b16 %v6100, %v6098
    %v6177 = vpack.c.b16 %v6101, %v6099
    %v6178 = vpack.c.b16 %v6104, %v6102
    %v6179 = vpack.c.b16 %v6105, %v6103
    %v6180 = vpack.c.b16 %v6108, %v6106
    %v6181 = vpack.c.b16 %v6109, %v6107
    %v6182 = vpack.c.b16 %v6112, %v6110
    %v6183 = vpack.c.b16 %v6113, %v6111
    %v6184 = vpack.c.b16 %v6116, %v6114
    %v6185 = vpack.c.b16 %v6117, %v6115
    %v6186 = vpack.c.b16 %v6120, %v6118
    %v6187 = vpack.c.b16 %v6121, %v6119
    %v6188 = vpack.c.b16 %v6124, %v6122
    %v6189 = vpack.c.b16 %v6125, %v6123
    %6254 = vmatprep.subr.bf16.mxu0 %v6141
    %6255 = vmatpush1.bf16.msra.mxu0 %v6140
    %6256 = vmatprep.subr.bf16.mxu0 %v6139
    %6257 = vmatpush1.bf16.msra.mxu0 %v6138
    %6258 = vmatprep.subr.bf16.mxu0 %v6137
    %6259 = vmatpush1.bf16.msra.mxu0 %v6136
    %6260 = vmatprep.subr.bf16.mxu0 %v6135
    %6261 = vmatpush1.bf16.msra.mxu0 %v6134
    %6262 = vmatprep.subr.bf16.mxu0 %v6133
    %6263 = vmatpush1.bf16.msra.mxu0 %v6132
    %6264 = vmatprep.subr.bf16.mxu0 %v6131
    %6265 = vmatpush1.bf16.msra.mxu0 %v6130
    %6266 = vmatprep.subr.bf16.mxu0 %v6129
    %6267 = vmatpush1.bf16.msra.mxu0 %v6128
    %6268 = vmatprep.subr.bf16.mxu0 %v6127
    %6269 = vmatpush1.bf16.msra.mxu0 %v6126
    %6270 = vmatprep.subr.bf16.mxu0 %v6157
    %6271 = vmatpush2.bf16.msra.mxu0 %v6156
    %6272 = vmatprep.subr.bf16.mxu0 %v6155
    %6273 = vmatpush2.bf16.msra.mxu0 %v6154
    %6274 = vmatprep.subr.bf16.mxu0 %v6153
    %6275 = vmatpush2.bf16.msra.mxu0 %v6152
    %6276 = vmatprep.subr.bf16.mxu0 %v6151
    %6277 = vmatpush2.bf16.msra.mxu0 %v6150
    %6278 = vmatprep.subr.bf16.mxu0 %v6149
    %6279 = vmatpush2.bf16.msra.mxu0 %v6148
    %6280 = vmatprep.subr.bf16.mxu0 %v6147
    %6281 = vmatpush2.bf16.msra.mxu0 %v6146
    %6282 = vmatprep.subr.bf16.mxu0 %v6145
    %6283 = vmatpush2.bf16.msra.mxu0 %v6144
    %6284 = vmatprep.subr.bf16.mxu0 %v6143
    %6285 = vmatpush2.bf16.msra.mxu0 %v6142
    %6286 = vmatprep.mubr.bf16.mxu0 %v5855
    %6287 = vmatmul.mubr.bf16.gmra.mxu0 %v5854
    %v6288 = vpop.f32.mrf.mxu0
    %v6289 = vadd.f32 %v5927, %v6288
    %v6290 = vpop.f32.mrf.mxu0
    %v6291 = vadd.f32 %v5931, %v6290
    %v6292 = vpop.f32.mrf.mxu0
    %v6293 = vpop.f32.mrf.mxu0
    %6294 = vdwg.mxu0
    %6295 = vmatprep.subr.bf16.mxu0 %v6173
    %6296 = vmatpush1.bf16.msra.mxu0 %v6172
    %6297 = vmatprep.subr.bf16.mxu0 %v6171
    %6298 = vmatpush1.bf16.msra.mxu0 %v6170
    %6299 = vmatprep.subr.bf16.mxu0 %v6169
    %6300 = vmatpush1.bf16.msra.mxu0 %v6168
    %6301 = vmatprep.subr.bf16.mxu0 %v6167
    %6302 = vmatpush1.bf16.msra.mxu0 %v6166
    %6303 = vmatprep.subr.bf16.mxu0 %v6165
    %6304 = vmatpush1.bf16.msra.mxu0 %v6164
    %6305 = vmatprep.subr.bf16.mxu0 %v6163
    %6306 = vmatpush1.bf16.msra.mxu0 %v6162
    %6307 = vmatprep.subr.bf16.mxu0 %v6161
    %6308 = vmatpush1.bf16.msra.mxu0 %v6160
    %6309 = vmatprep.subr.bf16.mxu0 %v6159
    %6310 = vmatpush1.bf16.msra.mxu0 %v6158
    %6311 = vmatprep.subr.bf16.mxu0 %v6189
    %6312 = vmatpush2.bf16.msra.mxu0 %v6188
    %6313 = vmatprep.subr.bf16.mxu0 %v6187
    %6314 = vmatpush2.bf16.msra.mxu0 %v6186
    %6315 = vmatprep.subr.bf16.mxu0 %v6185
    %6316 = vmatpush2.bf16.msra.mxu0 %v6184
    %6317 = vmatprep.subr.bf16.mxu0 %v6183
    %6318 = vmatpush2.bf16.msra.mxu0 %v6182
    %6319 = vmatprep.subr.bf16.mxu0 %v6181
    %6320 = vmatpush2.bf16.msra.mxu0 %v6180
    %6321 = vmatprep.subr.bf16.mxu0 %v6179
    %6322 = vmatpush2.bf16.msra.mxu0 %v6178
    %6323 = vmatprep.subr.bf16.mxu0 %v6177
    %6324 = vmatpush2.bf16.msra.mxu0 %v6176
    %6325 = vmatprep.subr.bf16.mxu0 %v6175
    %6326 = vmatpush2.bf16.msra.mxu0 %v6174
    %6327 = vmatprep.mubr.bf16.mxu0 %v5857
    %6328 = vmatmul.mubr.bf16.gmra.mxu0 %v5856
    %v6329 = vpop.f32.mrf.mxu0
    %v6330 = vadd.f32 %v6289, %v6329
    %v6331 = vpop.f32.mrf.mxu0
    %v6332 = vadd.f32 %v6291, %v6331
    %v6333 = vpop.f32.mrf.mxu0
    %v6334 = vpop.f32.mrf.mxu0
    %6335 = vdwg.mxu0
    %v6336 = vmax.f32 %v6330, 0.0
    %v6337 = vmax.f32 %v6332, 0.0
    %v6338 = vpack.c.bf16 %v6336, %v6336
    %v6339 = vpack.c.bf16 %v6337, %v6337
    %v6340 = vld [vmem:[#allocation14] sm:$0xf]
    %v6341 = vld [vmem:[#allocation14 + $0x4] sm:$0xf]
    %v6342 = vld [vmem:[#allocation14 + $0x8] sm:$0xf]
    %v6343 = vld [vmem:[#allocation14 + $0xc] sm:$0xf]
    %v6344 = vld [vmem:[#allocation14 + $0x10] sm:$0xf]
    %v6345 = vld [vmem:[#allocation14 + $0x14] sm:$0xf]
    %v6346 = vld [vmem:[#allocation14 + $0x18] sm:$0xf]
    %v6347 = vld [vmem:[#allocation14 + $0x1c] sm:$0xf]
    %v6348 = vld [vmem:[#allocation14 + $0x20] sm:$0xf]
    %v6349 = vld [vmem:[#allocation14 + $0x24] sm:$0xf]
    %v6350 = vld [vmem:[#allocation14 + $0x28] sm:$0xf]
    %v6351 = vld [vmem:[#allocation14 + $0x2c] sm:$0xf]
    %v6352 = vld [vmem:[#allocation14 + $0x30] sm:$0xf]
    %v6353 = vld [vmem:[#allocation14 + $0x34] sm:$0xf]
    %v6354 = vld [vmem:[#allocation14 + $0x38] sm:$0xf]
    %v6355 = vld [vmem:[#allocation14 + $0x3c] sm:$0xf]
    %v6356 = vld [vmem:[#allocation14 + $0x40] sm:$0xf]
    %v6357 = vld [vmem:[#allocation14 + $0x44] sm:$0xf]
    %v6358 = vld [vmem:[#allocation14 + $0x48] sm:$0xf]
    %v6359 = vld [vmem:[#allocation14 + $0x4c] sm:$0xf]
    %v6360 = vld [vmem:[#allocation14 + $0x50] sm:$0xf]
    %v6361 = vld [vmem:[#allocation14 + $0x54] sm:$0xf]
    %v6362 = vld [vmem:[#allocation14 + $0x58] sm:$0xf]
    %v6363 = vld [vmem:[#allocation14 + $0x5c] sm:$0xf]
    %v6364 = vld [vmem:[#allocation14 + $0x60] sm:$0xf]
    %v6365 = vld [vmem:[#allocation14 + $0x64] sm:$0xf]
    %v6366 = vld [vmem:[#allocation14 + $0x68] sm:$0xf]
    %v6367 = vld [vmem:[#allocation14 + $0x6c] sm:$0xf]
    %v6368 = vld [vmem:[#allocation14 + $0x70] sm:$0xf]
    %v6369 = vld [vmem:[#allocation14 + $0x74] sm:$0xf]
    %v6370 = vld [vmem:[#allocation14 + $0x78] sm:$0xf]
    %v6371 = vld [vmem:[#allocation14 + $0x7c] sm:$0xf]
    %v6372 = vld [vmem:[#allocation16] sm:$0x1]
    %v6374 = vlaneseq
    %v6375 = vshrl.u32 %v6374, 7
    %v6376 = vsub.s32 0, %v6375
    %v6377 = vrot.slane %v6372, %v6376
    %v6411 = vunpack.c.l.b16 %v6340
    %v6412 = vunpack.c.l.b16 %v6341
    %v6413 = vunpack.c.l.b16 %v6342
    %v6414 = vunpack.c.l.b16 %v6343
    %v6415 = vunpack.c.l.b16 %v6344
    %v6416 = vunpack.c.l.b16 %v6345
    %v6417 = vunpack.c.l.b16 %v6346
    %v6418 = vunpack.c.l.b16 %v6347
    %v6419 = vunpack.c.l.b16 %v6348
    %v6420 = vunpack.c.l.b16 %v6349
    %v6421 = vunpack.c.l.b16 %v6350
    %v6422 = vunpack.c.l.b16 %v6351
    %v6423 = vunpack.c.l.b16 %v6352
    %v6424 = vunpack.c.l.b16 %v6353
    %v6425 = vunpack.c.l.b16 %v6354
    %v6426 = vunpack.c.l.b16 %v6355
    %v6427 = vunpack.c.l.b16 %v6356
    %v6428 = vunpack.c.l.b16 %v6357
    %v6429 = vunpack.c.l.b16 %v6358
    %v6430 = vunpack.c.l.b16 %v6359
    %v6431 = vunpack.c.l.b16 %v6360
    %v6432 = vunpack.c.l.b16 %v6361
    %v6433 = vunpack.c.l.b16 %v6362
    %v6434 = vunpack.c.l.b16 %v6363
    %v6435 = vunpack.c.l.b16 %v6364
    %v6436 = vunpack.c.l.b16 %v6365
    %v6437 = vunpack.c.l.b16 %v6366
    %v6438 = vunpack.c.l.b16 %v6367
    %v6439 = vunpack.c.l.b16 %v6368
    %v6440 = vunpack.c.l.b16 %v6369
    %v6441 = vunpack.c.l.b16 %v6370
    %v6442 = vunpack.c.l.b16 %v6371
    %v6443 = vpack.c.b16 %v6412, %v6411
    %v6444 = vpack.c.b16 %v6414, %v6413
    %v6445 = vpack.c.b16 %v6416, %v6415
    %v6446 = vpack.c.b16 %v6418, %v6417
    %v6447 = vpack.c.b16 %v6420, %v6419
    %v6448 = vpack.c.b16 %v6422, %v6421
    %v6449 = vpack.c.b16 %v6424, %v6423
    %v6450 = vpack.c.b16 %v6426, %v6425
    %v6451 = vpack.c.b16 %v6428, %v6427
    %v6452 = vpack.c.b16 %v6430, %v6429
    %v6453 = vpack.c.b16 %v6432, %v6431
    %v6454 = vpack.c.b16 %v6434, %v6433
    %v6455 = vpack.c.b16 %v6436, %v6435
    %v6456 = vpack.c.b16 %v6438, %v6437
    %v6457 = vpack.c.b16 %v6440, %v6439
    %v6458 = vpack.c.b16 %v6442, %v6441
    %6475 = vmatprep.subr.bf16.mxu0 0
    %6476 = vmatpush1.bf16.msra.mxu0 %v6450
    %6477 = vmatprep.subr.bf16.mxu0 0
    %6478 = vmatpush1.bf16.msra.mxu0 %v6449
    %6479 = vmatprep.subr.bf16.mxu0 0
    %6480 = vmatpush1.bf16.msra.mxu0 %v6448
    %6481 = vmatprep.subr.bf16.mxu0 0
    %6482 = vmatpush1.bf16.msra.mxu0 %v6447
    %6483 = vmatprep.subr.bf16.mxu0 0
    %6484 = vmatpush1.bf16.msra.mxu0 %v6446
    %6485 = vmatprep.subr.bf16.mxu0 0
    %6486 = vmatpush1.bf16.msra.mxu0 %v6445
    %6487 = vmatprep.subr.bf16.mxu0 0
    %6488 = vmatpush1.bf16.msra.mxu0 %v6444
    %6489 = vmatprep.subr.bf16.mxu0 0
    %6490 = vmatpush1.bf16.msra.mxu0 %v6443
    %6491 = vmatprep.subr.bf16.mxu0 0
    %6492 = vmatpush2.bf16.msra.mxu0 %v6458
    %6493 = vmatprep.subr.bf16.mxu0 0
    %6494 = vmatpush2.bf16.msra.mxu0 %v6457
    %6495 = vmatprep.subr.bf16.mxu0 0
    %6496 = vmatpush2.bf16.msra.mxu0 %v6456
    %6497 = vmatprep.subr.bf16.mxu0 0
    %6498 = vmatpush2.bf16.msra.mxu0 %v6455
    %6499 = vmatprep.subr.bf16.mxu0 0
    %6500 = vmatpush2.bf16.msra.mxu0 %v6454
    %6501 = vmatprep.subr.bf16.mxu0 0
    %6502 = vmatpush2.bf16.msra.mxu0 %v6453
    %6503 = vmatprep.subr.bf16.mxu0 0
    %6504 = vmatpush2.bf16.msra.mxu0 %v6452
    %6505 = vmatprep.subr.bf16.mxu0 0
    %6506 = vmatpush2.bf16.msra.mxu0 %v6451
    %6507 = vmatprep.mubr.bf16.mxu0 %v6339
    %6508 = vmatmul.mubr.bf16.gmra.mxu0 %v6338
    %v6509 = vpop.f32.mrf.mxu0
    %v6510 = vadd.f32 %v6377, %v6509
    %v6511 = vpop.f32.mrf.mxu0
    %v6512 = vpop.f32.mrf.mxu0
    %v6513 = vpop.f32.mrf.mxu0
    %6514 = vdwg.mxu0
    %6515 = vst [vmem:[#allocation17] sm:$0xff] %v6510
    // Predicated region
    $region74: #{tpu_custom_call.1} parent=1 // pred_check
      _
    $region75: #{tpu_custom_call.1} parent=1 // pred_check_branch
      %6517 = sbr.rel (0) target = $region77
    $region76: #{tpu_custom_call.1} parent=1 // pred_region
      %s6519 = ssub.s32 128, 128
      %6520 = vsyncadd [#allocation4], %s6519
      %s6522 = sshll.u32 [#allocation17], 4
      %s6523 = int_to_ptr.vmem [resolvable:$true] %s6522
      %6525 = dma.vmem_to_hbm [thread:$0]  %s6523, 128, %s9, [#allocation4]
    $region77: #{tpu_custom_call.1} parent=1 // pred_fallthru
      _
    // Predicated region
    $region78: #{tpu_custom_call.1} parent=1 // pred_check
      _
    $region79: #{tpu_custom_call.1} parent=1 // pred_check_branch
      %6527 = sbr.rel (0) target = $region81
    $region80: #{tpu_custom_call.1} parent=1 // pred_region
      %6528 = dma.done [#allocation4], 128
    $region81: #{tpu_custom_call.1} parent=1 // pred_fallthru
      _
    %6529 = vsyncpa [#allocation3], 1
    %6530 = vsyncpa [#allocation6], 1
    %6531 = vsyncpa [#allocation9], 1
    %6532 = vsyncpa [#allocation12], 1
    %6533 = vsyncpa [#allocation15], 1
    %6534 = vsyncpa [#allocation4], 1

</llo_original>
